<compile_context>
chip_gen: v7x
topology: tpu7x:2x2x1
jax: 0.10.0
libtpu: 0.0.40
codegen_flags: <defaults>
</compile_context>

<pallas_src>
import jax
import jax.numpy as jnp
from jax.experimental import pallas as pl
from jax.experimental.pallas import tpu as pltpu

# ---- model hyper-parameters (small, consistent with the module's __init__) ----
EMBED = 32          # embed_size
HEADS = 4           # num_heads
HEAD_DIM = EMBED // HEADS
FF = 64             # ff_hidden_dim
LAYERS = 2          # num_layers
SEQ = 8
BATCH = 2
VOCAB = 100
EPS = 1e-5          # nn.LayerNorm default eps
N_TOK = BATCH * SEQ

# ---- wslab (bf16, 64 lanes wide) row offsets : all 16-sublane-tile aligned ----
WQ_OFF, WK_OFF, WV_OFF, WO_OFF = 0, 32, 64, 96
W1_OFF, W2_OFF = 128, 160
LAYER_W_ROWS = 224                    # 5*32 + 64
HW1_OFF = LAYERS * LAYER_W_ROWS       # 448
W_ROWS = HW1_OFF + EMBED              # 480

# ---- vslab (f32, 64 lanes wide) row offsets ----
R_BQ, R_BK, R_BV, R_BO, R_G1, R_B1, R_G2, R_B2, R_BF2, R_BF1 = range(10)
LAYER_V_ROWS = 10
RV_GN = LAYERS * LAYER_V_ROWS         # 20
RV_BN, RV_HB1, RV_HW2, RV_HB2 = 21, 22, 23, 24
EMB_OFF = 32                          # embedding table rows 32..131
V_ROWS = 136                          # padded to a multiple of 8


# ---------------------------------------------------------------------------
# Shared math (same code runs on Pallas Refs inside the kernel and on plain
# jnp arrays in the pure-JAX reference -> identical numerics except `recip`).
# ---------------------------------------------------------------------------
def _layernorm(x, gamma, beta):
    mu = jnp.mean(x, axis=-1, keepdims=True)
    var = jnp.mean((x - mu) ** 2, axis=-1, keepdims=True)
    return (x - mu) * jax.lax.rsqrt(var + EPS) * gamma + beta


def _forward_math(ids, mask, wslab, vslab, recip):
    f32, bf16 = jnp.float32, jnp.bfloat16
    scale = 1.0 / (HEAD_DIM ** 0.5)

    def vrow(r, w=EMBED):
        return vslab[r:r + 1, 0:w]                       # (1, w) f32

    def wmat(r, rows, cols):
        return wslab[r:r + rows, 0:cols]                  # bf16 weight block

    # --- base-model stand-in: masked embedding lookup as an exact one-hot matmul ---
    emb = vslab[EMB_OFF:EMB_OFF + VOCAB, 0:EMBED]         # (V, E) f32
    ids_v = ids[...]                                      # (B, S) int32
    msk_v = mask[...].astype(f32)                         # (B, S)
    onehot = (jax.lax.broadcasted_iota(jnp.int32, (BATCH, SEQ, VOCAB), 2)
              == ids_v[:, :, None]).astype(f32)
    onehot = onehot * msk_v[:, :, None]                   # fold mask into one-hot
    x = jnp.dot(onehot.reshape(N_TOK, VOCAB), emb,
                preferred_element_type=f32)               # (N, E) f32

    for l in range(LAYERS):                               # static unroll (LAYERS == 2)
        wb = l * LAYER_W_ROWS
        vb = l * LAYER_V_ROWS
        xb = x.astype(bf16)

        # lane-dense q/k/v projections (bf16 MXU operands, f32 accumulation)
        q = (jnp.dot(xb, wmat(wb + WQ_OFF, EMBED, EMBED), preferred_element_type=f32)
             + vrow(vb + R_BQ)) * scale
        k = jnp.dot(xb, wmat(wb + WK_OFF, EMBED, EMBED),
                    preferred_element_type=f32) + vrow(vb + R_BK)
        v = jnp.dot(xb, wmat(wb + WV_OFF, EMBED, EMBED),
                    preferred_element_type=f32) + vrow(vb + R_BV)
        q3 = q.reshape(BATCH, SEQ, EMBED)
        k3 = k.reshape(BATCH, SEQ, EMBED)
        v3 = v.reshape(BATCH, SEQ, EMBED)

        # per-head attention (S=8, D=8 -> inherently tiny); batched over B only.
        ctx_heads = []
        for h in range(HEADS):                            # static unroll over heads
            sl = slice(h * HEAD_DIM, (h + 1) * HEAD_DIM)
            s = jnp.einsum('bqd,bkd->bqk', q3[:, :, sl], k3[:, :, sl],
                           preferred_element_type=f32)
            s = s - jnp.max(s, axis=-1, keepdims=True)
            p = jnp.exp(s)
            p = p * recip(jnp.sum(p, axis=-1, keepdims=True))
            ctx_heads.append(jnp.einsum('bqk,bkd->bqd', p, v3[:, :, sl],
                                        preferred_element_type=f32))
        ctx = jnp.concatenate(ctx_heads, axis=-1).reshape(N_TOK, EMBED)

        attn = jnp.dot(ctx.astype(bf16), wmat(wb + WO_OFF, EMBED, EMBED),
                       preferred_element_type=f32) + vrow(vb + R_BO)
        x1 = _layernorm(x + attn, vrow(vb + R_G1), vrow(vb + R_B1))

        hdn = jnp.maximum(
            jnp.dot(x1.astype(bf16), wmat(wb + W1_OFF, EMBED, FF),
                    preferred_element_type=f32) + vrow(vb + R_BF1, FF), 0.0)
        ffn = jnp.dot(hdn.astype(bf16), wmat(wb + W2_OFF, FF, EMBED),
                      preferred_element_type=f32) + vrow(vb + R_BF2)
        x = _layernorm(x1 + ffn, vrow(vb + R_G2), vrow(vb + R_B2))

    # Head: final LayerNorm -> max-pool over sequence -> MLP -> (B, 1).
    xn = _layernorm(x, vrow(RV_GN), vrow(RV_BN))
    pooled = jnp.max(xn.reshape(BATCH, SEQ, EMBED), axis=1)        # AdaptiveMaxPool1d(1)
    hd = jnp.maximum(
        jnp.dot(pooled.astype(bf16), wmat(HW1_OFF, EMBED, FF),
                preferred_element_type=f32) + vrow(RV_HB1, FF), 0.0)
    # Linear(FF, 1) as VPU multiply + lane-reduce (avoids a 1-lane-wide MXU matmul).
    out = jnp.sum(hd * vrow(RV_HW2, FF), axis=-1, keepdims=True)
    return out + vslab[RV_HB2:RV_HB2 + 1, 0:1]                     # (B, 1) f32


# ---------------------------------------------------------------------------
# Single fused Pallas kernel (everything VMEM-resident, no grid needed)
# ---------------------------------------------------------------------------
def fused_kernel(ids_ref, mask_ref, wslab_ref, vslab_ref, o_ref):
    o_ref[...] = _forward_math(ids_ref, mask_ref, wslab_ref, vslab_ref,
                               recip=lambda t: pl.reciprocal(t, approx=True))


@jax.jit
def logp_forward(input_ids, attention_mask, params):
    return pl.pallas_call(
        fused_kernel,
        out_shape=jax.ShapeDtypeStruct((BATCH, 1), jnp.float32),
        in_specs=[pl.BlockSpec(memory_space=pltpu.MemorySpace.VMEM)] * 4,
        out_specs=pl.BlockSpec(memory_space=pltpu.MemorySpace.VMEM),
    )(input_ids, attention_mask, params['wslab'], params['vslab'])


def logp_forward_ref(input_ids, attention_mask, params):
    return _forward_math(input_ids, attention_mask, params['wslab'], params['vslab'],
                         recip=lambda t: 1.0 / t)


# ---------------------------------------------------------------------------
# Deterministic parameter init (packed slab layout; shapes implied by the module)
# ---------------------------------------------------------------------------
def init_params(key):
    def nrm(k, shape, s=0.02):
        return (s * jax.random.normal(k, shape)).astype(jnp.float32)

    keys = jax.random.split(key, 2 + LAYERS)
    emb = nrm(keys[0], (VOCAB, EMBED), 1.0)

    wslab = jnp.zeros((W_ROWS, 64), jnp.float32)
    vslab = jnp.zeros((V_ROWS, 64), jnp.float32)
    ones_e = jnp.ones((EMBED,), jnp.float32)

    for i in range(LAYERS):
        lk = jax.random.split(keys[2 + i], 12)
        wq = nrm(lk[0], (EMBED, EMBED)); wk = nrm(lk[1], (EMBED, EMBED))
        wv = nrm(lk[2], (EMBED, EMBED)); wo = nrm(lk[3], (EMBED, EMBED))
        bq = nrm(lk[4], (EMBED,)); bk = nrm(lk[5], (EMBED,)); bv = nrm(lk[6], (EMBED,))
        bo = nrm(lk[7], (EMBED,))
        w1 = nrm(lk[8], (EMBED, FF)); bf1 = nrm(lk[9], (FF,))
        w2 = nrm(lk[10], (FF, EMBED)); bf2 = nrm(lk[11], (EMBED,))

        wb = i * LAYER_W_ROWS
        vb = i * LAYER_V_ROWS
        wslab = wslab.at[wb + WQ_OFF:wb + WQ_OFF + EMBED, 0:EMBED].set(wq)
        wslab = wslab.at[wb + WK_OFF:wb + WK_OFF + EMBED, 0:EMBED].set(wk)
        wslab = wslab.at[wb + WV_OFF:wb + WV_OFF + EMBED, 0:EMBED].set(wv)
        wslab = wslab.at[wb + WO_OFF:wb + WO_OFF + EMBED, 0:EMBED].set(wo)
        wslab = wslab.at[wb + W1_OFF:wb + W1_OFF + EMBED, 0:FF].set(w1)
        wslab = wslab.at[wb + W2_OFF:wb + W2_OFF + FF, 0:EMBED].set(w2)

        vslab = vslab.at[vb + R_BQ, 0:EMBED].set(bq)
        vslab = vslab.at[vb + R_BK, 0:EMBED].set(bk)
        vslab = vslab.at[vb + R_BV, 0:EMBED].set(bv)
        vslab = vslab.at[vb + R_BO, 0:EMBED].set(bo)
        vslab = vslab.at[vb + R_G1, 0:EMBED].set(ones_e)   # LN gammas = 1
        vslab = vslab.at[vb + R_G2, 0:EMBED].set(ones_e)   # (betas stay 0)
        vslab = vslab.at[vb + R_BF2, 0:EMBED].set(bf2)
        vslab = vslab.at[vb + R_BF1, 0:FF].set(bf1)

    hk = jax.random.split(keys[1], 4)
    hw1 = nrm(hk[0], (EMBED, FF)); hb1 = nrm(hk[1], (FF,))
    hw2 = nrm(hk[2], (FF, 1));     hb2 = nrm(hk[3], (1,))

    wslab = wslab.at[HW1_OFF:HW1_OFF + EMBED, 0:FF].set(hw1)
    vslab = vslab.at[RV_GN, 0:EMBED].set(ones_e)           # final LN gamma (beta = 0)
    vslab = vslab.at[RV_HB1, 0:FF].set(hb1)
    vslab = vslab.at[RV_HW2, 0:FF].set(hw2[:, 0])          # Linear(FF,1) weight as a row
    vslab = vslab.at[RV_HB2, 0].set(hb2[0])
    vslab = vslab.at[EMB_OFF:EMB_OFF + VOCAB, 0:EMBED].set(emb)

    return {'wslab': wslab.astype(jnp.bfloat16),           # (480, 64) bf16
            'vslab': vslab}                                 # (136, 64) f32


if __name__ == "__main__":
    key = jax.random.PRNGKey(0)
    k_ids, k_params = jax.random.split(key)

    input_ids = jax.random.randint(k_ids, (BATCH, SEQ), 0, VOCAB, dtype=jnp.int32)
    attention_mask = jnp.ones((BATCH, SEQ), dtype=jnp.int32)
    params = init_params(k_params)

    out = jax.block_until_ready(logp_forward(input_ids, attention_mask, params))
    assert out.shape == (BATCH, 1), out.shape

    ref = logp_forward_ref(input_ids, attention_mask, params)
    assert jnp.allclose(out, ref, atol=1e-2, rtol=1e-2), (out, ref)

    print("KERNEL_OK")
</pallas_src>

<mosaic_0001>
module attributes {stable_mosaic.version = 11 : i64} {
  func.func @fused_kernel(%arg0: memref<2x8xi32, #tpu.memory_space<vmem>>, %arg1: memref<2x8xi32, #tpu.memory_space<vmem>>, %arg2: memref<480x64xbf16, #tpu.memory_space<vmem>>, %arg3: memref<136x64xf32, #tpu.memory_space<vmem>>, %arg4: memref<2x1xf32, #tpu.memory_space<vmem>>) attributes {dimension_semantics = [], scalar_prefetch = 0 : i64, scratch_operands = 0 : i64, tpu.core_type = #tpu.core_type<tc>} {
    %c32 = arith.constant 32 : index
    %c0 = arith.constant 0 : index
    %0 = vector.load %arg3[%c32, %c0] : memref<136x64xf32, #tpu.memory_space<vmem>>, vector<100x32xf32>
    %c0_0 = arith.constant 0 : index
    %c0_1 = arith.constant 0 : index
    %1 = vector.load %arg0[%c0_0, %c0_1] : memref<2x8xi32, #tpu.memory_space<vmem>>, vector<2x8xi32>
    %c0_2 = arith.constant 0 : index
    %c0_3 = arith.constant 0 : index
    %2 = vector.load %arg1[%c0_2, %c0_3] : memref<2x8xi32, #tpu.memory_space<vmem>>, vector<2x8xi32>
    %3 = arith.sitofp %2 : vector<2x8xi32> to vector<2x8xf32>
    %4 = tpu.iota {dimensions = array<i32: 2>} : vector<2x8x100xi32>
    %5 = vector.shape_cast %1 : vector<2x8xi32> to vector<2x8x1xi32>
    %6 = vector.broadcast %5 : vector<2x8x1xi32> to vector<2x8x100xi32>
    %7 = arith.cmpi eq, %4, %6 : vector<2x8x100xi32>
    %8 = arith.extui %7 : vector<2x8x100xi1> to vector<2x8x100xi32>
    %9 = arith.sitofp %8 : vector<2x8x100xi32> to vector<2x8x100xf32>
    %10 = vector.shape_cast %3 : vector<2x8xf32> to vector<2x8x1xf32>
    %11 = vector.broadcast %10 : vector<2x8x1xf32> to vector<2x8x100xf32>
    %12 = arith.mulf %9, %11 : vector<2x8x100xf32>
    %13 = vector.shape_cast %12 : vector<2x8x100xf32> to vector<16x100xf32>
    %cst = arith.constant dense<0.000000e+00> : vector<16x32xf32>
    %14 = tpu.matmul %13, %0, %cst {dimension_numbers = #tpu.dot_dimension_numbers<[1], [0], [0], [1], [0, 0, 1, 1], [], []>} : vector<16x100xf32>, vector<100x32xf32>, vector<16x32xf32> -> vector<16x32xf32>
    %15 = arith.truncf %14 : vector<16x32xf32> to vector<16x32xbf16>
    %c0_4 = arith.constant 0 : index
    %c0_5 = arith.constant 0 : index
    %16 = vector.load %arg2[%c0_4, %c0_5] : memref<480x64xbf16, #tpu.memory_space<vmem>>, vector<32x32xbf16>
    %cst_6 = arith.constant dense<0.000000e+00> : vector<16x32xf32>
    %17 = tpu.matmul %15, %16, %cst_6 {dimension_numbers = #tpu.dot_dimension_numbers<[1], [0], [0], [1], [0, 0, 1, 1], [], []>} : vector<16x32xbf16>, vector<32x32xbf16>, vector<16x32xf32> -> vector<16x32xf32>
    %c0_7 = arith.constant 0 : index
    %c0_8 = arith.constant 0 : index
    %18 = vector.load %arg3[%c0_7, %c0_8] : memref<136x64xf32, #tpu.memory_space<vmem>>, vector<1x32xf32>
    %19 = vector.broadcast %18 : vector<1x32xf32> to vector<16x32xf32>
    %20 = arith.addf %17, %19 : vector<16x32xf32>
    %cst_9 = arith.constant 0.353553385 : f32
    %21 = vector.broadcast %cst_9 : f32 to vector<16x32xf32>
    %22 = arith.mulf %20, %21 : vector<16x32xf32>
    %c32_10 = arith.constant 32 : index
    %c0_11 = arith.constant 0 : index
    %23 = vector.load %arg2[%c32_10, %c0_11] : memref<480x64xbf16, #tpu.memory_space<vmem>>, vector<32x32xbf16>
    %cst_12 = arith.constant dense<0.000000e+00> : vector<16x32xf32>
    %24 = tpu.matmul %15, %23, %cst_12 {dimension_numbers = #tpu.dot_dimension_numbers<[1], [0], [0], [1], [0, 0, 1, 1], [], []>} : vector<16x32xbf16>, vector<32x32xbf16>, vector<16x32xf32> -> vector<16x32xf32>
    %c1 = arith.constant 1 : index
    %c0_13 = arith.constant 0 : index
    %25 = vector.load %arg3[%c1, %c0_13] : memref<136x64xf32, #tpu.memory_space<vmem>>, vector<1x32xf32>
    %26 = vector.broadcast %25 : vector<1x32xf32> to vector<16x32xf32>
    %27 = arith.addf %24, %26 : vector<16x32xf32>
    %c64 = arith.constant 64 : index
    %c0_14 = arith.constant 0 : index
    %28 = vector.load %arg2[%c64, %c0_14] : memref<480x64xbf16, #tpu.memory_space<vmem>>, vector<32x32xbf16>
    %cst_15 = arith.constant dense<0.000000e+00> : vector<16x32xf32>
    %29 = tpu.matmul %15, %28, %cst_15 {dimension_numbers = #tpu.dot_dimension_numbers<[1], [0], [0], [1], [0, 0, 1, 1], [], []>} : vector<16x32xbf16>, vector<32x32xbf16>, vector<16x32xf32> -> vector<16x32xf32>
    %c2 = arith.constant 2 : index
    %c0_16 = arith.constant 0 : index
    %30 = vector.load %arg3[%c2, %c0_16] : memref<136x64xf32, #tpu.memory_space<vmem>>, vector<1x32xf32>
    %31 = vector.broadcast %30 : vector<1x32xf32> to vector<16x32xf32>
    %32 = arith.addf %29, %31 : vector<16x32xf32>
    %33 = vector.shape_cast %22 : vector<16x32xf32> to vector<2x8x32xf32>
    %34 = vector.shape_cast %27 : vector<16x32xf32> to vector<2x8x32xf32>
    %35 = vector.shape_cast %32 : vector<16x32xf32> to vector<2x8x32xf32>
    %36 = vector.extract_strided_slice %33 {offsets = [0, 0, 0], sizes = [2, 8, 8], strides = [1, 1, 1]} : vector<2x8x32xf32> to vector<2x8x8xf32>
    %37 = vector.extract_strided_slice %34 {offsets = [0, 0, 0], sizes = [2, 8, 8], strides = [1, 1, 1]} : vector<2x8x32xf32> to vector<2x8x8xf32>
    "tpu.trace_start"() <{level = 10 : i32, message = "bqd,bkd->bqk"}> : () -> ()
    %cst_17 = arith.constant dense<0.000000e+00> : vector<2x8x8xf32>
    %38 = tpu.matmul %36, %37, %cst_17 {dimension_numbers = #tpu.dot_dimension_numbers<[2], [2], [1], [1], [0, 0, 0, 1, 1, 1], [0], [0]>} : vector<2x8x8xf32>, vector<2x8x8xf32>, vector<2x8x8xf32> -> vector<2x8x8xf32>
    "tpu.trace_stop"() : () -> ()
    %cst_18 = arith.constant dense<0xFF800000> : vector<2x8xf32>
    %39 = vector.multi_reduction <maximumf>, %38, %cst_18 [2] : vector<2x8x8xf32> to vector<2x8xf32>
    %40 = vector.shape_cast %39 : vector<2x8xf32> to vector<2x8x1xf32>
    %41 = vector.broadcast %40 : vector<2x8x1xf32> to vector<2x8x8xf32>
    %42 = arith.subf %38, %41 : vector<2x8x8xf32>
    %43 = math.exp %42 : vector<2x8x8xf32>
    %cst_19 = arith.constant dense<0.000000e+00> : vector<2x8xf32>
    %44 = vector.multi_reduction <add>, %43, %cst_19 [2] : vector<2x8x8xf32> to vector<2x8xf32>
    %45 = vector.shape_cast %44 : vector<2x8xf32> to vector<2x8x1xf32>
    %46 = tpu.reciprocal %45 {approx = true} : vector<2x8x1xf32> -> vector<2x8x1xf32>
    %47 = vector.broadcast %46 : vector<2x8x1xf32> to vector<2x8x8xf32>
    %48 = arith.mulf %43, %47 : vector<2x8x8xf32>
    %49 = vector.extract_strided_slice %35 {offsets = [0, 0, 0], sizes = [2, 8, 8], strides = [1, 1, 1]} : vector<2x8x32xf32> to vector<2x8x8xf32>
    "tpu.trace_start"() <{level = 10 : i32, message = "bqk,bkd->bqd"}> : () -> ()
    %cst_20 = arith.constant dense<0.000000e+00> : vector<2x8x8xf32>
    %50 = tpu.matmul %48, %49, %cst_20 {dimension_numbers = #tpu.dot_dimension_numbers<[2], [1], [1], [2], [0, 0, 0, 1, 1, 2], [0], [0]>} : vector<2x8x8xf32>, vector<2x8x8xf32>, vector<2x8x8xf32> -> vector<2x8x8xf32>
    "tpu.trace_stop"() : () -> ()
    %51 = vector.extract_strided_slice %33 {offsets = [0, 0, 8], sizes = [2, 8, 8], strides = [1, 1, 1]} : vector<2x8x32xf32> to vector<2x8x8xf32>
    %52 = vector.extract_strided_slice %34 {offsets = [0, 0, 8], sizes = [2, 8, 8], strides = [1, 1, 1]} : vector<2x8x32xf32> to vector<2x8x8xf32>
    "tpu.trace_start"() <{level = 10 : i32, message = "bqd,bkd->bqk"}> : () -> ()
    %cst_21 = arith.constant dense<0.000000e+00> : vector<2x8x8xf32>
    %53 = tpu.matmul %51, %52, %cst_21 {dimension_numbers = #tpu.dot_dimension_numbers<[2], [2], [1], [1], [0, 0, 0, 1, 1, 1], [0], [0]>} : vector<2x8x8xf32>, vector<2x8x8xf32>, vector<2x8x8xf32> -> vector<2x8x8xf32>
    "tpu.trace_stop"() : () -> ()
    %cst_22 = arith.constant dense<0xFF800000> : vector<2x8xf32>
    %54 = vector.multi_reduction <maximumf>, %53, %cst_22 [2] : vector<2x8x8xf32> to vector<2x8xf32>
    %55 = vector.shape_cast %54 : vector<2x8xf32> to vector<2x8x1xf32>
    %56 = vector.broadcast %55 : vector<2x8x1xf32> to vector<2x8x8xf32>
    %57 = arith.subf %53, %56 : vector<2x8x8xf32>
    %58 = math.exp %57 : vector<2x8x8xf32>
    %cst_23 = arith.constant dense<0.000000e+00> : vector<2x8xf32>
    %59 = vector.multi_reduction <add>, %58, %cst_23 [2] : vector<2x8x8xf32> to vector<2x8xf32>
    %60 = vector.shape_cast %59 : vector<2x8xf32> to vector<2x8x1xf32>
    %61 = tpu.reciprocal %60 {approx = true} : vector<2x8x1xf32> -> vector<2x8x1xf32>
    %62 = vector.broadcast %61 : vector<2x8x1xf32> to vector<2x8x8xf32>
    %63 = arith.mulf %58, %62 : vector<2x8x8xf32>
    %64 = vector.extract_strided_slice %35 {offsets = [0, 0, 8], sizes = [2, 8, 8], strides = [1, 1, 1]} : vector<2x8x32xf32> to vector<2x8x8xf32>
    "tpu.trace_start"() <{level = 10 : i32, message = "bqk,bkd->bqd"}> : () -> ()
    %cst_24 = arith.constant dense<0.000000e+00> : vector<2x8x8xf32>
    %65 = tpu.matmul %63, %64, %cst_24 {dimension_numbers = #tpu.dot_dimension_numbers<[2], [1], [1], [2], [0, 0, 0, 1, 1, 2], [0], [0]>} : vector<2x8x8xf32>, vector<2x8x8xf32>, vector<2x8x8xf32> -> vector<2x8x8xf32>
    "tpu.trace_stop"() : () -> ()
    %66 = vector.extract_strided_slice %33 {offsets = [0, 0, 16], sizes = [2, 8, 8], strides = [1, 1, 1]} : vector<2x8x32xf32> to vector<2x8x8xf32>
    %67 = vector.extract_strided_slice %34 {offsets = [0, 0, 16], sizes = [2, 8, 8], strides = [1, 1, 1]} : vector<2x8x32xf32> to vector<2x8x8xf32>
    "tpu.trace_start"() <{level = 10 : i32, message = "bqd,bkd->bqk"}> : () -> ()
    %cst_25 = arith.constant dense<0.000000e+00> : vector<2x8x8xf32>
    %68 = tpu.matmul %66, %67, %cst_25 {dimension_numbers = #tpu.dot_dimension_numbers<[2], [2], [1], [1], [0, 0, 0, 1, 1, 1], [0], [0]>} : vector<2x8x8xf32>, vector<2x8x8xf32>, vector<2x8x8xf32> -> vector<2x8x8xf32>
    "tpu.trace_stop"() : () -> ()
    %cst_26 = arith.constant dense<0xFF800000> : vector<2x8xf32>
    %69 = vector.multi_reduction <maximumf>, %68, %cst_26 [2] : vector<2x8x8xf32> to vector<2x8xf32>
    %70 = vector.shape_cast %69 : vector<2x8xf32> to vector<2x8x1xf32>
    %71 = vector.broadcast %70 : vector<2x8x1xf32> to vector<2x8x8xf32>
    %72 = arith.subf %68, %71 : vector<2x8x8xf32>
    %73 = math.exp %72 : vector<2x8x8xf32>
    %cst_27 = arith.constant dense<0.000000e+00> : vector<2x8xf32>
    %74 = vector.multi_reduction <add>, %73, %cst_27 [2] : vector<2x8x8xf32> to vector<2x8xf32>
    %75 = vector.shape_cast %74 : vector<2x8xf32> to vector<2x8x1xf32>
    %76 = tpu.reciprocal %75 {approx = true} : vector<2x8x1xf32> -> vector<2x8x1xf32>
    %77 = vector.broadcast %76 : vector<2x8x1xf32> to vector<2x8x8xf32>
    %78 = arith.mulf %73, %77 : vector<2x8x8xf32>
    %79 = vector.extract_strided_slice %35 {offsets = [0, 0, 16], sizes = [2, 8, 8], strides = [1, 1, 1]} : vector<2x8x32xf32> to vector<2x8x8xf32>
    "tpu.trace_start"() <{level = 10 : i32, message = "bqk,bkd->bqd"}> : () -> ()
    %cst_28 = arith.constant dense<0.000000e+00> : vector<2x8x8xf32>
    %80 = tpu.matmul %78, %79, %cst_28 {dimension_numbers = #tpu.dot_dimension_numbers<[2], [1], [1], [2], [0, 0, 0, 1, 1, 2], [0], [0]>} : vector<2x8x8xf32>, vector<2x8x8xf32>, vector<2x8x8xf32> -> vector<2x8x8xf32>
    "tpu.trace_stop"() : () -> ()
    %81 = vector.extract_strided_slice %33 {offsets = [0, 0, 24], sizes = [2, 8, 8], strides = [1, 1, 1]} : vector<2x8x32xf32> to vector<2x8x8xf32>
    %82 = vector.extract_strided_slice %34 {offsets = [0, 0, 24], sizes = [2, 8, 8], strides = [1, 1, 1]} : vector<2x8x32xf32> to vector<2x8x8xf32>
    "tpu.trace_start"() <{level = 10 : i32, message = "bqd,bkd->bqk"}> : () -> ()
    %cst_29 = arith.constant dense<0.000000e+00> : vector<2x8x8xf32>
    %83 = tpu.matmul %81, %82, %cst_29 {dimension_numbers = #tpu.dot_dimension_numbers<[2], [2], [1], [1], [0, 0, 0, 1, 1, 1], [0], [0]>} : vector<2x8x8xf32>, vector<2x8x8xf32>, vector<2x8x8xf32> -> vector<2x8x8xf32>
    "tpu.trace_stop"() : () -> ()
    %cst_30 = arith.constant dense<0xFF800000> : vector<2x8xf32>
    %84 = vector.multi_reduction <maximumf>, %83, %cst_30 [2] : vector<2x8x8xf32> to vector<2x8xf32>
    %85 = vector.shape_cast %84 : vector<2x8xf32> to vector<2x8x1xf32>
    %86 = vector.broadcast %85 : vector<2x8x1xf32> to vector<2x8x8xf32>
    %87 = arith.subf %83, %86 : vector<2x8x8xf32>
    %88 = math.exp %87 : vector<2x8x8xf32>
    %cst_31 = arith.constant dense<0.000000e+00> : vector<2x8xf32>
    %89 = vector.multi_reduction <add>, %88, %cst_31 [2] : vector<2x8x8xf32> to vector<2x8xf32>
    %90 = vector.shape_cast %89 : vector<2x8xf32> to vector<2x8x1xf32>
    %91 = tpu.reciprocal %90 {approx = true} : vector<2x8x1xf32> -> vector<2x8x1xf32>
    %92 = vector.broadcast %91 : vector<2x8x1xf32> to vector<2x8x8xf32>
    %93 = arith.mulf %88, %92 : vector<2x8x8xf32>
    %94 = vector.extract_strided_slice %35 {offsets = [0, 0, 24], sizes = [2, 8, 8], strides = [1, 1, 1]} : vector<2x8x32xf32> to vector<2x8x8xf32>
    "tpu.trace_start"() <{level = 10 : i32, message = "bqk,bkd->bqd"}> : () -> ()
    %cst_32 = arith.constant dense<0.000000e+00> : vector<2x8x8xf32>
    %95 = tpu.matmul %93, %94, %cst_32 {dimension_numbers = #tpu.dot_dimension_numbers<[2], [1], [1], [2], [0, 0, 0, 1, 1, 2], [0], [0]>} : vector<2x8x8xf32>, vector<2x8x8xf32>, vector<2x8x8xf32> -> vector<2x8x8xf32>
    "tpu.trace_stop"() : () -> ()
    %96 = tpu.concatenate %50, %65, %80, %95 in 2 : vector<2x8x8xf32>, vector<2x8x8xf32>, vector<2x8x8xf32>, vector<2x8x8xf32> -> vector<2x8x32xf32>
    %97 = vector.shape_cast %96 : vector<2x8x32xf32> to vector<16x32xf32>
    %98 = arith.truncf %97 : vector<16x32xf32> to vector<16x32xbf16>
    %c96 = arith.constant 96 : index
    %c0_33 = arith.constant 0 : index
    %99 = vector.load %arg2[%c96, %c0_33] : memref<480x64xbf16, #tpu.memory_space<vmem>>, vector<32x32xbf16>
    %cst_34 = arith.constant dense<0.000000e+00> : vector<16x32xf32>
    %100 = tpu.matmul %98, %99, %cst_34 {dimension_numbers = #tpu.dot_dimension_numbers<[1], [0], [0], [1], [0, 0, 1, 1], [], []>} : vector<16x32xbf16>, vector<32x32xbf16>, vector<16x32xf32> -> vector<16x32xf32>
    %c3 = arith.constant 3 : index
    %c0_35 = arith.constant 0 : index
    %101 = vector.load %arg3[%c3, %c0_35] : memref<136x64xf32, #tpu.memory_space<vmem>>, vector<1x32xf32>
    %102 = vector.broadcast %101 : vector<1x32xf32> to vector<16x32xf32>
    %103 = arith.addf %100, %102 : vector<16x32xf32>
    %104 = arith.addf %14, %103 : vector<16x32xf32>
    %c4 = arith.constant 4 : index
    %c0_36 = arith.constant 0 : index
    %105 = vector.load %arg3[%c4, %c0_36] : memref<136x64xf32, #tpu.memory_space<vmem>>, vector<1x32xf32>
    %c5 = arith.constant 5 : index
    %c0_37 = arith.constant 0 : index
    %106 = vector.load %arg3[%c5, %c0_37] : memref<136x64xf32, #tpu.memory_space<vmem>>, vector<1x32xf32>
    %cst_38 = arith.constant dense<0.000000e+00> : vector<16xf32>
    %107 = vector.multi_reduction <add>, %104, %cst_38 [1] : vector<16x32xf32> to vector<16xf32>
    %108 = vector.shape_cast %107 : vector<16xf32> to vector<16x1xf32>
    %cst_39 = arith.constant 3.200000e+01 : f32
    %109 = vector.broadcast %cst_39 : f32 to vector<16x1xf32>
    %110 = arith.divf %108, %109 : vector<16x1xf32>
    %111 = vector.broadcast %110 : vector<16x1xf32> to vector<16x32xf32>
    %112 = arith.subf %104, %111 : vector<16x32xf32>
    %113 = arith.mulf %112, %112 : vector<16x32xf32>
    %cst_40 = arith.constant dense<0.000000e+00> : vector<16xf32>
    %114 = vector.multi_reduction <add>, %113, %cst_40 [1] : vector<16x32xf32> to vector<16xf32>
    %115 = vector.shape_cast %114 : vector<16xf32> to vector<16x1xf32>
    %cst_41 = arith.constant 3.200000e+01 : f32
    %116 = vector.broadcast %cst_41 : f32 to vector<16x1xf32>
    %117 = arith.divf %115, %116 : vector<16x1xf32>
    %118 = vector.broadcast %110 : vector<16x1xf32> to vector<16x32xf32>
    %119 = arith.subf %104, %118 : vector<16x32xf32>
    %cst_42 = arith.constant 9.99999974E-6 : f32
    %120 = vector.broadcast %cst_42 : f32 to vector<16x1xf32>
    %121 = arith.addf %117, %120 : vector<16x1xf32>
    %122 = math.rsqrt %121 : vector<16x1xf32>
    %123 = vector.broadcast %122 : vector<16x1xf32> to vector<16x32xf32>
    %124 = arith.mulf %119, %123 : vector<16x32xf32>
    %125 = vector.broadcast %105 : vector<1x32xf32> to vector<16x32xf32>
    %126 = arith.mulf %124, %125 : vector<16x32xf32>
    %127 = vector.broadcast %106 : vector<1x32xf32> to vector<16x32xf32>
    %128 = arith.addf %126, %127 : vector<16x32xf32>
    %129 = arith.truncf %128 : vector<16x32xf32> to vector<16x32xbf16>
    %c128 = arith.constant 128 : index
    %c0_43 = arith.constant 0 : index
    %130 = vector.load %arg2[%c128, %c0_43] : memref<480x64xbf16, #tpu.memory_space<vmem>>, vector<32x64xbf16>
    %cst_44 = arith.constant dense<0.000000e+00> : vector<16x64xf32>
    %131 = tpu.matmul %129, %130, %cst_44 {dimension_numbers = #tpu.dot_dimension_numbers<[1], [0], [0], [1], [0, 0, 1, 1], [], []>} : vector<16x32xbf16>, vector<32x64xbf16>, vector<16x64xf32> -> vector<16x64xf32>
    %c9 = arith.constant 9 : index
    %c0_45 = arith.constant 0 : index
    %132 = vector.load %arg3[%c9, %c0_45] : memref<136x64xf32, #tpu.memory_space<vmem>>, vector<1x64xf32>
    %133 = vector.broadcast %132 : vector<1x64xf32> to vector<16x64xf32>
    %134 = arith.addf %131, %133 : vector<16x64xf32>
    %cst_46 = arith.constant 0.000000e+00 : f32
    %135 = vector.broadcast %cst_46 : f32 to vector<16x64xf32>
    %136 = arith.maximumf %134, %135 : vector<16x64xf32>
    %137 = arith.truncf %136 : vector<16x64xf32> to vector<16x64xbf16>
    %c160 = arith.constant 160 : index
    %c0_47 = arith.constant 0 : index
    %138 = vector.load %arg2[%c160, %c0_47] : memref<480x64xbf16, #tpu.memory_space<vmem>>, vector<64x32xbf16>
    %cst_48 = arith.constant dense<0.000000e+00> : vector<16x32xf32>
    %139 = tpu.matmul %137, %138, %cst_48 {dimension_numbers = #tpu.dot_dimension_numbers<[1], [0], [0], [1], [0, 0, 1, 1], [], []>} : vector<16x64xbf16>, vector<64x32xbf16>, vector<16x32xf32> -> vector<16x32xf32>
    %c8 = arith.constant 8 : index
    %c0_49 = arith.constant 0 : index
    %140 = vector.load %arg3[%c8, %c0_49] : memref<136x64xf32, #tpu.memory_space<vmem>>, vector<1x32xf32>
    %141 = vector.broadcast %140 : vector<1x32xf32> to vector<16x32xf32>
    %142 = arith.addf %139, %141 : vector<16x32xf32>
    %143 = arith.addf %128, %142 : vector<16x32xf32>
    %c6 = arith.constant 6 : index
    %c0_50 = arith.constant 0 : index
    %144 = vector.load %arg3[%c6, %c0_50] : memref<136x64xf32, #tpu.memory_space<vmem>>, vector<1x32xf32>
    %c7 = arith.constant 7 : index
    %c0_51 = arith.constant 0 : index
    %145 = vector.load %arg3[%c7, %c0_51] : memref<136x64xf32, #tpu.memory_space<vmem>>, vector<1x32xf32>
    %cst_52 = arith.constant dense<0.000000e+00> : vector<16xf32>
    %146 = vector.multi_reduction <add>, %143, %cst_52 [1] : vector<16x32xf32> to vector<16xf32>
    %147 = vector.shape_cast %146 : vector<16xf32> to vector<16x1xf32>
    %cst_53 = arith.constant 3.200000e+01 : f32
    %148 = vector.broadcast %cst_53 : f32 to vector<16x1xf32>
    %149 = arith.divf %147, %148 : vector<16x1xf32>
    %150 = vector.broadcast %149 : vector<16x1xf32> to vector<16x32xf32>
    %151 = arith.subf %143, %150 : vector<16x32xf32>
    %152 = arith.mulf %151, %151 : vector<16x32xf32>
    %cst_54 = arith.constant dense<0.000000e+00> : vector<16xf32>
    %153 = vector.multi_reduction <add>, %152, %cst_54 [1] : vector<16x32xf32> to vector<16xf32>
    %154 = vector.shape_cast %153 : vector<16xf32> to vector<16x1xf32>
    %cst_55 = arith.constant 3.200000e+01 : f32
    %155 = vector.broadcast %cst_55 : f32 to vector<16x1xf32>
    %156 = arith.divf %154, %155 : vector<16x1xf32>
    %157 = vector.broadcast %149 : vector<16x1xf32> to vector<16x32xf32>
    %158 = arith.subf %143, %157 : vector<16x32xf32>
    %cst_56 = arith.constant 9.99999974E-6 : f32
    %159 = vector.broadcast %cst_56 : f32 to vector<16x1xf32>
    %160 = arith.addf %156, %159 : vector<16x1xf32>
    %161 = math.rsqrt %160 : vector<16x1xf32>
    %162 = vector.broadcast %161 : vector<16x1xf32> to vector<16x32xf32>
    %163 = arith.mulf %158, %162 : vector<16x32xf32>
    %164 = vector.broadcast %144 : vector<1x32xf32> to vector<16x32xf32>
    %165 = arith.mulf %163, %164 : vector<16x32xf32>
    %166 = vector.broadcast %145 : vector<1x32xf32> to vector<16x32xf32>
    %167 = arith.addf %165, %166 : vector<16x32xf32>
    %168 = arith.truncf %167 : vector<16x32xf32> to vector<16x32xbf16>
    %c224 = arith.constant 224 : index
    %c0_57 = arith.constant 0 : index
    %169 = vector.load %arg2[%c224, %c0_57] : memref<480x64xbf16, #tpu.memory_space<vmem>>, vector<32x32xbf16>
    %cst_58 = arith.constant dense<0.000000e+00> : vector<16x32xf32>
    %170 = tpu.matmul %168, %169, %cst_58 {dimension_numbers = #tpu.dot_dimension_numbers<[1], [0], [0], [1], [0, 0, 1, 1], [], []>} : vector<16x32xbf16>, vector<32x32xbf16>, vector<16x32xf32> -> vector<16x32xf32>
    %c10 = arith.constant 10 : index
    %c0_59 = arith.constant 0 : index
    %171 = vector.load %arg3[%c10, %c0_59] : memref<136x64xf32, #tpu.memory_space<vmem>>, vector<1x32xf32>
    %172 = vector.broadcast %171 : vector<1x32xf32> to vector<16x32xf32>
    %173 = arith.addf %170, %172 : vector<16x32xf32>
    %cst_60 = arith.constant 0.353553385 : f32
    %174 = vector.broadcast %cst_60 : f32 to vector<16x32xf32>
    %175 = arith.mulf %173, %174 : vector<16x32xf32>
    %c256 = arith.constant 256 : index
    %c0_61 = arith.constant 0 : index
    %176 = vector.load %arg2[%c256, %c0_61] : memref<480x64xbf16, #tpu.memory_space<vmem>>, vector<32x32xbf16>
    %cst_62 = arith.constant dense<0.000000e+00> : vector<16x32xf32>
    %177 = tpu.matmul %168, %176, %cst_62 {dimension_numbers = #tpu.dot_dimension_numbers<[1], [0], [0], [1], [0, 0, 1, 1], [], []>} : vector<16x32xbf16>, vector<32x32xbf16>, vector<16x32xf32> -> vector<16x32xf32>
    %c11 = arith.constant 11 : index
    %c0_63 = arith.constant 0 : index
    %178 = vector.load %arg3[%c11, %c0_63] : memref<136x64xf32, #tpu.memory_space<vmem>>, vector<1x32xf32>
    %179 = vector.broadcast %178 : vector<1x32xf32> to vector<16x32xf32>
    %180 = arith.addf %177, %179 : vector<16x32xf32>
    %c288 = arith.constant 288 : index
    %c0_64 = arith.constant 0 : index
    %181 = vector.load %arg2[%c288, %c0_64] : memref<480x64xbf16, #tpu.memory_space<vmem>>, vector<32x32xbf16>
    %cst_65 = arith.constant dense<0.000000e+00> : vector<16x32xf32>
    %182 = tpu.matmul %168, %181, %cst_65 {dimension_numbers = #tpu.dot_dimension_numbers<[1], [0], [0], [1], [0, 0, 1, 1], [], []>} : vector<16x32xbf16>, vector<32x32xbf16>, vector<16x32xf32> -> vector<16x32xf32>
    %c12 = arith.constant 12 : index
    %c0_66 = arith.constant 0 : index
    %183 = vector.load %arg3[%c12, %c0_66] : memref<136x64xf32, #tpu.memory_space<vmem>>, vector<1x32xf32>
    %184 = vector.broadcast %183 : vector<1x32xf32> to vector<16x32xf32>
    %185 = arith.addf %182, %184 : vector<16x32xf32>
    %186 = vector.shape_cast %175 : vector<16x32xf32> to vector<2x8x32xf32>
    %187 = vector.shape_cast %180 : vector<16x32xf32> to vector<2x8x32xf32>
    %188 = vector.shape_cast %185 : vector<16x32xf32> to vector<2x8x32xf32>
    %189 = vector.extract_strided_slice %186 {offsets = [0, 0, 0], sizes = [2, 8, 8], strides = [1, 1, 1]} : vector<2x8x32xf32> to vector<2x8x8xf32>
    %190 = vector.extract_strided_slice %187 {offsets = [0, 0, 0], sizes = [2, 8, 8], strides = [1, 1, 1]} : vector<2x8x32xf32> to vector<2x8x8xf32>
    "tpu.trace_start"() <{level = 10 : i32, message = "bqd,bkd->bqk"}> : () -> ()
    %cst_67 = arith.constant dense<0.000000e+00> : vector<2x8x8xf32>
    %191 = tpu.matmul %189, %190, %cst_67 {dimension_numbers = #tpu.dot_dimension_numbers<[2], [2], [1], [1], [0, 0, 0, 1, 1, 1], [0], [0]>} : vector<2x8x8xf32>, vector<2x8x8xf32>, vector<2x8x8xf32> -> vector<2x8x8xf32>
    "tpu.trace_stop"() : () -> ()
    %cst_68 = arith.constant dense<0xFF800000> : vector<2x8xf32>
    %192 = vector.multi_reduction <maximumf>, %191, %cst_68 [2] : vector<2x8x8xf32> to vector<2x8xf32>
    %193 = vector.shape_cast %192 : vector<2x8xf32> to vector<2x8x1xf32>
    %194 = vector.broadcast %193 : vector<2x8x1xf32> to vector<2x8x8xf32>
    %195 = arith.subf %191, %194 : vector<2x8x8xf32>
    %196 = math.exp %195 : vector<2x8x8xf32>
    %cst_69 = arith.constant dense<0.000000e+00> : vector<2x8xf32>
    %197 = vector.multi_reduction <add>, %196, %cst_69 [2] : vector<2x8x8xf32> to vector<2x8xf32>
    %198 = vector.shape_cast %197 : vector<2x8xf32> to vector<2x8x1xf32>
    %199 = tpu.reciprocal %198 {approx = true} : vector<2x8x1xf32> -> vector<2x8x1xf32>
    %200 = vector.broadcast %199 : vector<2x8x1xf32> to vector<2x8x8xf32>
    %201 = arith.mulf %196, %200 : vector<2x8x8xf32>
    %202 = vector.extract_strided_slice %188 {offsets = [0, 0, 0], sizes = [2, 8, 8], strides = [1, 1, 1]} : vector<2x8x32xf32> to vector<2x8x8xf32>
    "tpu.trace_start"() <{level = 10 : i32, message = "bqk,bkd->bqd"}> : () -> ()
    %cst_70 = arith.constant dense<0.000000e+00> : vector<2x8x8xf32>
    %203 = tpu.matmul %201, %202, %cst_70 {dimension_numbers = #tpu.dot_dimension_numbers<[2], [1], [1], [2], [0, 0, 0, 1, 1, 2], [0], [0]>} : vector<2x8x8xf32>, vector<2x8x8xf32>, vector<2x8x8xf32> -> vector<2x8x8xf32>
    "tpu.trace_stop"() : () -> ()
    %204 = vector.extract_strided_slice %186 {offsets = [0, 0, 8], sizes = [2, 8, 8], strides = [1, 1, 1]} : vector<2x8x32xf32> to vector<2x8x8xf32>
    %205 = vector.extract_strided_slice %187 {offsets = [0, 0, 8], sizes = [2, 8, 8], strides = [1, 1, 1]} : vector<2x8x32xf32> to vector<2x8x8xf32>
    "tpu.trace_start"() <{level = 10 : i32, message = "bqd,bkd->bqk"}> : () -> ()
    %cst_71 = arith.constant dense<0.000000e+00> : vector<2x8x8xf32>
    %206 = tpu.matmul %204, %205, %cst_71 {dimension_numbers = #tpu.dot_dimension_numbers<[2], [2], [1], [1], [0, 0, 0, 1, 1, 1], [0], [0]>} : vector<2x8x8xf32>, vector<2x8x8xf32>, vector<2x8x8xf32> -> vector<2x8x8xf32>
    "tpu.trace_stop"() : () -> ()
    %cst_72 = arith.constant dense<0xFF800000> : vector<2x8xf32>
    %207 = vector.multi_reduction <maximumf>, %206, %cst_72 [2] : vector<2x8x8xf32> to vector<2x8xf32>
    %208 = vector.shape_cast %207 : vector<2x8xf32> to vector<2x8x1xf32>
    %209 = vector.broadcast %208 : vector<2x8x1xf32> to vector<2x8x8xf32>
    %210 = arith.subf %206, %209 : vector<2x8x8xf32>
    %211 = math.exp %210 : vector<2x8x8xf32>
    %cst_73 = arith.constant dense<0.000000e+00> : vector<2x8xf32>
    %212 = vector.multi_reduction <add>, %211, %cst_73 [2] : vector<2x8x8xf32> to vector<2x8xf32>
    %213 = vector.shape_cast %212 : vector<2x8xf32> to vector<2x8x1xf32>
    %214 = tpu.reciprocal %213 {approx = true} : vector<2x8x1xf32> -> vector<2x8x1xf32>
    %215 = vector.broadcast %214 : vector<2x8x1xf32> to vector<2x8x8xf32>
    %216 = arith.mulf %211, %215 : vector<2x8x8xf32>
    %217 = vector.extract_strided_slice %188 {offsets = [0, 0, 8], sizes = [2, 8, 8], strides = [1, 1, 1]} : vector<2x8x32xf32> to vector<2x8x8xf32>
    "tpu.trace_start"() <{level = 10 : i32, message = "bqk,bkd->bqd"}> : () -> ()
    %cst_74 = arith.constant dense<0.000000e+00> : vector<2x8x8xf32>
    %218 = tpu.matmul %216, %217, %cst_74 {dimension_numbers = #tpu.dot_dimension_numbers<[2], [1], [1], [2], [0, 0, 0, 1, 1, 2], [0], [0]>} : vector<2x8x8xf32>, vector<2x8x8xf32>, vector<2x8x8xf32> -> vector<2x8x8xf32>
    "tpu.trace_stop"() : () -> ()
    %219 = vector.extract_strided_slice %186 {offsets = [0, 0, 16], sizes = [2, 8, 8], strides = [1, 1, 1]} : vector<2x8x32xf32> to vector<2x8x8xf32>
    %220 = vector.extract_strided_slice %187 {offsets = [0, 0, 16], sizes = [2, 8, 8], strides = [1, 1, 1]} : vector<2x8x32xf32> to vector<2x8x8xf32>
    "tpu.trace_start"() <{level = 10 : i32, message = "bqd,bkd->bqk"}> : () -> ()
    %cst_75 = arith.constant dense<0.000000e+00> : vector<2x8x8xf32>
    %221 = tpu.matmul %219, %220, %cst_75 {dimension_numbers = #tpu.dot_dimension_numbers<[2], [2], [1], [1], [0, 0, 0, 1, 1, 1], [0], [0]>} : vector<2x8x8xf32>, vector<2x8x8xf32>, vector<2x8x8xf32> -> vector<2x8x8xf32>
    "tpu.trace_stop"() : () -> ()
    %cst_76 = arith.constant dense<0xFF800000> : vector<2x8xf32>
    %222 = vector.multi_reduction <maximumf>, %221, %cst_76 [2] : vector<2x8x8xf32> to vector<2x8xf32>
    %223 = vector.shape_cast %222 : vector<2x8xf32> to vector<2x8x1xf32>
    %224 = vector.broadcast %223 : vector<2x8x1xf32> to vector<2x8x8xf32>
    %225 = arith.subf %221, %224 : vector<2x8x8xf32>
    %226 = math.exp %225 : vector<2x8x8xf32>
    %cst_77 = arith.constant dense<0.000000e+00> : vector<2x8xf32>
    %227 = vector.multi_reduction <add>, %226, %cst_77 [2] : vector<2x8x8xf32> to vector<2x8xf32>
    %228 = vector.shape_cast %227 : vector<2x8xf32> to vector<2x8x1xf32>
    %229 = tpu.reciprocal %228 {approx = true} : vector<2x8x1xf32> -> vector<2x8x1xf32>
    %230 = vector.broadcast %229 : vector<2x8x1xf32> to vector<2x8x8xf32>
    %231 = arith.mulf %226, %230 : vector<2x8x8xf32>
    %232 = vector.extract_strided_slice %188 {offsets = [0, 0, 16], sizes = [2, 8, 8], strides = [1, 1, 1]} : vector<2x8x32xf32> to vector<2x8x8xf32>
    "tpu.trace_start"() <{level = 10 : i32, message = "bqk,bkd->bqd"}> : () -> ()
    %cst_78 = arith.constant dense<0.000000e+00> : vector<2x8x8xf32>
    %233 = tpu.matmul %231, %232, %cst_78 {dimension_numbers = #tpu.dot_dimension_numbers<[2], [1], [1], [2], [0, 0, 0, 1, 1, 2], [0], [0]>} : vector<2x8x8xf32>, vector<2x8x8xf32>, vector<2x8x8xf32> -> vector<2x8x8xf32>
    "tpu.trace_stop"() : () -> ()
    %234 = vector.extract_strided_slice %186 {offsets = [0, 0, 24], sizes = [2, 8, 8], strides = [1, 1, 1]} : vector<2x8x32xf32> to vector<2x8x8xf32>
    %235 = vector.extract_strided_slice %187 {offsets = [0, 0, 24], sizes = [2, 8, 8], strides = [1, 1, 1]} : vector<2x8x32xf32> to vector<2x8x8xf32>
    "tpu.trace_start"() <{level = 10 : i32, message = "bqd,bkd->bqk"}> : () -> ()
    %cst_79 = arith.constant dense<0.000000e+00> : vector<2x8x8xf32>
    %236 = tpu.matmul %234, %235, %cst_79 {dimension_numbers = #tpu.dot_dimension_numbers<[2], [2], [1], [1], [0, 0, 0, 1, 1, 1], [0], [0]>} : vector<2x8x8xf32>, vector<2x8x8xf32>, vector<2x8x8xf32> -> vector<2x8x8xf32>
    "tpu.trace_stop"() : () -> ()
    %cst_80 = arith.constant dense<0xFF800000> : vector<2x8xf32>
    %237 = vector.multi_reduction <maximumf>, %236, %cst_80 [2] : vector<2x8x8xf32> to vector<2x8xf32>
    %238 = vector.shape_cast %237 : vector<2x8xf32> to vector<2x8x1xf32>
    %239 = vector.broadcast %238 : vector<2x8x1xf32> to vector<2x8x8xf32>
    %240 = arith.subf %236, %239 : vector<2x8x8xf32>
    %241 = math.exp %240 : vector<2x8x8xf32>
    %cst_81 = arith.constant dense<0.000000e+00> : vector<2x8xf32>
    %242 = vector.multi_reduction <add>, %241, %cst_81 [2] : vector<2x8x8xf32> to vector<2x8xf32>
    %243 = vector.shape_cast %242 : vector<2x8xf32> to vector<2x8x1xf32>
    %244 = tpu.reciprocal %243 {approx = true} : vector<2x8x1xf32> -> vector<2x8x1xf32>
    %245 = vector.broadcast %244 : vector<2x8x1xf32> to vector<2x8x8xf32>
    %246 = arith.mulf %241, %245 : vector<2x8x8xf32>
    %247 = vector.extract_strided_slice %188 {offsets = [0, 0, 24], sizes = [2, 8, 8], strides = [1, 1, 1]} : vector<2x8x32xf32> to vector<2x8x8xf32>
    "tpu.trace_start"() <{level = 10 : i32, message = "bqk,bkd->bqd"}> : () -> ()
    %cst_82 = arith.constant dense<0.000000e+00> : vector<2x8x8xf32>
    %248 = tpu.matmul %246, %247, %cst_82 {dimension_numbers = #tpu.dot_dimension_numbers<[2], [1], [1], [2], [0, 0, 0, 1, 1, 2], [0], [0]>} : vector<2x8x8xf32>, vector<2x8x8xf32>, vector<2x8x8xf32> -> vector<2x8x8xf32>
    "tpu.trace_stop"() : () -> ()
    %249 = tpu.concatenate %203, %218, %233, %248 in 2 : vector<2x8x8xf32>, vector<2x8x8xf32>, vector<2x8x8xf32>, vector<2x8x8xf32> -> vector<2x8x32xf32>
    %250 = vector.shape_cast %249 : vector<2x8x32xf32> to vector<16x32xf32>
    %251 = arith.truncf %250 : vector<16x32xf32> to vector<16x32xbf16>
    %c320 = arith.constant 320 : index
    %c0_83 = arith.constant 0 : index
    %252 = vector.load %arg2[%c320, %c0_83] : memref<480x64xbf16, #tpu.memory_space<vmem>>, vector<32x32xbf16>
    %cst_84 = arith.constant dense<0.000000e+00> : vector<16x32xf32>
    %253 = tpu.matmul %251, %252, %cst_84 {dimension_numbers = #tpu.dot_dimension_numbers<[1], [0], [0], [1], [0, 0, 1, 1], [], []>} : vector<16x32xbf16>, vector<32x32xbf16>, vector<16x32xf32> -> vector<16x32xf32>
    %c13 = arith.constant 13 : index
    %c0_85 = arith.constant 0 : index
    %254 = vector.load %arg3[%c13, %c0_85] : memref<136x64xf32, #tpu.memory_space<vmem>>, vector<1x32xf32>
    %255 = vector.broadcast %254 : vector<1x32xf32> to vector<16x32xf32>
    %256 = arith.addf %253, %255 : vector<16x32xf32>
    %257 = arith.addf %167, %256 : vector<16x32xf32>
    %c14 = arith.constant 14 : index
    %c0_86 = arith.constant 0 : index
    %258 = vector.load %arg3[%c14, %c0_86] : memref<136x64xf32, #tpu.memory_space<vmem>>, vector<1x32xf32>
    %c15 = arith.constant 15 : index
    %c0_87 = arith.constant 0 : index
    %259 = vector.load %arg3[%c15, %c0_87] : memref<136x64xf32, #tpu.memory_space<vmem>>, vector<1x32xf32>
    %cst_88 = arith.constant dense<0.000000e+00> : vector<16xf32>
    %260 = vector.multi_reduction <add>, %257, %cst_88 [1] : vector<16x32xf32> to vector<16xf32>
    %261 = vector.shape_cast %260 : vector<16xf32> to vector<16x1xf32>
    %cst_89 = arith.constant 3.200000e+01 : f32
    %262 = vector.broadcast %cst_89 : f32 to vector<16x1xf32>
    %263 = arith.divf %261, %262 : vector<16x1xf32>
    %264 = vector.broadcast %263 : vector<16x1xf32> to vector<16x32xf32>
    %265 = arith.subf %257, %264 : vector<16x32xf32>
    %266 = arith.mulf %265, %265 : vector<16x32xf32>
    %cst_90 = arith.constant dense<0.000000e+00> : vector<16xf32>
    %267 = vector.multi_reduction <add>, %266, %cst_90 [1] : vector<16x32xf32> to vector<16xf32>
    %268 = vector.shape_cast %267 : vector<16xf32> to vector<16x1xf32>
    %cst_91 = arith.constant 3.200000e+01 : f32
    %269 = vector.broadcast %cst_91 : f32 to vector<16x1xf32>
    %270 = arith.divf %268, %269 : vector<16x1xf32>
    %271 = vector.broadcast %263 : vector<16x1xf32> to vector<16x32xf32>
    %272 = arith.subf %257, %271 : vector<16x32xf32>
    %cst_92 = arith.constant 9.99999974E-6 : f32
    %273 = vector.broadcast %cst_92 : f32 to vector<16x1xf32>
    %274 = arith.addf %270, %273 : vector<16x1xf32>
    %275 = math.rsqrt %274 : vector<16x1xf32>
    %276 = vector.broadcast %275 : vector<16x1xf32> to vector<16x32xf32>
    %277 = arith.mulf %272, %276 : vector<16x32xf32>
    %278 = vector.broadcast %258 : vector<1x32xf32> to vector<16x32xf32>
    %279 = arith.mulf %277, %278 : vector<16x32xf32>
    %280 = vector.broadcast %259 : vector<1x32xf32> to vector<16x32xf32>
    %281 = arith.addf %279, %280 : vector<16x32xf32>
    %282 = arith.truncf %281 : vector<16x32xf32> to vector<16x32xbf16>
    %c352 = arith.constant 352 : index
    %c0_93 = arith.constant 0 : index
    %283 = vector.load %arg2[%c352, %c0_93] : memref<480x64xbf16, #tpu.memory_space<vmem>>, vector<32x64xbf16>
    %cst_94 = arith.constant dense<0.000000e+00> : vector<16x64xf32>
    %284 = tpu.matmul %282, %283, %cst_94 {dimension_numbers = #tpu.dot_dimension_numbers<[1], [0], [0], [1], [0, 0, 1, 1], [], []>} : vector<16x32xbf16>, vector<32x64xbf16>, vector<16x64xf32> -> vector<16x64xf32>
    %c19 = arith.constant 19 : index
    %c0_95 = arith.constant 0 : index
    %285 = vector.load %arg3[%c19, %c0_95] : memref<136x64xf32, #tpu.memory_space<vmem>>, vector<1x64xf32>
    %286 = vector.broadcast %285 : vector<1x64xf32> to vector<16x64xf32>
    %287 = arith.addf %284, %286 : vector<16x64xf32>
    %cst_96 = arith.constant 0.000000e+00 : f32
    %288 = vector.broadcast %cst_96 : f32 to vector<16x64xf32>
    %289 = arith.maximumf %287, %288 : vector<16x64xf32>
    %290 = arith.truncf %289 : vector<16x64xf32> to vector<16x64xbf16>
    %c384 = arith.constant 384 : index
    %c0_97 = arith.constant 0 : index
    %291 = vector.load %arg2[%c384, %c0_97] : memref<480x64xbf16, #tpu.memory_space<vmem>>, vector<64x32xbf16>
    %cst_98 = arith.constant dense<0.000000e+00> : vector<16x32xf32>
    %292 = tpu.matmul %290, %291, %cst_98 {dimension_numbers = #tpu.dot_dimension_numbers<[1], [0], [0], [1], [0, 0, 1, 1], [], []>} : vector<16x64xbf16>, vector<64x32xbf16>, vector<16x32xf32> -> vector<16x32xf32>
    %c18 = arith.constant 18 : index
    %c0_99 = arith.constant 0 : index
    %293 = vector.load %arg3[%c18, %c0_99] : memref<136x64xf32, #tpu.memory_space<vmem>>, vector<1x32xf32>
    %294 = vector.broadcast %293 : vector<1x32xf32> to vector<16x32xf32>
    %295 = arith.addf %292, %294 : vector<16x32xf32>
    %296 = arith.addf %281, %295 : vector<16x32xf32>
    %c16 = arith.constant 16 : index
    %c0_100 = arith.constant 0 : index
    %297 = vector.load %arg3[%c16, %c0_100] : memref<136x64xf32, #tpu.memory_space<vmem>>, vector<1x32xf32>
    %c17 = arith.constant 17 : index
    %c0_101 = arith.constant 0 : index
    %298 = vector.load %arg3[%c17, %c0_101] : memref<136x64xf32, #tpu.memory_space<vmem>>, vector<1x32xf32>
    %cst_102 = arith.constant dense<0.000000e+00> : vector<16xf32>
    %299 = vector.multi_reduction <add>, %296, %cst_102 [1] : vector<16x32xf32> to vector<16xf32>
    %300 = vector.shape_cast %299 : vector<16xf32> to vector<16x1xf32>
    %cst_103 = arith.constant 3.200000e+01 : f32
    %301 = vector.broadcast %cst_103 : f32 to vector<16x1xf32>
    %302 = arith.divf %300, %301 : vector<16x1xf32>
    %303 = vector.broadcast %302 : vector<16x1xf32> to vector<16x32xf32>
    %304 = arith.subf %296, %303 : vector<16x32xf32>
    %305 = arith.mulf %304, %304 : vector<16x32xf32>
    %cst_104 = arith.constant dense<0.000000e+00> : vector<16xf32>
    %306 = vector.multi_reduction <add>, %305, %cst_104 [1] : vector<16x32xf32> to vector<16xf32>
    %307 = vector.shape_cast %306 : vector<16xf32> to vector<16x1xf32>
    %cst_105 = arith.constant 3.200000e+01 : f32
    %308 = vector.broadcast %cst_105 : f32 to vector<16x1xf32>
    %309 = arith.divf %307, %308 : vector<16x1xf32>
    %310 = vector.broadcast %302 : vector<16x1xf32> to vector<16x32xf32>
    %311 = arith.subf %296, %310 : vector<16x32xf32>
    %cst_106 = arith.constant 9.99999974E-6 : f32
    %312 = vector.broadcast %cst_106 : f32 to vector<16x1xf32>
    %313 = arith.addf %309, %312 : vector<16x1xf32>
    %314 = math.rsqrt %313 : vector<16x1xf32>
    %315 = vector.broadcast %314 : vector<16x1xf32> to vector<16x32xf32>
    %316 = arith.mulf %311, %315 : vector<16x32xf32>
    %317 = vector.broadcast %297 : vector<1x32xf32> to vector<16x32xf32>
    %318 = arith.mulf %316, %317 : vector<16x32xf32>
    %319 = vector.broadcast %298 : vector<1x32xf32> to vector<16x32xf32>
    %320 = arith.addf %318, %319 : vector<16x32xf32>
    %c20 = arith.constant 20 : index
    %c0_107 = arith.constant 0 : index
    %321 = vector.load %arg3[%c20, %c0_107] : memref<136x64xf32, #tpu.memory_space<vmem>>, vector<1x32xf32>
    %c21 = arith.constant 21 : index
    %c0_108 = arith.constant 0 : index
    %322 = vector.load %arg3[%c21, %c0_108] : memref<136x64xf32, #tpu.memory_space<vmem>>, vector<1x32xf32>
    %cst_109 = arith.constant dense<0.000000e+00> : vector<16xf32>
    %323 = vector.multi_reduction <add>, %320, %cst_109 [1] : vector<16x32xf32> to vector<16xf32>
    %324 = vector.shape_cast %323 : vector<16xf32> to vector<16x1xf32>
    %cst_110 = arith.constant 3.200000e+01 : f32
    %325 = vector.broadcast %cst_110 : f32 to vector<16x1xf32>
    %326 = arith.divf %324, %325 : vector<16x1xf32>
    %327 = vector.broadcast %326 : vector<16x1xf32> to vector<16x32xf32>
    %328 = arith.subf %320, %327 : vector<16x32xf32>
    %329 = arith.mulf %328, %328 : vector<16x32xf32>
    %cst_111 = arith.constant dense<0.000000e+00> : vector<16xf32>
    %330 = vector.multi_reduction <add>, %329, %cst_111 [1] : vector<16x32xf32> to vector<16xf32>
    %331 = vector.shape_cast %330 : vector<16xf32> to vector<16x1xf32>
    %cst_112 = arith.constant 3.200000e+01 : f32
    %332 = vector.broadcast %cst_112 : f32 to vector<16x1xf32>
    %333 = arith.divf %331, %332 : vector<16x1xf32>
    %334 = vector.broadcast %326 : vector<16x1xf32> to vector<16x32xf32>
    %335 = arith.subf %320, %334 : vector<16x32xf32>
    %cst_113 = arith.constant 9.99999974E-6 : f32
    %336 = vector.broadcast %cst_113 : f32 to vector<16x1xf32>
    %337 = arith.addf %333, %336 : vector<16x1xf32>
    %338 = math.rsqrt %337 : vector<16x1xf32>
    %339 = vector.broadcast %338 : vector<16x1xf32> to vector<16x32xf32>
    %340 = arith.mulf %335, %339 : vector<16x32xf32>
    %341 = vector.broadcast %321 : vector<1x32xf32> to vector<16x32xf32>
    %342 = arith.mulf %340, %341 : vector<16x32xf32>
    %343 = vector.broadcast %322 : vector<1x32xf32> to vector<16x32xf32>
    %344 = arith.addf %342, %343 : vector<16x32xf32>
    %345 = vector.shape_cast %344 : vector<16x32xf32> to vector<2x8x32xf32>
    %cst_114 = arith.constant dense<0xFF800000> : vector<2x32xf32>
    %346 = vector.multi_reduction <maximumf>, %345, %cst_114 [1] : vector<2x8x32xf32> to vector<2x32xf32>
    %347 = arith.truncf %346 : vector<2x32xf32> to vector<2x32xbf16>
    %c448 = arith.constant 448 : index
    %c0_115 = arith.constant 0 : index
    %348 = vector.load %arg2[%c448, %c0_115] : memref<480x64xbf16, #tpu.memory_space<vmem>>, vector<32x64xbf16>
    %cst_116 = arith.constant dense<0.000000e+00> : vector<2x64xf32>
    %349 = tpu.matmul %347, %348, %cst_116 {dimension_numbers = #tpu.dot_dimension_numbers<[1], [0], [0], [1], [0, 0, 1, 1], [], []>} : vector<2x32xbf16>, vector<32x64xbf16>, vector<2x64xf32> -> vector<2x64xf32>
    %c22 = arith.constant 22 : index
    %c0_117 = arith.constant 0 : index
    %350 = vector.load %arg3[%c22, %c0_117] : memref<136x64xf32, #tpu.memory_space<vmem>>, vector<1x64xf32>
    %351 = vector.broadcast %350 : vector<1x64xf32> to vector<2x64xf32>
    %352 = arith.addf %349, %351 : vector<2x64xf32>
    %cst_118 = arith.constant 0.000000e+00 : f32
    %353 = vector.broadcast %cst_118 : f32 to vector<2x64xf32>
    %354 = arith.maximumf %352, %353 : vector<2x64xf32>
    %c23 = arith.constant 23 : index
    %c0_119 = arith.constant 0 : index
    %355 = vector.load %arg3[%c23, %c0_119] : memref<136x64xf32, #tpu.memory_space<vmem>>, vector<1x64xf32>
    %356 = vector.broadcast %355 : vector<1x64xf32> to vector<2x64xf32>
    %357 = arith.mulf %354, %356 : vector<2x64xf32>
    %cst_120 = arith.constant dense<0.000000e+00> : vector<2xf32>
    %358 = vector.multi_reduction <add>, %357, %cst_120 [1] : vector<2x64xf32> to vector<2xf32>
    %359 = vector.shape_cast %358 : vector<2xf32> to vector<2x1xf32>
    %c24 = arith.constant 24 : index
    %c0_121 = arith.constant 0 : index
    %360 = vector.load %arg3[%c24, %c0_121] : memref<136x64xf32, #tpu.memory_space<vmem>>, vector<1x1xf32>
    %361 = vector.broadcast %360 : vector<1x1xf32> to vector<2x1xf32>
    %362 = arith.addf %359, %361 : vector<2x1xf32>
    %c0_122 = arith.constant 0 : index
    %c0_123 = arith.constant 0 : index
    %363 = vector.load %arg4[%c0_122, %c0_123] : memref<2x1xf32, #tpu.memory_space<vmem>>, vector<2x1xf32>
    tpu.vector_store %arg4[%c0_122, %c0_123], %362 {strides = array<i32>} : memref<2x1xf32, #tpu.memory_space<vmem>>, vector<2x1xf32>,
    return
  }
}

</mosaic_0001>

<llo_original>
// kernel: logp_forward.1
$region0: #{logp_forward.1}
  #allocation0 [shape = 'u32[]', space=smem, size = 0x4, offset = 0x4, fixed_abs, tag = 'smem constant byte address 0x4 - core index']
  #allocation1 [shape = 'u32[144,128]{1,0:T(1,128)}', space=vmem, size = 0x12000, scoped, tag = 'internal scratch']
  %s0 = inlined_call_operand.vmem [shape: s32[2,8], index: 0, kind: input, shape index: {}]
  %s1 = inlined_call_operand.vmem [shape: s32[2,8], index: 1, kind: input, shape index: {}]
  %s2 = inlined_call_operand.vmem [shape: bf16[480,64], index: 2, kind: input, shape index: {}]
  %s3 = inlined_call_operand.vmem [shape: f32[136,64], index: 3, kind: input, shape index: {}]
  %s4 = inlined_call_operand.vmem [shape: f32[2,1], index: 4, kind: output, shape index: {}]
  %s5 = sld [smem:[#allocation0]]
  $region26: #{logp_forward.1} parent=0
    _
  %s7 = ssub.s32 1, %s5
  %s8 = scalar_select 0, %s7, %s5
  // Predicated region
  $region2: #{logp_forward.1} parent=0 // pred_check
    _
  $region3: #{logp_forward.1} parent=0 // pred_check_branch
    %10 = sbr.rel (0) target = $region5
  $region4: #{logp_forward.1} parent=0 // pred_region
    _
  $region5: #{logp_forward.1} parent=0 // pred_fallthru
    _
  // Predicated region
  $region6: #{logp_forward.1} parent=0 // pred_check
    _
  $region7: #{logp_forward.1} parent=0 // pred_check_branch
    %12 = sbr.rel (0) target = $region9
  $region8: #{logp_forward.1} parent=0 // pred_region
    _
  $region9: #{logp_forward.1} parent=0 // pred_fallthru
    _
  // Predicated region
  $region10: #{logp_forward.1} parent=0 // pred_check
    _
  $region11: #{logp_forward.1} parent=0 // pred_check_branch
    %14 = sbr.rel (0) target = $region13
  $region12: #{logp_forward.1} parent=0 // pred_region
    _
  $region13: #{logp_forward.1} parent=0 // pred_fallthru
    _
  // Predicated region
  $region14: #{logp_forward.1} parent=0 // pred_check
    _
  $region15: #{logp_forward.1} parent=0 // pred_check_branch
    %16 = sbr.rel (0) target = $region17
  $region16: #{logp_forward.1} parent=0 // pred_region
    _
  $region17: #{logp_forward.1} parent=0 // pred_fallthru
    _
  %v18 = vld [vmem:[%s3 + $0x20] sm:$0xff]
  %v19 = vld [vmem:[%s3 + $0x28] sm:$0xff]
  %v20 = vld [vmem:[%s3 + $0x30] sm:$0xff]
  %v21 = vld [vmem:[%s3 + $0x38] sm:$0xff]
  %v22 = vld [vmem:[%s3 + $0x40] sm:$0xff]
  %v23 = vld [vmem:[%s3 + $0x48] sm:$0xff]
  %v24 = vld [vmem:[%s3 + $0x50] sm:$0xff]
  %v25 = vld [vmem:[%s3 + $0x58] sm:$0xff]
  %v26 = vld [vmem:[%s3 + $0x60] sm:$0xff]
  %v27 = vld [vmem:[%s3 + $0x68] sm:$0xff]
  %v28 = vld [vmem:[%s3 + $0x70] sm:$0xff]
  %v29 = vld [vmem:[%s3 + $0x78] sm:$0xff]
  %v30 = vld [vmem:[%s3 + $0x80] sm:$0xf]
  %v31 = vld [vmem:[%s0] sm:$0x3]
  %v32 = vld [vmem:[%s1] sm:$0x3]
  %v33 = vcvt.s32.f32 %v32
  %v34 = vlaneseq
  %v35 = vand.u32 %v34, 127
  %v36 = vlaneseq
  %v37 = vshrl.u32 %v36, 7
  %v38 = vsub.s32 0, %v37
  %v39 = vrot.slane %v31, %v38
  %41 = vbcast.lane.b32.xlu0 %v39, 256
  %v42 = vpop.permute.xlu0 %41
  %v43 = vlaneseq
  %v44 = vshrl.u32 %v43, 7
  %v45 = vsub.s32 1, %v44
  %v46 = vrot.slane %v31, %v45
  %48 = vbcast.lane.b32.xlu0 %v46, 256
  %v49 = vpop.permute.xlu0 %48
  %vm50 = vcmp.eq.s32.totalorder %v35, %v42
  %vm51 = vcmp.eq.s32.totalorder %v35, %v49
  %v52 = vsel %vm50, 1, 0
  %v53 = vsel %vm51, 1, 0
  %v54 = vcvt.s32.f32 %v52
  %v55 = vcvt.s32.f32 %v53
  %v56 = vlaneseq
  %v57 = vshrl.u32 %v56, 7
  %v58 = vsub.s32 0, %v57
  %v59 = vrot.slane %v33, %v58
  %61 = vbcast.lane.b32.xlu0 %v59, 256
  %v62 = vpop.permute.xlu0 %61
  %v63 = vlaneseq
  %v64 = vshrl.u32 %v63, 7
  %v65 = vsub.s32 1, %v64
  %v66 = vrot.slane %v33, %v65
  %68 = vbcast.lane.b32.xlu0 %v66, 256
  %v69 = vpop.permute.xlu0 %68
  %v70 = vmul.f32 %v54, %v62
  %v71 = vmul.f32 %v55, %v69
  %vm72 = vcmask 818176
  %v74 = vsel %vm72, %v70, 0
  %v77 = vsel %vm72, %v71, 0
  %vm79 = vcmask 1043456
  %v81 = vsel %vm79, %v30, 0
  %83 = vmatprep.subr.mxu0 0.0
  %84 = vmatpush1.msra.mxu0 %v18
  %85 = vmatprep.subr.mxu0 0.0
  %86 = vmatpush1.msra.mxu0 %v19
  %87 = vmatprep.subr.mxu0 0.0
  %88 = vmatpush1.msra.mxu0 %v20
  %89 = vmatprep.subr.mxu0 0.0
  %90 = vmatpush1.msra.mxu0 %v21
  %91 = vmatprep.subr.mxu0 0.0
  %92 = vmatpush1.msra.mxu0 %v22
  %93 = vmatprep.subr.mxu0 0.0
  %94 = vmatpush1.msra.mxu0 %v23
  %95 = vmatprep.subr.mxu0 0.0
  %96 = vmatpush1.msra.mxu0 %v24
  %97 = vmatprep.subr.mxu0 0.0
  %98 = vmatpush1.msra.mxu0 %v25
  %99 = vmatprep.subr.mxu0 0.0
  %100 = vmatpush1.msra.mxu0 %v26
  %101 = vmatprep.subr.mxu0 0.0
  %102 = vmatpush1.msra.mxu0 %v27
  %103 = vmatprep.subr.mxu0 0.0
  %104 = vmatpush1.msra.mxu0 %v28
  %105 = vmatprep.subr.mxu0 0.0
  %106 = vmatpush1.msra.mxu0 %v29
  %107 = vmatprep.subr.mxu0 0.0
  %108 = vmatpush1.msra.mxu0 %v81
  %109 = vmatprep.subr.mxu0 0.0
  %110 = vmatpush1.msra.mxu0 0.0
  %111 = vmatprep.subr.mxu0 0.0
  %112 = vmatpush1.msra.mxu0 0.0
  %113 = vmatprep.subr.mxu0 0.0
  %114 = vmatpush1.msra.mxu0 0.0
  %115 = vmatprep.subr.mxu0 0.0
  %116 = vmatpush1.msra.mxu0 0.0
  %117 = vmatprep.subr.mxu0 0.0
  %118 = vmatpush1.msra.mxu0 0.0
  %119 = vmatprep.subr.mxu0 0.0
  %120 = vmatpush1.msra.mxu0 0.0
  %121 = vmatprep.subr.mxu0 0.0
  %122 = vmatpush1.msra.mxu0 0.0
  %123 = vmatprep.subr.mxu0 0.0
  %124 = vmatpush1.msra.mxu0 0.0
  %125 = vmatprep.subr.mxu0 0.0
  %126 = vmatpush1.msra.mxu0 0.0
  %127 = vmatprep.subr.mxu0 0.0
  %128 = vmatpush1.msra.mxu0 0.0
  %129 = vmatprep.subr.mxu0 0.0
  %130 = vmatpush1.msra.mxu0 0.0
  %131 = vmatprep.subr.mxu0 0.0
  %132 = vmatpush1.msra.mxu0 0.0
  %133 = vmatprep.subr.mxu0 0.0
  %134 = vmatpush1.msra.mxu0 0.0
  %135 = vmatprep.subr.mxu0 0.0
  %136 = vmatpush1.msra.mxu0 0.0
  %137 = vmatprep.subr.mxu0 0.0
  %138 = vmatpush1.msra.mxu0 0.0
  %139 = vmatprep.subr.mxu0 0.0
  %140 = vmatpush1.msra.mxu0 0.0
  %141 = vmatprep.subr.mxu0 0.0
  %142 = vmatpush1.msra.mxu0 0.0
  %143 = vmatprep.subr.mxu0 0.0
  %144 = vmatpush1.msra.mxu0 0.0
  %145 = vmatprep.subr.mxu0 0.0
  %146 = vmatpush1.msra.mxu0 0.0
  %147 = vmatprep.mubr.f32.mxu0 0.0
  %148 = vmatmul.mubr.f32.gmra.mrb[0].mxu0 %v74
  %v149 = vpop.f32.mrb[0].mxu0
  %v150 = vadd.f32 0.0, %v149
  %v151 = vpop.f32.mrb[0].mxu0
  %152 = vmatprep.mubr.f32.mxu0 0.0
  %153 = vmatmul.mubr.f32.gmra.mrb[0].mxu0 %v77
  %v154 = vpop.f32.mrb[0].mxu0
  %v155 = vadd.f32 0.0, %v154
  %v156 = vpop.f32.mrb[0].mxu0
  %157 = vdwg.mxu0
  %v158 = vpack.c.bf16 %v155, %v150
  %v159 = vld [vmem:[%s2] sm:$0xf]
  %v160 = vld [vmem:[%s2 + $0x4] sm:$0xf]
  %v161 = vld [vmem:[%s2 + $0x8] sm:$0xf]
  %v162 = vld [vmem:[%s2 + $0xc] sm:$0xf]
  %v163 = vld [vmem:[%s3] sm:$0x1]
  %v164 = vlaneseq
  %v165 = vshrl.u32 %v164, 7
  %v166 = vsub.s32 0, %v165
  %v167 = vrot.slane %v163, %v166
  %v172 = vunpack.c.l.b16 %v159
  %v173 = vunpack.c.l.b16 %v160
  %v174 = vunpack.c.l.b16 %v161
  %v175 = vunpack.c.l.b16 %v162
  %v176 = vpack.c.b16 %v173, %v172
  %v177 = vpack.c.b16 %v175, %v174
  %vm180 = vcmask 261120
  %v182 = vsel %vm180, %v158, 0
  %184 = vmatprep.subr.bf16.mxu0 0
  %185 = vmatpush1.bf16.msra.mxu0 %v176
  %186 = vmatprep.subr.bf16.mxu0 0
  %187 = vmatpush1.bf16.msra.mxu0 %v177
  %188 = vmatprep.subr.bf16.mxu0 0
  %189 = vmatpush1.bf16.msra.mxu0 0
  %190 = vmatprep.subr.bf16.mxu0 0
  %191 = vmatpush1.bf16.msra.mxu0 0
  %192 = vmatprep.subr.bf16.mxu0 0
  %193 = vmatpush1.bf16.msra.mxu0 0
  %194 = vmatprep.subr.bf16.mxu0 0
  %195 = vmatpush1.bf16.msra.mxu0 0
  %196 = vmatprep.subr.bf16.mxu0 0
  %197 = vmatpush1.bf16.msra.mxu0 0
  %198 = vmatprep.subr.bf16.mxu0 0
  %199 = vmatpush1.bf16.msra.mxu0 0
  %200 = vmatprep.subr.bf16.mxu0 0
  %201 = vmatpush1.bf16.msra.mxu0 0
  %202 = vmatprep.subr.bf16.mxu0 0
  %203 = vmatpush1.bf16.msra.mxu0 0
  %204 = vmatprep.subr.bf16.mxu0 0
  %205 = vmatpush1.bf16.msra.mxu0 0
  %206 = vmatprep.subr.bf16.mxu0 0
  %207 = vmatpush1.bf16.msra.mxu0 0
  %208 = vmatprep.subr.bf16.mxu0 0
  %209 = vmatpush1.bf16.msra.mxu0 0
  %210 = vmatprep.subr.bf16.mxu0 0
  %211 = vmatpush1.bf16.msra.mxu0 0
  %212 = vmatprep.subr.bf16.mxu0 0
  %213 = vmatpush1.bf16.msra.mxu0 0
  %214 = vmatprep.subr.bf16.mxu0 0
  %215 = vmatpush1.bf16.msra.mxu0 0
  %216 = vmatprep.mubr.bf16.mxu0 0
  %217 = vmatmul.mubr.bf16.gmra.mrb[0].mxu0 %v182
  %v218 = vpop.f32.mrb[0].mxu0
  %v219 = vadd.f32 %v167, %v218
  %v220 = vpop.f32.mrb[0].mxu0
  %v221 = vpop.f32.mrb[0].mxu0
  %v222 = vadd.f32 %v167, %v221
  %v223 = vpop.f32.mrb[0].mxu0
  %224 = vdwg.mxu0
  %v225 = vmul.f32 %v219, 0.35355338
  %v226 = vmul.f32 %v222, 0.35355338
  %v227 = vld [vmem:[%s2 + $0x10] sm:$0xf]
  %v228 = vld [vmem:[%s2 + $0x14] sm:$0xf]
  %v229 = vld [vmem:[%s2 + $0x18] sm:$0xf]
  %v230 = vld [vmem:[%s2 + $0x1c] sm:$0xf]
  %v231 = vld [vmem:[%s3 + $0x1] sm:$0x1]
  %v232 = vlaneseq
  %v233 = vshrl.u32 %v232, 7
  %v234 = vsub.s32 0, %v233
  %v235 = vrot.slane %v231, %v234
  %v240 = vunpack.c.l.b16 %v227
  %v241 = vunpack.c.l.b16 %v228
  %v242 = vunpack.c.l.b16 %v229
  %v243 = vunpack.c.l.b16 %v230
  %v244 = vpack.c.b16 %v241, %v240
  %v245 = vpack.c.b16 %v243, %v242
  %248 = vmatprep.subr.bf16.mxu0 0
  %249 = vmatpush1.bf16.msra.mxu0 %v244
  %250 = vmatprep.subr.bf16.mxu0 0
  %251 = vmatpush1.bf16.msra.mxu0 %v245
  %252 = vmatprep.subr.bf16.mxu0 0
  %253 = vmatpush1.bf16.msra.mxu0 0
  %254 = vmatprep.subr.bf16.mxu0 0
  %255 = vmatpush1.bf16.msra.mxu0 0
  %256 = vmatprep.subr.bf16.mxu0 0
  %257 = vmatpush1.bf16.msra.mxu0 0
  %258 = vmatprep.subr.bf16.mxu0 0
  %259 = vmatpush1.bf16.msra.mxu0 0
  %260 = vmatprep.subr.bf16.mxu0 0
  %261 = vmatpush1.bf16.msra.mxu0 0
  %262 = vmatprep.subr.bf16.mxu0 0
  %263 = vmatpush1.bf16.msra.mxu0 0
  %264 = vmatprep.subr.bf16.mxu0 0
  %265 = vmatpush1.bf16.msra.mxu0 0
  %266 = vmatprep.subr.bf16.mxu0 0
  %267 = vmatpush1.bf16.msra.mxu0 0
  %268 = vmatprep.subr.bf16.mxu0 0
  %269 = vmatpush1.bf16.msra.mxu0 0
  %270 = vmatprep.subr.bf16.mxu0 0
  %271 = vmatpush1.bf16.msra.mxu0 0
  %272 = vmatprep.subr.bf16.mxu0 0
  %273 = vmatpush1.bf16.msra.mxu0 0
  %274 = vmatprep.subr.bf16.mxu0 0
  %275 = vmatpush1.bf16.msra.mxu0 0
  %276 = vmatprep.subr.bf16.mxu0 0
  %277 = vmatpush1.bf16.msra.mxu0 0
  %278 = vmatprep.subr.bf16.mxu0 0
  %279 = vmatpush1.bf16.msra.mxu0 0
  %280 = vmatprep.mubr.bf16.mxu0 0
  %281 = vmatmul.mubr.bf16.gmra.mrb[0].mxu0 %v182
  %v282 = vpop.f32.mrb[0].mxu0
  %v283 = vadd.f32 %v235, %v282
  %v284 = vpop.f32.mrb[0].mxu0
  %v285 = vpop.f32.mrb[0].mxu0
  %v286 = vadd.f32 %v235, %v285
  %v287 = vpop.f32.mrb[0].mxu0
  %288 = vdwg.mxu0
  %v289 = vld [vmem:[%s2 + $0x20] sm:$0xf]
  %v290 = vld [vmem:[%s2 + $0x24] sm:$0xf]
  %v291 = vld [vmem:[%s2 + $0x28] sm:$0xf]
  %v292 = vld [vmem:[%s2 + $0x2c] sm:$0xf]
  %v293 = vld [vmem:[%s3 + $0x2] sm:$0x1]
  %v294 = vlaneseq
  %v295 = vshrl.u32 %v294, 7
  %v296 = vsub.s32 0, %v295
  %v297 = vrot.slane %v293, %v296
  %v302 = vunpack.c.l.b16 %v289
  %v303 = vunpack.c.l.b16 %v290
  %v304 = vunpack.c.l.b16 %v291
  %v305 = vunpack.c.l.b16 %v292
  %v306 = vpack.c.b16 %v303, %v302
  %v307 = vpack.c.b16 %v305, %v304
  %310 = vmatprep.subr.bf16.mxu0 0
  %311 = vmatpush1.bf16.msra.mxu0 %v306
  %312 = vmatprep.subr.bf16.mxu0 0
  %313 = vmatpush1.bf16.msra.mxu0 %v307
  %314 = vmatprep.subr.bf16.mxu0 0
  %315 = vmatpush1.bf16.msra.mxu0 0
  %316 = vmatprep.subr.bf16.mxu0 0
  %317 = vmatpush1.bf16.msra.mxu0 0
  %318 = vmatprep.subr.bf16.mxu0 0
  %319 = vmatpush1.bf16.msra.mxu0 0
  %320 = vmatprep.subr.bf16.mxu0 0
  %321 = vmatpush1.bf16.msra.mxu0 0
  %322 = vmatprep.subr.bf16.mxu0 0
  %323 = vmatpush1.bf16.msra.mxu0 0
  %324 = vmatprep.subr.bf16.mxu0 0
  %325 = vmatpush1.bf16.msra.mxu0 0
  %326 = vmatprep.subr.bf16.mxu0 0
  %327 = vmatpush1.bf16.msra.mxu0 0
  %328 = vmatprep.subr.bf16.mxu0 0
  %329 = vmatpush1.bf16.msra.mxu0 0
  %330 = vmatprep.subr.bf16.mxu0 0
  %331 = vmatpush1.bf16.msra.mxu0 0
  %332 = vmatprep.subr.bf16.mxu0 0
  %333 = vmatpush1.bf16.msra.mxu0 0
  %334 = vmatprep.subr.bf16.mxu0 0
  %335 = vmatpush1.bf16.msra.mxu0 0
  %336 = vmatprep.subr.bf16.mxu0 0
  %337 = vmatpush1.bf16.msra.mxu0 0
  %338 = vmatprep.subr.bf16.mxu0 0
  %339 = vmatpush1.bf16.msra.mxu0 0
  %340 = vmatprep.subr.bf16.mxu0 0
  %341 = vmatpush1.bf16.msra.mxu0 0
  %342 = vmatprep.mubr.bf16.mxu0 0
  %343 = vmatmul.mubr.bf16.gmra.mrb[0].mxu0 %v182
  %v344 = vpop.f32.mrb[0].mxu0
  %v345 = vadd.f32 %v297, %v344
  %v346 = vpop.f32.mrb[0].mxu0
  %v347 = vpop.f32.mrb[0].mxu0
  %v348 = vadd.f32 %v297, %v347
  %v349 = vpop.f32.mrb[0].mxu0
  %350 = vdwg.mxu0
  %vm351 = vcmask 64512
  %v353 = vsel %vm351, %v225, 0
  %v356 = vsel %vm351, %v283, 0
  %358 = vmatprep.subr.mxu0 0.0
  %359 = vmatpush1.xpose.msra.mxu0 %v356
  %360 = vmatprep.subr.mxu0 0.0
  %361 = vmatpush1.xpose.msra.mxu0 0.0
  %362 = vmatprep.subr.mxu0 0.0
  %363 = vmatpush1.xpose.msra.mxu0 0.0
  %364 = vmatprep.subr.mxu0 0.0
  %365 = vmatpush1.xpose.msra.mxu0 0.0
  %366 = vmatprep.subr.mxu0 0.0
  %367 = vmatpush1.xpose.msra.mxu0 0.0
  %368 = vmatprep.subr.mxu0 0.0
  %369 = vmatpush1.xpose.msra.mxu0 0.0
  %370 = vmatprep.subr.mxu0 0.0
  %371 = vmatpush1.xpose.msra.mxu0 0.0
  %372 = vmatprep.subr.mxu0 0.0
  %373 = vmatpush1.xpose.msra.mxu0 0.0
  %374 = vmatprep.subr.mxu0 0.0
  %375 = vmatpush1.xpose.msra.mxu0 0.0
  %376 = vmatprep.subr.mxu0 0.0
  %377 = vmatpush1.xpose.msra.mxu0 0.0
  %378 = vmatprep.subr.mxu0 0.0
  %379 = vmatpush1.xpose.msra.mxu0 0.0
  %380 = vmatprep.subr.mxu0 0.0
  %381 = vmatpush1.xpose.msra.mxu0 0.0
  %382 = vmatprep.subr.mxu0 0.0
  %383 = vmatpush1.xpose.msra.mxu0 0.0
  %384 = vmatprep.subr.mxu0 0.0
  %385 = vmatpush1.xpose.msra.mxu0 0.0
  %386 = vmatprep.subr.mxu0 0.0
  %387 = vmatpush1.xpose.msra.mxu0 0.0
  %388 = vmatprep.subr.mxu0 0.0
  %389 = vmatpush1.xpose.msra.mxu0 0.0
  %390 = vmatprep.subr.mxu0 0.0
  %391 = vmatpush1.xpose.msra.mxu0 0.0
  %392 = vmatprep.subr.mxu0 0.0
  %393 = vmatpush1.xpose.msra.mxu0 0.0
  %394 = vmatprep.subr.mxu0 0.0
  %395 = vmatpush1.xpose.msra.mxu0 0.0
  %396 = vmatprep.subr.mxu0 0.0
  %397 = vmatpush1.xpose.msra.mxu0 0.0
  %398 = vmatprep.subr.mxu0 0.0
  %399 = vmatpush1.xpose.msra.mxu0 0.0
  %400 = vmatprep.subr.mxu0 0.0
  %401 = vmatpush1.xpose.msra.mxu0 0.0
  %402 = vmatprep.subr.mxu0 0.0
  %403 = vmatpush1.xpose.msra.mxu0 0.0
  %404 = vmatprep.subr.mxu0 0.0
  %405 = vmatpush1.xpose.msra.mxu0 0.0
  %406 = vmatprep.subr.mxu0 0.0
  %407 = vmatpush1.xpose.msra.mxu0 0.0
  %408 = vmatprep.subr.mxu0 0.0
  %409 = vmatpush1.xpose.msra.mxu0 0.0
  %410 = vmatprep.subr.mxu0 0.0
  %411 = vmatpush1.xpose.msra.mxu0 0.0
  %412 = vmatprep.subr.mxu0 0.0
  %413 = vmatpush1.xpose.msra.mxu0 0.0
  %414 = vmatprep.subr.mxu0 0.0
  %415 = vmatpush1.xpose.msra.mxu0 0.0
  %416 = vmatprep.subr.mxu0 0.0
  %417 = vmatpush1.xpose.msra.mxu0 0.0
  %418 = vmatprep.subr.mxu0 0.0
  %419 = vmatpush1.xpose.msra.mxu0 0.0
  %420 = vmatprep.subr.mxu0 0.0
  %421 = vmatpush1.xpose.msra.mxu0 0.0
  %422 = vmatprep.mubr.f32.mxu0 0.0
  %423 = vmatmul.mubr.f32.gmra.mrb[0].mxu0 %v353
  %v424 = vpop.f32.mrb[0].mxu0
  %v425 = vadd.f32 0.0, %v424
  %v426 = vpop.f32.mrb[0].mxu0
  %427 = vdwg.mxu0
  %v429 = vsel %vm351, %v226, 0
  %v432 = vsel %vm351, %v286, 0
  %434 = vmatprep.subr.mxu0 0.0
  %435 = vmatpush1.xpose.msra.mxu0 %v432
  %436 = vmatprep.subr.mxu0 0.0
  %437 = vmatpush1.xpose.msra.mxu0 0.0
  %438 = vmatprep.subr.mxu0 0.0
  %439 = vmatpush1.xpose.msra.mxu0 0.0
  %440 = vmatprep.subr.mxu0 0.0
  %441 = vmatpush1.xpose.msra.mxu0 0.0
  %442 = vmatprep.subr.mxu0 0.0
  %443 = vmatpush1.xpose.msra.mxu0 0.0
  %444 = vmatprep.subr.mxu0 0.0
  %445 = vmatpush1.xpose.msra.mxu0 0.0
  %446 = vmatprep.subr.mxu0 0.0
  %447 = vmatpush1.xpose.msra.mxu0 0.0
  %448 = vmatprep.subr.mxu0 0.0
  %449 = vmatpush1.xpose.msra.mxu0 0.0
  %450 = vmatprep.subr.mxu0 0.0
  %451 = vmatpush1.xpose.msra.mxu0 0.0
  %452 = vmatprep.subr.mxu0 0.0
  %453 = vmatpush1.xpose.msra.mxu0 0.0
  %454 = vmatprep.subr.mxu0 0.0
  %455 = vmatpush1.xpose.msra.mxu0 0.0
  %456 = vmatprep.subr.mxu0 0.0
  %457 = vmatpush1.xpose.msra.mxu0 0.0
  %458 = vmatprep.subr.mxu0 0.0
  %459 = vmatpush1.xpose.msra.mxu0 0.0
  %460 = vmatprep.subr.mxu0 0.0
  %461 = vmatpush1.xpose.msra.mxu0 0.0
  %462 = vmatprep.subr.mxu0 0.0
  %463 = vmatpush1.xpose.msra.mxu0 0.0
  %464 = vmatprep.subr.mxu0 0.0
  %465 = vmatpush1.xpose.msra.mxu0 0.0
  %466 = vmatprep.subr.mxu0 0.0
  %467 = vmatpush1.xpose.msra.mxu0 0.0
  %468 = vmatprep.subr.mxu0 0.0
  %469 = vmatpush1.xpose.msra.mxu0 0.0
  %470 = vmatprep.subr.mxu0 0.0
  %471 = vmatpush1.xpose.msra.mxu0 0.0
  %472 = vmatprep.subr.mxu0 0.0
  %473 = vmatpush1.xpose.msra.mxu0 0.0
  %474 = vmatprep.subr.mxu0 0.0
  %475 = vmatpush1.xpose.msra.mxu0 0.0
  %476 = vmatprep.subr.mxu0 0.0
  %477 = vmatpush1.xpose.msra.mxu0 0.0
  %478 = vmatprep.subr.mxu0 0.0
  %479 = vmatpush1.xpose.msra.mxu0 0.0
  %480 = vmatprep.subr.mxu0 0.0
  %481 = vmatpush1.xpose.msra.mxu0 0.0
  %482 = vmatprep.subr.mxu0 0.0
  %483 = vmatpush1.xpose.msra.mxu0 0.0
  %484 = vmatprep.subr.mxu0 0.0
  %485 = vmatpush1.xpose.msra.mxu0 0.0
  %486 = vmatprep.subr.mxu0 0.0
  %487 = vmatpush1.xpose.msra.mxu0 0.0
  %488 = vmatprep.subr.mxu0 0.0
  %489 = vmatpush1.xpose.msra.mxu0 0.0
  %490 = vmatprep.subr.mxu0 0.0
  %491 = vmatpush1.xpose.msra.mxu0 0.0
  %492 = vmatprep.subr.mxu0 0.0
  %493 = vmatpush1.xpose.msra.mxu0 0.0
  %494 = vmatprep.subr.mxu0 0.0
  %495 = vmatpush1.xpose.msra.mxu0 0.0
  %496 = vmatprep.subr.mxu0 0.0
  %497 = vmatpush1.xpose.msra.mxu0 0.0
  %498 = vmatprep.mubr.f32.mxu0 0.0
  %499 = vmatmul.mubr.f32.gmra.mrb[0].mxu0 %v429
  %v500 = vpop.f32.mrb[0].mxu0
  %v501 = vadd.f32 0.0, %v500
  %v502 = vpop.f32.mrb[0].mxu0
  %503 = vdwg.mxu0
  %v504 = vsel %vm351, %v425, -inf
  %505 = vmax.xlane.f32.xlu0 %v504
  %v506 = vpop.xlane.xlu0 %505
  %v507 = vsel %vm351, %v501, -inf
  %508 = vmax.xlane.f32.xlu0 %v507
  %v509 = vpop.xlane.xlu0 %508
  %v510 = vsub.f32 %v425, %v506
  %v511 = vsub.f32 %v501, %v509
  %v512 = vmul.f32 %v510, 1.442695
  %v513 = vpow.pop %v512
  %v514 = vmul.f32 %v511, 1.442695
  %v515 = vpow.pop %v514
  %v516 = vsel %vm351, %v513, 0.0
  %517 = vadd.xlane.f32.xlu0 %v516
  %v518 = vpop.xlane.xlu0 %517
  %v519 = vsel %vm351, %v515, 0.0
  %520 = vadd.xlane.f32.xlu0 %v519
  %v521 = vpop.xlane.xlu0 %520
  %v522 = vrcp.pop %v518
  %v523 = vrcp.pop %v521
  %v524 = vmul.f32 %v513, %v522
  %v525 = vmul.f32 %v515, %v523
  %v527 = vsel %vm351, %v524, 0
  %529 = vmatprep.subr.mxu0 0.0
  %530 = vmatpush1.msra.mxu0 %v345
  %531 = vmatprep.subr.mxu0 0.0
  %532 = vmatpush1.msra.mxu0 0.0
  %533 = vmatprep.subr.mxu0 0.0
  %534 = vmatpush1.msra.mxu0 0.0
  %535 = vmatprep.subr.mxu0 0.0
  %536 = vmatpush1.msra.mxu0 0.0
  %537 = vmatprep.subr.mxu0 0.0
  %538 = vmatpush1.msra.mxu0 0.0
  %539 = vmatprep.subr.mxu0 0.0
  %540 = vmatpush1.msra.mxu0 0.0
  %541 = vmatprep.subr.mxu0 0.0
  %542 = vmatpush1.msra.mxu0 0.0
  %543 = vmatprep.subr.mxu0 0.0
  %544 = vmatpush1.msra.mxu0 0.0
  %545 = vmatprep.subr.mxu0 0.0
  %546 = vmatpush1.msra.mxu0 0.0
  %547 = vmatprep.subr.mxu0 0.0
  %548 = vmatpush1.msra.mxu0 0.0
  %549 = vmatprep.subr.mxu0 0.0
  %550 = vmatpush1.msra.mxu0 0.0
  %551 = vmatprep.subr.mxu0 0.0
  %552 = vmatpush1.msra.mxu0 0.0
  %553 = vmatprep.subr.mxu0 0.0
  %554 = vmatpush1.msra.mxu0 0.0
  %555 = vmatprep.subr.mxu0 0.0
  %556 = vmatpush1.msra.mxu0 0.0
  %557 = vmatprep.subr.mxu0 0.0
  %558 = vmatpush1.msra.mxu0 0.0
  %559 = vmatprep.subr.mxu0 0.0
  %560 = vmatpush1.msra.mxu0 0.0
  %561 = vmatprep.subr.mxu0 0.0
  %562 = vmatpush1.msra.mxu0 0.0
  %563 = vmatprep.subr.mxu0 0.0
  %564 = vmatpush1.msra.mxu0 0.0
  %565 = vmatprep.subr.mxu0 0.0
  %566 = vmatpush1.msra.mxu0 0.0
  %567 = vmatprep.subr.mxu0 0.0
  %568 = vmatpush1.msra.mxu0 0.0
  %569 = vmatprep.subr.mxu0 0.0
  %570 = vmatpush1.msra.mxu0 0.0
  %571 = vmatprep.subr.mxu0 0.0
  %572 = vmatpush1.msra.mxu0 0.0
  %573 = vmatprep.subr.mxu0 0.0
  %574 = vmatpush1.msra.mxu0 0.0
  %575 = vmatprep.subr.mxu0 0.0
  %576 = vmatpush1.msra.mxu0 0.0
  %577 = vmatprep.subr.mxu0 0.0
  %578 = vmatpush1.msra.mxu0 0.0
  %579 = vmatprep.subr.mxu0 0.0
  %580 = vmatpush1.msra.mxu0 0.0
  %581 = vmatprep.subr.mxu0 0.0
  %582 = vmatpush1.msra.mxu0 0.0
  %583 = vmatprep.subr.mxu0 0.0
  %584 = vmatpush1.msra.mxu0 0.0
  %585 = vmatprep.subr.mxu0 0.0
  %586 = vmatpush1.msra.mxu0 0.0
  %587 = vmatprep.subr.mxu0 0.0
  %588 = vmatpush1.msra.mxu0 0.0
  %589 = vmatprep.subr.mxu0 0.0
  %590 = vmatpush1.msra.mxu0 0.0
  %591 = vmatprep.subr.mxu0 0.0
  %592 = vmatpush1.msra.mxu0 0.0
  %593 = vmatprep.mubr.f32.mxu0 0.0
  %594 = vmatmul.mubr.f32.gmra.mrb[0].mxu0 %v527
  %v595 = vpop.f32.mrb[0].mxu0
  %v596 = vadd.f32 0.0, %v595
  %v597 = vpop.f32.mrb[0].mxu0
  %598 = vdwg.mxu0
  %v600 = vsel %vm351, %v525, 0
  %602 = vmatprep.subr.mxu0 0.0
  %603 = vmatpush1.msra.mxu0 %v348
  %604 = vmatprep.subr.mxu0 0.0
  %605 = vmatpush1.msra.mxu0 0.0
  %606 = vmatprep.subr.mxu0 0.0
  %607 = vmatpush1.msra.mxu0 0.0
  %608 = vmatprep.subr.mxu0 0.0
  %609 = vmatpush1.msra.mxu0 0.0
  %610 = vmatprep.subr.mxu0 0.0
  %611 = vmatpush1.msra.mxu0 0.0
  %612 = vmatprep.subr.mxu0 0.0
  %613 = vmatpush1.msra.mxu0 0.0
  %614 = vmatprep.subr.mxu0 0.0
  %615 = vmatpush1.msra.mxu0 0.0
  %616 = vmatprep.subr.mxu0 0.0
  %617 = vmatpush1.msra.mxu0 0.0
  %618 = vmatprep.subr.mxu0 0.0
  %619 = vmatpush1.msra.mxu0 0.0
  %620 = vmatprep.subr.mxu0 0.0
  %621 = vmatpush1.msra.mxu0 0.0
  %622 = vmatprep.subr.mxu0 0.0
  %623 = vmatpush1.msra.mxu0 0.0
  %624 = vmatprep.subr.mxu0 0.0
  %625 = vmatpush1.msra.mxu0 0.0
  %626 = vmatprep.subr.mxu0 0.0
  %627 = vmatpush1.msra.mxu0 0.0
  %628 = vmatprep.subr.mxu0 0.0
  %629 = vmatpush1.msra.mxu0 0.0
  %630 = vmatprep.subr.mxu0 0.0
  %631 = vmatpush1.msra.mxu0 0.0
  %632 = vmatprep.subr.mxu0 0.0
  %633 = vmatpush1.msra.mxu0 0.0
  %634 = vmatprep.subr.mxu0 0.0
  %635 = vmatpush1.msra.mxu0 0.0
  %636 = vmatprep.subr.mxu0 0.0
  %637 = vmatpush1.msra.mxu0 0.0
  %638 = vmatprep.subr.mxu0 0.0
  %639 = vmatpush1.msra.mxu0 0.0
  %640 = vmatprep.subr.mxu0 0.0
  %641 = vmatpush1.msra.mxu0 0.0
  %642 = vmatprep.subr.mxu0 0.0
  %643 = vmatpush1.msra.mxu0 0.0
  %644 = vmatprep.subr.mxu0 0.0
  %645 = vmatpush1.msra.mxu0 0.0
  %646 = vmatprep.subr.mxu0 0.0
  %647 = vmatpush1.msra.mxu0 0.0
  %648 = vmatprep.subr.mxu0 0.0
  %649 = vmatpush1.msra.mxu0 0.0
  %650 = vmatprep.subr.mxu0 0.0
  %651 = vmatpush1.msra.mxu0 0.0
  %652 = vmatprep.subr.mxu0 0.0
  %653 = vmatpush1.msra.mxu0 0.0
  %654 = vmatprep.subr.mxu0 0.0
  %655 = vmatpush1.msra.mxu0 0.0
  %656 = vmatprep.subr.mxu0 0.0
  %657 = vmatpush1.msra.mxu0 0.0
  %658 = vmatprep.subr.mxu0 0.0
  %659 = vmatpush1.msra.mxu0 0.0
  %660 = vmatprep.subr.mxu0 0.0
  %661 = vmatpush1.msra.mxu0 0.0
  %662 = vmatprep.subr.mxu0 0.0
  %663 = vmatpush1.msra.mxu0 0.0
  %664 = vmatprep.subr.mxu0 0.0
  %665 = vmatpush1.msra.mxu0 0.0
  %666 = vmatprep.mubr.f32.mxu0 0.0
  %667 = vmatmul.mubr.f32.gmra.mrb[0].mxu0 %v600
  %v668 = vpop.f32.mrb[0].mxu0
  %v669 = vadd.f32 0.0, %v668
  %v670 = vpop.f32.mrb[0].mxu0
  %671 = vdwg.mxu0
  %672 = vrot.lane.b32.xlu0 %v225, 120
  %v673 = vpop.permute.xlu0 %672
  %674 = vrot.lane.b32.xlu0 %v283, 120
  %v675 = vpop.permute.xlu0 %674
  %v676 = vsel %vm351, %v673, 0
  %v678 = vsel %vm351, %v675, 0
  %680 = vmatprep.subr.mxu0 0.0
  %681 = vmatpush1.xpose.msra.mxu0 %v678
  %682 = vmatprep.subr.mxu0 0.0
  %683 = vmatpush1.xpose.msra.mxu0 0.0
  %684 = vmatprep.subr.mxu0 0.0
  %685 = vmatpush1.xpose.msra.mxu0 0.0
  %686 = vmatprep.subr.mxu0 0.0
  %687 = vmatpush1.xpose.msra.mxu0 0.0
  %688 = vmatprep.subr.mxu0 0.0
  %689 = vmatpush1.xpose.msra.mxu0 0.0
  %690 = vmatprep.subr.mxu0 0.0
  %691 = vmatpush1.xpose.msra.mxu0 0.0
  %692 = vmatprep.subr.mxu0 0.0
  %693 = vmatpush1.xpose.msra.mxu0 0.0
  %694 = vmatprep.subr.mxu0 0.0
  %695 = vmatpush1.xpose.msra.mxu0 0.0
  %696 = vmatprep.subr.mxu0 0.0
  %697 = vmatpush1.xpose.msra.mxu0 0.0
  %698 = vmatprep.subr.mxu0 0.0
  %699 = vmatpush1.xpose.msra.mxu0 0.0
  %700 = vmatprep.subr.mxu0 0.0
  %701 = vmatpush1.xpose.msra.mxu0 0.0
  %702 = vmatprep.subr.mxu0 0.0
  %703 = vmatpush1.xpose.msra.mxu0 0.0
  %704 = vmatprep.subr.mxu0 0.0
  %705 = vmatpush1.xpose.msra.mxu0 0.0
  %706 = vmatprep.subr.mxu0 0.0
  %707 = vmatpush1.xpose.msra.mxu0 0.0
  %708 = vmatprep.subr.mxu0 0.0
  %709 = vmatpush1.xpose.msra.mxu0 0.0
  %710 = vmatprep.subr.mxu0 0.0
  %711 = vmatpush1.xpose.msra.mxu0 0.0
  %712 = vmatprep.subr.mxu0 0.0
  %713 = vmatpush1.xpose.msra.mxu0 0.0
  %714 = vmatprep.subr.mxu0 0.0
  %715 = vmatpush1.xpose.msra.mxu0 0.0
  %716 = vmatprep.subr.mxu0 0.0
  %717 = vmatpush1.xpose.msra.mxu0 0.0
  %718 = vmatprep.subr.mxu0 0.0
  %719 = vmatpush1.xpose.msra.mxu0 0.0
  %720 = vmatprep.subr.mxu0 0.0
  %721 = vmatpush1.xpose.msra.mxu0 0.0
  %722 = vmatprep.subr.mxu0 0.0
  %723 = vmatpush1.xpose.msra.mxu0 0.0
  %724 = vmatprep.subr.mxu0 0.0
  %725 = vmatpush1.xpose.msra.mxu0 0.0
  %726 = vmatprep.subr.mxu0 0.0
  %727 = vmatpush1.xpose.msra.mxu0 0.0
  %728 = vmatprep.subr.mxu0 0.0
  %729 = vmatpush1.xpose.msra.mxu0 0.0
  %730 = vmatprep.subr.mxu0 0.0
  %731 = vmatpush1.xpose.msra.mxu0 0.0
  %732 = vmatprep.subr.mxu0 0.0
  %733 = vmatpush1.xpose.msra.mxu0 0.0
  %734 = vmatprep.subr.mxu0 0.0
  %735 = vmatpush1.xpose.msra.mxu0 0.0
  %736 = vmatprep.subr.mxu0 0.0
  %737 = vmatpush1.xpose.msra.mxu0 0.0
  %738 = vmatprep.subr.mxu0 0.0
  %739 = vmatpush1.xpose.msra.mxu0 0.0
  %740 = vmatprep.subr.mxu0 0.0
  %741 = vmatpush1.xpose.msra.mxu0 0.0
  %742 = vmatprep.subr.mxu0 0.0
  %743 = vmatpush1.xpose.msra.mxu0 0.0
  %744 = vmatprep.mubr.f32.mxu0 0.0
  %745 = vmatmul.mubr.f32.gmra.mrb[0].mxu0 %v676
  %v746 = vpop.f32.mrb[0].mxu0
  %v747 = vadd.f32 0.0, %v746
  %v748 = vpop.f32.mrb[0].mxu0
  %749 = vdwg.mxu0
  %750 = vrot.lane.b32.xlu0 %v226, 120
  %v751 = vpop.permute.xlu0 %750
  %752 = vrot.lane.b32.xlu0 %v286, 120
  %v753 = vpop.permute.xlu0 %752
  %v754 = vsel %vm351, %v751, 0
  %v756 = vsel %vm351, %v753, 0
  %758 = vmatprep.subr.mxu0 0.0
  %759 = vmatpush1.xpose.msra.mxu0 %v756
  %760 = vmatprep.subr.mxu0 0.0
  %761 = vmatpush1.xpose.msra.mxu0 0.0
  %762 = vmatprep.subr.mxu0 0.0
  %763 = vmatpush1.xpose.msra.mxu0 0.0
  %764 = vmatprep.subr.mxu0 0.0
  %765 = vmatpush1.xpose.msra.mxu0 0.0
  %766 = vmatprep.subr.mxu0 0.0
  %767 = vmatpush1.xpose.msra.mxu0 0.0
  %768 = vmatprep.subr.mxu0 0.0
  %769 = vmatpush1.xpose.msra.mxu0 0.0
  %770 = vmatprep.subr.mxu0 0.0
  %771 = vmatpush1.xpose.msra.mxu0 0.0
  %772 = vmatprep.subr.mxu0 0.0
  %773 = vmatpush1.xpose.msra.mxu0 0.0
  %774 = vmatprep.subr.mxu0 0.0
  %775 = vmatpush1.xpose.msra.mxu0 0.0
  %776 = vmatprep.subr.mxu0 0.0
  %777 = vmatpush1.xpose.msra.mxu0 0.0
  %778 = vmatprep.subr.mxu0 0.0
  %779 = vmatpush1.xpose.msra.mxu0 0.0
  %780 = vmatprep.subr.mxu0 0.0
  %781 = vmatpush1.xpose.msra.mxu0 0.0
  %782 = vmatprep.subr.mxu0 0.0
  %783 = vmatpush1.xpose.msra.mxu0 0.0
  %784 = vmatprep.subr.mxu0 0.0
  %785 = vmatpush1.xpose.msra.mxu0 0.0
  %786 = vmatprep.subr.mxu0 0.0
  %787 = vmatpush1.xpose.msra.mxu0 0.0
  %788 = vmatprep.subr.mxu0 0.0
  %789 = vmatpush1.xpose.msra.mxu0 0.0
  %790 = vmatprep.subr.mxu0 0.0
  %791 = vmatpush1.xpose.msra.mxu0 0.0
  %792 = vmatprep.subr.mxu0 0.0
  %793 = vmatpush1.xpose.msra.mxu0 0.0
  %794 = vmatprep.subr.mxu0 0.0
  %795 = vmatpush1.xpose.msra.mxu0 0.0
  %796 = vmatprep.subr.mxu0 0.0
  %797 = vmatpush1.xpose.msra.mxu0 0.0
  %798 = vmatprep.subr.mxu0 0.0
  %799 = vmatpush1.xpose.msra.mxu0 0.0
  %800 = vmatprep.subr.mxu0 0.0
  %801 = vmatpush1.xpose.msra.mxu0 0.0
  %802 = vmatprep.subr.mxu0 0.0
  %803 = vmatpush1.xpose.msra.mxu0 0.0
  %804 = vmatprep.subr.mxu0 0.0
  %805 = vmatpush1.xpose.msra.mxu0 0.0
  %806 = vmatprep.subr.mxu0 0.0
  %807 = vmatpush1.xpose.msra.mxu0 0.0
  %808 = vmatprep.subr.mxu0 0.0
  %809 = vmatpush1.xpose.msra.mxu0 0.0
  %810 = vmatprep.subr.mxu0 0.0
  %811 = vmatpush1.xpose.msra.mxu0 0.0
  %812 = vmatprep.subr.mxu0 0.0
  %813 = vmatpush1.xpose.msra.mxu0 0.0
  %814 = vmatprep.subr.mxu0 0.0
  %815 = vmatpush1.xpose.msra.mxu0 0.0
  %816 = vmatprep.subr.mxu0 0.0
  %817 = vmatpush1.xpose.msra.mxu0 0.0
  %818 = vmatprep.subr.mxu0 0.0
  %819 = vmatpush1.xpose.msra.mxu0 0.0
  %820 = vmatprep.subr.mxu0 0.0
  %821 = vmatpush1.xpose.msra.mxu0 0.0
  %822 = vmatprep.mubr.f32.mxu0 0.0
  %823 = vmatmul.mubr.f32.gmra.mrb[0].mxu0 %v754
  %v824 = vpop.f32.mrb[0].mxu0
  %v825 = vadd.f32 0.0, %v824
  %v826 = vpop.f32.mrb[0].mxu0
  %827 = vdwg.mxu0
  %v828 = vsel %vm351, %v747, -inf
  %829 = vmax.xlane.f32.xlu0 %v828
  %v830 = vpop.xlane.xlu0 %829
  %v831 = vsel %vm351, %v825, -inf
  %832 = vmax.xlane.f32.xlu0 %v831
  %v833 = vpop.xlane.xlu0 %832
  %v834 = vsub.f32 %v747, %v830
  %v835 = vsub.f32 %v825, %v833
  %v836 = vmul.f32 %v834, 1.442695
  %v837 = vpow.pop %v836
  %v838 = vmul.f32 %v835, 1.442695
  %v839 = vpow.pop %v838
  %v840 = vsel %vm351, %v837, 0.0
  %841 = vadd.xlane.f32.xlu0 %v840
  %v842 = vpop.xlane.xlu0 %841
  %v843 = vsel %vm351, %v839, 0.0
  %844 = vadd.xlane.f32.xlu0 %v843
  %v845 = vpop.xlane.xlu0 %844
  %v846 = vrcp.pop %v842
  %v847 = vrcp.pop %v845
  %v848 = vmul.f32 %v837, %v846
  %v849 = vmul.f32 %v839, %v847
  %851 = vrot.lane.b32.xlu0 %v345, 120
  %v852 = vpop.permute.xlu0 %851
  %v855 = vsel %vm351, %v848, 0
  %857 = vmatprep.subr.mxu0 0.0
  %858 = vmatpush1.msra.mxu0 %v852
  %859 = vmatprep.subr.mxu0 0.0
  %860 = vmatpush1.msra.mxu0 0.0
  %861 = vmatprep.subr.mxu0 0.0
  %862 = vmatpush1.msra.mxu0 0.0
  %863 = vmatprep.subr.mxu0 0.0
  %864 = vmatpush1.msra.mxu0 0.0
  %865 = vmatprep.subr.mxu0 0.0
  %866 = vmatpush1.msra.mxu0 0.0
  %867 = vmatprep.subr.mxu0 0.0
  %868 = vmatpush1.msra.mxu0 0.0
  %869 = vmatprep.subr.mxu0 0.0
  %870 = vmatpush1.msra.mxu0 0.0
  %871 = vmatprep.subr.mxu0 0.0
  %872 = vmatpush1.msra.mxu0 0.0
  %873 = vmatprep.subr.mxu0 0.0
  %874 = vmatpush1.msra.mxu0 0.0
  %875 = vmatprep.subr.mxu0 0.0
  %876 = vmatpush1.msra.mxu0 0.0
  %877 = vmatprep.subr.mxu0 0.0
  %878 = vmatpush1.msra.mxu0 0.0
  %879 = vmatprep.subr.mxu0 0.0
  %880 = vmatpush1.msra.mxu0 0.0
  %881 = vmatprep.subr.mxu0 0.0
  %882 = vmatpush1.msra.mxu0 0.0
  %883 = vmatprep.subr.mxu0 0.0
  %884 = vmatpush1.msra.mxu0 0.0
  %885 = vmatprep.subr.mxu0 0.0
  %886 = vmatpush1.msra.mxu0 0.0
  %887 = vmatprep.subr.mxu0 0.0
  %888 = vmatpush1.msra.mxu0 0.0
  %889 = vmatprep.subr.mxu0 0.0
  %890 = vmatpush1.msra.mxu0 0.0
  %891 = vmatprep.subr.mxu0 0.0
  %892 = vmatpush1.msra.mxu0 0.0
  %893 = vmatprep.subr.mxu0 0.0
  %894 = vmatpush1.msra.mxu0 0.0
  %895 = vmatprep.subr.mxu0 0.0
  %896 = vmatpush1.msra.mxu0 0.0
  %897 = vmatprep.subr.mxu0 0.0
  %898 = vmatpush1.msra.mxu0 0.0
  %899 = vmatprep.subr.mxu0 0.0
  %900 = vmatpush1.msra.mxu0 0.0
  %901 = vmatprep.subr.mxu0 0.0
  %902 = vmatpush1.msra.mxu0 0.0
  %903 = vmatprep.subr.mxu0 0.0
  %904 = vmatpush1.msra.mxu0 0.0
  %905 = vmatprep.subr.mxu0 0.0
  %906 = vmatpush1.msra.mxu0 0.0
  %907 = vmatprep.subr.mxu0 0.0
  %908 = vmatpush1.msra.mxu0 0.0
  %909 = vmatprep.subr.mxu0 0.0
  %910 = vmatpush1.msra.mxu0 0.0
  %911 = vmatprep.subr.mxu0 0.0
  %912 = vmatpush1.msra.mxu0 0.0
  %913 = vmatprep.subr.mxu0 0.0
  %914 = vmatpush1.msra.mxu0 0.0
  %915 = vmatprep.subr.mxu0 0.0
  %916 = vmatpush1.msra.mxu0 0.0
  %917 = vmatprep.subr.mxu0 0.0
  %918 = vmatpush1.msra.mxu0 0.0
  %919 = vmatprep.subr.mxu0 0.0
  %920 = vmatpush1.msra.mxu0 0.0
  %921 = vmatprep.mubr.f32.mxu0 0.0
  %922 = vmatmul.mubr.f32.gmra.mrb[0].mxu0 %v855
  %v923 = vpop.f32.mrb[0].mxu0
  %v924 = vadd.f32 0.0, %v923
  %v925 = vpop.f32.mrb[0].mxu0
  %926 = vdwg.mxu0
  %928 = vrot.lane.b32.xlu0 %v348, 120
  %v929 = vpop.permute.xlu0 %928
  %v932 = vsel %vm351, %v849, 0
  %934 = vmatprep.subr.mxu0 0.0
  %935 = vmatpush1.msra.mxu0 %v929
  %936 = vmatprep.subr.mxu0 0.0
  %937 = vmatpush1.msra.mxu0 0.0
  %938 = vmatprep.subr.mxu0 0.0
  %939 = vmatpush1.msra.mxu0 0.0
  %940 = vmatprep.subr.mxu0 0.0
  %941 = vmatpush1.msra.mxu0 0.0
  %942 = vmatprep.subr.mxu0 0.0
  %943 = vmatpush1.msra.mxu0 0.0
  %944 = vmatprep.subr.mxu0 0.0
  %945 = vmatpush1.msra.mxu0 0.0
  %946 = vmatprep.subr.mxu0 0.0
  %947 = vmatpush1.msra.mxu0 0.0
  %948 = vmatprep.subr.mxu0 0.0
  %949 = vmatpush1.msra.mxu0 0.0
  %950 = vmatprep.subr.mxu0 0.0
  %951 = vmatpush1.msra.mxu0 0.0
  %952 = vmatprep.subr.mxu0 0.0
  %953 = vmatpush1.msra.mxu0 0.0
  %954 = vmatprep.subr.mxu0 0.0
  %955 = vmatpush1.msra.mxu0 0.0
  %956 = vmatprep.subr.mxu0 0.0
  %957 = vmatpush1.msra.mxu0 0.0
  %958 = vmatprep.subr.mxu0 0.0
  %959 = vmatpush1.msra.mxu0 0.0
  %960 = vmatprep.subr.mxu0 0.0
  %961 = vmatpush1.msra.mxu0 0.0
  %962 = vmatprep.subr.mxu0 0.0
  %963 = vmatpush1.msra.mxu0 0.0
  %964 = vmatprep.subr.mxu0 0.0
  %965 = vmatpush1.msra.mxu0 0.0
  %966 = vmatprep.subr.mxu0 0.0
  %967 = vmatpush1.msra.mxu0 0.0
  %968 = vmatprep.subr.mxu0 0.0
  %969 = vmatpush1.msra.mxu0 0.0
  %970 = vmatprep.subr.mxu0 0.0
  %971 = vmatpush1.msra.mxu0 0.0
  %972 = vmatprep.subr.mxu0 0.0
  %973 = vmatpush1.msra.mxu0 0.0
  %974 = vmatprep.subr.mxu0 0.0
  %975 = vmatpush1.msra.mxu0 0.0
  %976 = vmatprep.subr.mxu0 0.0
  %977 = vmatpush1.msra.mxu0 0.0
  %978 = vmatprep.subr.mxu0 0.0
  %979 = vmatpush1.msra.mxu0 0.0
  %980 = vmatprep.subr.mxu0 0.0
  %981 = vmatpush1.msra.mxu0 0.0
  %982 = vmatprep.subr.mxu0 0.0
  %983 = vmatpush1.msra.mxu0 0.0
  %984 = vmatprep.subr.mxu0 0.0
  %985 = vmatpush1.msra.mxu0 0.0
  %986 = vmatprep.subr.mxu0 0.0
  %987 = vmatpush1.msra.mxu0 0.0
  %988 = vmatprep.subr.mxu0 0.0
  %989 = vmatpush1.msra.mxu0 0.0
  %990 = vmatprep.subr.mxu0 0.0
  %991 = vmatpush1.msra.mxu0 0.0
  %992 = vmatprep.subr.mxu0 0.0
  %993 = vmatpush1.msra.mxu0 0.0
  %994 = vmatprep.subr.mxu0 0.0
  %995 = vmatpush1.msra.mxu0 0.0
  %996 = vmatprep.subr.mxu0 0.0
  %997 = vmatpush1.msra.mxu0 0.0
  %998 = vmatprep.mubr.f32.mxu0 0.0
  %999 = vmatmul.mubr.f32.gmra.mrb[0].mxu0 %v932
  %v1000 = vpop.f32.mrb[0].mxu0
  %v1001 = vadd.f32 0.0, %v1000
  %v1002 = vpop.f32.mrb[0].mxu0
  %1003 = vdwg.mxu0
  %1004 = vrot.lane.b32.xlu0 %v225, 112
  %v1005 = vpop.permute.xlu0 %1004
  %1006 = vrot.lane.b32.xlu0 %v283, 112
  %v1007 = vpop.permute.xlu0 %1006
  %v1008 = vsel %vm351, %v1005, 0
  %v1010 = vsel %vm351, %v1007, 0
  %1012 = vmatprep.subr.mxu0 0.0
  %1013 = vmatpush1.xpose.msra.mxu0 %v1010
  %1014 = vmatprep.subr.mxu0 0.0
  %1015 = vmatpush1.xpose.msra.mxu0 0.0
  %1016 = vmatprep.subr.mxu0 0.0
  %1017 = vmatpush1.xpose.msra.mxu0 0.0
  %1018 = vmatprep.subr.mxu0 0.0
  %1019 = vmatpush1.xpose.msra.mxu0 0.0
  %1020 = vmatprep.subr.mxu0 0.0
  %1021 = vmatpush1.xpose.msra.mxu0 0.0
  %1022 = vmatprep.subr.mxu0 0.0
  %1023 = vmatpush1.xpose.msra.mxu0 0.0
  %1024 = vmatprep.subr.mxu0 0.0
  %1025 = vmatpush1.xpose.msra.mxu0 0.0
  %1026 = vmatprep.subr.mxu0 0.0
  %1027 = vmatpush1.xpose.msra.mxu0 0.0
  %1028 = vmatprep.subr.mxu0 0.0
  %1029 = vmatpush1.xpose.msra.mxu0 0.0
  %1030 = vmatprep.subr.mxu0 0.0
  %1031 = vmatpush1.xpose.msra.mxu0 0.0
  %1032 = vmatprep.subr.mxu0 0.0
  %1033 = vmatpush1.xpose.msra.mxu0 0.0
  %1034 = vmatprep.subr.mxu0 0.0
  %1035 = vmatpush1.xpose.msra.mxu0 0.0
  %1036 = vmatprep.subr.mxu0 0.0
  %1037 = vmatpush1.xpose.msra.mxu0 0.0
  %1038 = vmatprep.subr.mxu0 0.0
  %1039 = vmatpush1.xpose.msra.mxu0 0.0
  %1040 = vmatprep.subr.mxu0 0.0
  %1041 = vmatpush1.xpose.msra.mxu0 0.0
  %1042 = vmatprep.subr.mxu0 0.0
  %1043 = vmatpush1.xpose.msra.mxu0 0.0
  %1044 = vmatprep.subr.mxu0 0.0
  %1045 = vmatpush1.xpose.msra.mxu0 0.0
  %1046 = vmatprep.subr.mxu0 0.0
  %1047 = vmatpush1.xpose.msra.mxu0 0.0
  %1048 = vmatprep.subr.mxu0 0.0
  %1049 = vmatpush1.xpose.msra.mxu0 0.0
  %1050 = vmatprep.subr.mxu0 0.0
  %1051 = vmatpush1.xpose.msra.mxu0 0.0
  %1052 = vmatprep.subr.mxu0 0.0
  %1053 = vmatpush1.xpose.msra.mxu0 0.0
  %1054 = vmatprep.subr.mxu0 0.0
  %1055 = vmatpush1.xpose.msra.mxu0 0.0
  %1056 = vmatprep.subr.mxu0 0.0
  %1057 = vmatpush1.xpose.msra.mxu0 0.0
  %1058 = vmatprep.subr.mxu0 0.0
  %1059 = vmatpush1.xpose.msra.mxu0 0.0
  %1060 = vmatprep.subr.mxu0 0.0
  %1061 = vmatpush1.xpose.msra.mxu0 0.0
  %1062 = vmatprep.subr.mxu0 0.0
  %1063 = vmatpush1.xpose.msra.mxu0 0.0
  %1064 = vmatprep.subr.mxu0 0.0
  %1065 = vmatpush1.xpose.msra.mxu0 0.0
  %1066 = vmatprep.subr.mxu0 0.0
  %1067 = vmatpush1.xpose.msra.mxu0 0.0
  %1068 = vmatprep.subr.mxu0 0.0
  %1069 = vmatpush1.xpose.msra.mxu0 0.0
  %1070 = vmatprep.subr.mxu0 0.0
  %1071 = vmatpush1.xpose.msra.mxu0 0.0
  %1072 = vmatprep.subr.mxu0 0.0
  %1073 = vmatpush1.xpose.msra.mxu0 0.0
  %1074 = vmatprep.subr.mxu0 0.0
  %1075 = vmatpush1.xpose.msra.mxu0 0.0
  %1076 = vmatprep.mubr.f32.mxu0 0.0
  %1077 = vmatmul.mubr.f32.gmra.mrb[0].mxu0 %v1008
  %v1078 = vpop.f32.mrb[0].mxu0
  %v1079 = vadd.f32 0.0, %v1078
  %v1080 = vpop.f32.mrb[0].mxu0
  %1081 = vdwg.mxu0
  %1082 = vrot.lane.b32.xlu0 %v226, 112
  %v1083 = vpop.permute.xlu0 %1082
  %1084 = vrot.lane.b32.xlu0 %v286, 112
  %v1085 = vpop.permute.xlu0 %1084
  %v1086 = vsel %vm351, %v1083, 0
  %v1088 = vsel %vm351, %v1085, 0
  %1090 = vmatprep.subr.mxu0 0.0
  %1091 = vmatpush1.xpose.msra.mxu0 %v1088
  %1092 = vmatprep.subr.mxu0 0.0
  %1093 = vmatpush1.xpose.msra.mxu0 0.0
  %1094 = vmatprep.subr.mxu0 0.0
  %1095 = vmatpush1.xpose.msra.mxu0 0.0
  %1096 = vmatprep.subr.mxu0 0.0
  %1097 = vmatpush1.xpose.msra.mxu0 0.0
  %1098 = vmatprep.subr.mxu0 0.0
  %1099 = vmatpush1.xpose.msra.mxu0 0.0
  %1100 = vmatprep.subr.mxu0 0.0
  %1101 = vmatpush1.xpose.msra.mxu0 0.0
  %1102 = vmatprep.subr.mxu0 0.0
  %1103 = vmatpush1.xpose.msra.mxu0 0.0
  %1104 = vmatprep.subr.mxu0 0.0
  %1105 = vmatpush1.xpose.msra.mxu0 0.0
  %1106 = vmatprep.subr.mxu0 0.0
  %1107 = vmatpush1.xpose.msra.mxu0 0.0
  %1108 = vmatprep.subr.mxu0 0.0
  %1109 = vmatpush1.xpose.msra.mxu0 0.0
  %1110 = vmatprep.subr.mxu0 0.0
  %1111 = vmatpush1.xpose.msra.mxu0 0.0
  %1112 = vmatprep.subr.mxu0 0.0
  %1113 = vmatpush1.xpose.msra.mxu0 0.0
  %1114 = vmatprep.subr.mxu0 0.0
  %1115 = vmatpush1.xpose.msra.mxu0 0.0
  %1116 = vmatprep.subr.mxu0 0.0
  %1117 = vmatpush1.xpose.msra.mxu0 0.0
  %1118 = vmatprep.subr.mxu0 0.0
  %1119 = vmatpush1.xpose.msra.mxu0 0.0
  %1120 = vmatprep.subr.mxu0 0.0
  %1121 = vmatpush1.xpose.msra.mxu0 0.0
  %1122 = vmatprep.subr.mxu0 0.0
  %1123 = vmatpush1.xpose.msra.mxu0 0.0
  %1124 = vmatprep.subr.mxu0 0.0
  %1125 = vmatpush1.xpose.msra.mxu0 0.0
  %1126 = vmatprep.subr.mxu0 0.0
  %1127 = vmatpush1.xpose.msra.mxu0 0.0
  %1128 = vmatprep.subr.mxu0 0.0
  %1129 = vmatpush1.xpose.msra.mxu0 0.0
  %1130 = vmatprep.subr.mxu0 0.0
  %1131 = vmatpush1.xpose.msra.mxu0 0.0
  %1132 = vmatprep.subr.mxu0 0.0
  %1133 = vmatpush1.xpose.msra.mxu0 0.0
  %1134 = vmatprep.subr.mxu0 0.0
  %1135 = vmatpush1.xpose.msra.mxu0 0.0
  %1136 = vmatprep.subr.mxu0 0.0
  %1137 = vmatpush1.xpose.msra.mxu0 0.0
  %1138 = vmatprep.subr.mxu0 0.0
  %1139 = vmatpush1.xpose.msra.mxu0 0.0
  %1140 = vmatprep.subr.mxu0 0.0
  %1141 = vmatpush1.xpose.msra.mxu0 0.0
  %1142 = vmatprep.subr.mxu0 0.0
  %1143 = vmatpush1.xpose.msra.mxu0 0.0
  %1144 = vmatprep.subr.mxu0 0.0
  %1145 = vmatpush1.xpose.msra.mxu0 0.0
  %1146 = vmatprep.subr.mxu0 0.0
  %1147 = vmatpush1.xpose.msra.mxu0 0.0
  %1148 = vmatprep.subr.mxu0 0.0
  %1149 = vmatpush1.xpose.msra.mxu0 0.0
  %1150 = vmatprep.subr.mxu0 0.0
  %1151 = vmatpush1.xpose.msra.mxu0 0.0
  %1152 = vmatprep.subr.mxu0 0.0
  %1153 = vmatpush1.xpose.msra.mxu0 0.0
  %1154 = vmatprep.mubr.f32.mxu0 0.0
  %1155 = vmatmul.mubr.f32.gmra.mrb[0].mxu0 %v1086
  %v1156 = vpop.f32.mrb[0].mxu0
  %v1157 = vadd.f32 0.0, %v1156
  %v1158 = vpop.f32.mrb[0].mxu0
  %1159 = vdwg.mxu0
  %v1160 = vsel %vm351, %v1079, -inf
  %1161 = vmax.xlane.f32.xlu0 %v1160
  %v1162 = vpop.xlane.xlu0 %1161
  %v1163 = vsel %vm351, %v1157, -inf
  %1164 = vmax.xlane.f32.xlu0 %v1163
  %v1165 = vpop.xlane.xlu0 %1164
  %v1166 = vsub.f32 %v1079, %v1162
  %v1167 = vsub.f32 %v1157, %v1165
  %v1168 = vmul.f32 %v1166, 1.442695
  %v1169 = vpow.pop %v1168
  %v1170 = vmul.f32 %v1167, 1.442695
  %v1171 = vpow.pop %v1170
  %v1172 = vsel %vm351, %v1169, 0.0
  %1173 = vadd.xlane.f32.xlu0 %v1172
  %v1174 = vpop.xlane.xlu0 %1173
  %v1175 = vsel %vm351, %v1171, 0.0
  %1176 = vadd.xlane.f32.xlu0 %v1175
  %v1177 = vpop.xlane.xlu0 %1176
  %v1178 = vrcp.pop %v1174
  %v1179 = vrcp.pop %v1177
  %v1180 = vmul.f32 %v1169, %v1178
  %v1181 = vmul.f32 %v1171, %v1179
  %1182 = vrot.lane.b32.xlu0 %v345, 112
  %v1183 = vpop.permute.xlu0 %1182
  %v1186 = vsel %vm351, %v1180, 0
  %1188 = vmatprep.subr.mxu0 0.0
  %1189 = vmatpush1.msra.mxu0 %v1183
  %1190 = vmatprep.subr.mxu0 0.0
  %1191 = vmatpush1.msra.mxu0 0.0
  %1192 = vmatprep.subr.mxu0 0.0
  %1193 = vmatpush1.msra.mxu0 0.0
  %1194 = vmatprep.subr.mxu0 0.0
  %1195 = vmatpush1.msra.mxu0 0.0
  %1196 = vmatprep.subr.mxu0 0.0
  %1197 = vmatpush1.msra.mxu0 0.0
  %1198 = vmatprep.subr.mxu0 0.0
  %1199 = vmatpush1.msra.mxu0 0.0
  %1200 = vmatprep.subr.mxu0 0.0
  %1201 = vmatpush1.msra.mxu0 0.0
  %1202 = vmatprep.subr.mxu0 0.0
  %1203 = vmatpush1.msra.mxu0 0.0
  %1204 = vmatprep.subr.mxu0 0.0
  %1205 = vmatpush1.msra.mxu0 0.0
  %1206 = vmatprep.subr.mxu0 0.0
  %1207 = vmatpush1.msra.mxu0 0.0
  %1208 = vmatprep.subr.mxu0 0.0
  %1209 = vmatpush1.msra.mxu0 0.0
  %1210 = vmatprep.subr.mxu0 0.0
  %1211 = vmatpush1.msra.mxu0 0.0
  %1212 = vmatprep.subr.mxu0 0.0
  %1213 = vmatpush1.msra.mxu0 0.0
  %1214 = vmatprep.subr.mxu0 0.0
  %1215 = vmatpush1.msra.mxu0 0.0
  %1216 = vmatprep.subr.mxu0 0.0
  %1217 = vmatpush1.msra.mxu0 0.0
  %1218 = vmatprep.subr.mxu0 0.0
  %1219 = vmatpush1.msra.mxu0 0.0
  %1220 = vmatprep.subr.mxu0 0.0
  %1221 = vmatpush1.msra.mxu0 0.0
  %1222 = vmatprep.subr.mxu0 0.0
  %1223 = vmatpush1.msra.mxu0 0.0
  %1224 = vmatprep.subr.mxu0 0.0
  %1225 = vmatpush1.msra.mxu0 0.0
  %1226 = vmatprep.subr.mxu0 0.0
  %1227 = vmatpush1.msra.mxu0 0.0
  %1228 = vmatprep.subr.mxu0 0.0
  %1229 = vmatpush1.msra.mxu0 0.0
  %1230 = vmatprep.subr.mxu0 0.0
  %1231 = vmatpush1.msra.mxu0 0.0
  %1232 = vmatprep.subr.mxu0 0.0
  %1233 = vmatpush1.msra.mxu0 0.0
  %1234 = vmatprep.subr.mxu0 0.0
  %1235 = vmatpush1.msra.mxu0 0.0
  %1236 = vmatprep.subr.mxu0 0.0
  %1237 = vmatpush1.msra.mxu0 0.0
  %1238 = vmatprep.subr.mxu0 0.0
  %1239 = vmatpush1.msra.mxu0 0.0
  %1240 = vmatprep.subr.mxu0 0.0
  %1241 = vmatpush1.msra.mxu0 0.0
  %1242 = vmatprep.subr.mxu0 0.0
  %1243 = vmatpush1.msra.mxu0 0.0
  %1244 = vmatprep.subr.mxu0 0.0
  %1245 = vmatpush1.msra.mxu0 0.0
  %1246 = vmatprep.subr.mxu0 0.0
  %1247 = vmatpush1.msra.mxu0 0.0
  %1248 = vmatprep.subr.mxu0 0.0
  %1249 = vmatpush1.msra.mxu0 0.0
  %1250 = vmatprep.subr.mxu0 0.0
  %1251 = vmatpush1.msra.mxu0 0.0
  %1252 = vmatprep.mubr.f32.mxu0 0.0
  %1253 = vmatmul.mubr.f32.gmra.mrb[0].mxu0 %v1186
  %v1254 = vpop.f32.mrb[0].mxu0
  %v1255 = vadd.f32 0.0, %v1254
  %v1256 = vpop.f32.mrb[0].mxu0
  %1257 = vdwg.mxu0
  %1258 = vrot.lane.b32.xlu0 %v348, 112
  %v1259 = vpop.permute.xlu0 %1258
  %v1262 = vsel %vm351, %v1181, 0
  %1264 = vmatprep.subr.mxu0 0.0
  %1265 = vmatpush1.msra.mxu0 %v1259
  %1266 = vmatprep.subr.mxu0 0.0
  %1267 = vmatpush1.msra.mxu0 0.0
  %1268 = vmatprep.subr.mxu0 0.0
  %1269 = vmatpush1.msra.mxu0 0.0
  %1270 = vmatprep.subr.mxu0 0.0
  %1271 = vmatpush1.msra.mxu0 0.0
  %1272 = vmatprep.subr.mxu0 0.0
  %1273 = vmatpush1.msra.mxu0 0.0
  %1274 = vmatprep.subr.mxu0 0.0
  %1275 = vmatpush1.msra.mxu0 0.0
  %1276 = vmatprep.subr.mxu0 0.0
  %1277 = vmatpush1.msra.mxu0 0.0
  %1278 = vmatprep.subr.mxu0 0.0
  %1279 = vmatpush1.msra.mxu0 0.0
  %1280 = vmatprep.subr.mxu0 0.0
  %1281 = vmatpush1.msra.mxu0 0.0
  %1282 = vmatprep.subr.mxu0 0.0
  %1283 = vmatpush1.msra.mxu0 0.0
  %1284 = vmatprep.subr.mxu0 0.0
  %1285 = vmatpush1.msra.mxu0 0.0
  %1286 = vmatprep.subr.mxu0 0.0
  %1287 = vmatpush1.msra.mxu0 0.0
  %1288 = vmatprep.subr.mxu0 0.0
  %1289 = vmatpush1.msra.mxu0 0.0
  %1290 = vmatprep.subr.mxu0 0.0
  %1291 = vmatpush1.msra.mxu0 0.0
  %1292 = vmatprep.subr.mxu0 0.0
  %1293 = vmatpush1.msra.mxu0 0.0
  %1294 = vmatprep.subr.mxu0 0.0
  %1295 = vmatpush1.msra.mxu0 0.0
  %1296 = vmatprep.subr.mxu0 0.0
  %1297 = vmatpush1.msra.mxu0 0.0
  %1298 = vmatprep.subr.mxu0 0.0
  %1299 = vmatpush1.msra.mxu0 0.0
  %1300 = vmatprep.subr.mxu0 0.0
  %1301 = vmatpush1.msra.mxu0 0.0
  %1302 = vmatprep.subr.mxu0 0.0
  %1303 = vmatpush1.msra.mxu0 0.0
  %1304 = vmatprep.subr.mxu0 0.0
  %1305 = vmatpush1.msra.mxu0 0.0
  %1306 = vmatprep.subr.mxu0 0.0
  %1307 = vmatpush1.msra.mxu0 0.0
  %1308 = vmatprep.subr.mxu0 0.0
  %1309 = vmatpush1.msra.mxu0 0.0
  %1310 = vmatprep.subr.mxu0 0.0
  %1311 = vmatpush1.msra.mxu0 0.0
  %1312 = vmatprep.subr.mxu0 0.0
  %1313 = vmatpush1.msra.mxu0 0.0
  %1314 = vmatprep.subr.mxu0 0.0
  %1315 = vmatpush1.msra.mxu0 0.0
  %1316 = vmatprep.subr.mxu0 0.0
  %1317 = vmatpush1.msra.mxu0 0.0
  %1318 = vmatprep.subr.mxu0 0.0
  %1319 = vmatpush1.msra.mxu0 0.0
  %1320 = vmatprep.subr.mxu0 0.0
  %1321 = vmatpush1.msra.mxu0 0.0
  %1322 = vmatprep.subr.mxu0 0.0
  %1323 = vmatpush1.msra.mxu0 0.0
  %1324 = vmatprep.subr.mxu0 0.0
  %1325 = vmatpush1.msra.mxu0 0.0
  %1326 = vmatprep.subr.mxu0 0.0
  %1327 = vmatpush1.msra.mxu0 0.0
  %1328 = vmatprep.mubr.f32.mxu0 0.0
  %1329 = vmatmul.mubr.f32.gmra.mrb[0].mxu0 %v1262
  %v1330 = vpop.f32.mrb[0].mxu0
  %v1331 = vadd.f32 0.0, %v1330
  %v1332 = vpop.f32.mrb[0].mxu0
  %1333 = vdwg.mxu0
  %1334 = vrot.lane.b32.xlu0 %v225, 104
  %v1335 = vpop.permute.xlu0 %1334
  %1336 = vrot.lane.b32.xlu0 %v283, 104
  %v1337 = vpop.permute.xlu0 %1336
  %v1338 = vsel %vm351, %v1335, 0
  %v1340 = vsel %vm351, %v1337, 0
  %1342 = vmatprep.subr.mxu0 0.0
  %1343 = vmatpush1.xpose.msra.mxu0 %v1340
  %1344 = vmatprep.subr.mxu0 0.0
  %1345 = vmatpush1.xpose.msra.mxu0 0.0
  %1346 = vmatprep.subr.mxu0 0.0
  %1347 = vmatpush1.xpose.msra.mxu0 0.0
  %1348 = vmatprep.subr.mxu0 0.0
  %1349 = vmatpush1.xpose.msra.mxu0 0.0
  %1350 = vmatprep.subr.mxu0 0.0
  %1351 = vmatpush1.xpose.msra.mxu0 0.0
  %1352 = vmatprep.subr.mxu0 0.0
  %1353 = vmatpush1.xpose.msra.mxu0 0.0
  %1354 = vmatprep.subr.mxu0 0.0
  %1355 = vmatpush1.xpose.msra.mxu0 0.0
  %1356 = vmatprep.subr.mxu0 0.0
  %1357 = vmatpush1.xpose.msra.mxu0 0.0
  %1358 = vmatprep.subr.mxu0 0.0
  %1359 = vmatpush1.xpose.msra.mxu0 0.0
  %1360 = vmatprep.subr.mxu0 0.0
  %1361 = vmatpush1.xpose.msra.mxu0 0.0
  %1362 = vmatprep.subr.mxu0 0.0
  %1363 = vmatpush1.xpose.msra.mxu0 0.0
  %1364 = vmatprep.subr.mxu0 0.0
  %1365 = vmatpush1.xpose.msra.mxu0 0.0
  %1366 = vmatprep.subr.mxu0 0.0
  %1367 = vmatpush1.xpose.msra.mxu0 0.0
  %1368 = vmatprep.subr.mxu0 0.0
  %1369 = vmatpush1.xpose.msra.mxu0 0.0
  %1370 = vmatprep.subr.mxu0 0.0
  %1371 = vmatpush1.xpose.msra.mxu0 0.0
  %1372 = vmatprep.subr.mxu0 0.0
  %1373 = vmatpush1.xpose.msra.mxu0 0.0
  %1374 = vmatprep.subr.mxu0 0.0
  %1375 = vmatpush1.xpose.msra.mxu0 0.0
  %1376 = vmatprep.subr.mxu0 0.0
  %1377 = vmatpush1.xpose.msra.mxu0 0.0
  %1378 = vmatprep.subr.mxu0 0.0
  %1379 = vmatpush1.xpose.msra.mxu0 0.0
  %1380 = vmatprep.subr.mxu0 0.0
  %1381 = vmatpush1.xpose.msra.mxu0 0.0
  %1382 = vmatprep.subr.mxu0 0.0
  %1383 = vmatpush1.xpose.msra.mxu0 0.0
  %1384 = vmatprep.subr.mxu0 0.0
  %1385 = vmatpush1.xpose.msra.mxu0 0.0
  %1386 = vmatprep.subr.mxu0 0.0
  %1387 = vmatpush1.xpose.msra.mxu0 0.0
  %1388 = vmatprep.subr.mxu0 0.0
  %1389 = vmatpush1.xpose.msra.mxu0 0.0
  %1390 = vmatprep.subr.mxu0 0.0
  %1391 = vmatpush1.xpose.msra.mxu0 0.0
  %1392 = vmatprep.subr.mxu0 0.0
  %1393 = vmatpush1.xpose.msra.mxu0 0.0
  %1394 = vmatprep.subr.mxu0 0.0
  %1395 = vmatpush1.xpose.msra.mxu0 0.0
  %1396 = vmatprep.subr.mxu0 0.0
  %1397 = vmatpush1.xpose.msra.mxu0 0.0
  %1398 = vmatprep.subr.mxu0 0.0
  %1399 = vmatpush1.xpose.msra.mxu0 0.0
  %1400 = vmatprep.subr.mxu0 0.0
  %1401 = vmatpush1.xpose.msra.mxu0 0.0
  %1402 = vmatprep.subr.mxu0 0.0
  %1403 = vmatpush1.xpose.msra.mxu0 0.0
  %1404 = vmatprep.subr.mxu0 0.0
  %1405 = vmatpush1.xpose.msra.mxu0 0.0
  %1406 = vmatprep.mubr.f32.mxu0 0.0
  %1407 = vmatmul.mubr.f32.gmra.mrb[0].mxu0 %v1338
  %v1408 = vpop.f32.mrb[0].mxu0
  %v1409 = vadd.f32 0.0, %v1408
  %v1410 = vpop.f32.mrb[0].mxu0
  %1411 = vdwg.mxu0
  %1412 = vrot.lane.b32.xlu0 %v226, 104
  %v1413 = vpop.permute.xlu0 %1412
  %1414 = vrot.lane.b32.xlu0 %v286, 104
  %v1415 = vpop.permute.xlu0 %1414
  %v1416 = vsel %vm351, %v1413, 0
  %v1418 = vsel %vm351, %v1415, 0
  %1420 = vmatprep.subr.mxu0 0.0
  %1421 = vmatpush1.xpose.msra.mxu0 %v1418
  %1422 = vmatprep.subr.mxu0 0.0
  %1423 = vmatpush1.xpose.msra.mxu0 0.0
  %1424 = vmatprep.subr.mxu0 0.0
  %1425 = vmatpush1.xpose.msra.mxu0 0.0
  %1426 = vmatprep.subr.mxu0 0.0
  %1427 = vmatpush1.xpose.msra.mxu0 0.0
  %1428 = vmatprep.subr.mxu0 0.0
  %1429 = vmatpush1.xpose.msra.mxu0 0.0
  %1430 = vmatprep.subr.mxu0 0.0
  %1431 = vmatpush1.xpose.msra.mxu0 0.0
  %1432 = vmatprep.subr.mxu0 0.0
  %1433 = vmatpush1.xpose.msra.mxu0 0.0
  %1434 = vmatprep.subr.mxu0 0.0
  %1435 = vmatpush1.xpose.msra.mxu0 0.0
  %1436 = vmatprep.subr.mxu0 0.0
  %1437 = vmatpush1.xpose.msra.mxu0 0.0
  %1438 = vmatprep.subr.mxu0 0.0
  %1439 = vmatpush1.xpose.msra.mxu0 0.0
  %1440 = vmatprep.subr.mxu0 0.0
  %1441 = vmatpush1.xpose.msra.mxu0 0.0
  %1442 = vmatprep.subr.mxu0 0.0
  %1443 = vmatpush1.xpose.msra.mxu0 0.0
  %1444 = vmatprep.subr.mxu0 0.0
  %1445 = vmatpush1.xpose.msra.mxu0 0.0
  %1446 = vmatprep.subr.mxu0 0.0
  %1447 = vmatpush1.xpose.msra.mxu0 0.0
  %1448 = vmatprep.subr.mxu0 0.0
  %1449 = vmatpush1.xpose.msra.mxu0 0.0
  %1450 = vmatprep.subr.mxu0 0.0
  %1451 = vmatpush1.xpose.msra.mxu0 0.0
  %1452 = vmatprep.subr.mxu0 0.0
  %1453 = vmatpush1.xpose.msra.mxu0 0.0
  %1454 = vmatprep.subr.mxu0 0.0
  %1455 = vmatpush1.xpose.msra.mxu0 0.0
  %1456 = vmatprep.subr.mxu0 0.0
  %1457 = vmatpush1.xpose.msra.mxu0 0.0
  %1458 = vmatprep.subr.mxu0 0.0
  %1459 = vmatpush1.xpose.msra.mxu0 0.0
  %1460 = vmatprep.subr.mxu0 0.0
  %1461 = vmatpush1.xpose.msra.mxu0 0.0
  %1462 = vmatprep.subr.mxu0 0.0
  %1463 = vmatpush1.xpose.msra.mxu0 0.0
  %1464 = vmatprep.subr.mxu0 0.0
  %1465 = vmatpush1.xpose.msra.mxu0 0.0
  %1466 = vmatprep.subr.mxu0 0.0
  %1467 = vmatpush1.xpose.msra.mxu0 0.0
  %1468 = vmatprep.subr.mxu0 0.0
  %1469 = vmatpush1.xpose.msra.mxu0 0.0
  %1470 = vmatprep.subr.mxu0 0.0
  %1471 = vmatpush1.xpose.msra.mxu0 0.0
  %1472 = vmatprep.subr.mxu0 0.0
  %1473 = vmatpush1.xpose.msra.mxu0 0.0
  %1474 = vmatprep.subr.mxu0 0.0
  %1475 = vmatpush1.xpose.msra.mxu0 0.0
  %1476 = vmatprep.subr.mxu0 0.0
  %1477 = vmatpush1.xpose.msra.mxu0 0.0
  %1478 = vmatprep.subr.mxu0 0.0
  %1479 = vmatpush1.xpose.msra.mxu0 0.0
  %1480 = vmatprep.subr.mxu0 0.0
  %1481 = vmatpush1.xpose.msra.mxu0 0.0
  %1482 = vmatprep.subr.mxu0 0.0
  %1483 = vmatpush1.xpose.msra.mxu0 0.0
  %1484 = vmatprep.mubr.f32.mxu0 0.0
  %1485 = vmatmul.mubr.f32.gmra.mrb[0].mxu0 %v1416
  %v1486 = vpop.f32.mrb[0].mxu0
  %v1487 = vadd.f32 0.0, %v1486
  %v1488 = vpop.f32.mrb[0].mxu0
  %1489 = vdwg.mxu0
  %v1490 = vsel %vm351, %v1409, -inf
  %1491 = vmax.xlane.f32.xlu0 %v1490
  %v1492 = vpop.xlane.xlu0 %1491
  %v1493 = vsel %vm351, %v1487, -inf
  %1494 = vmax.xlane.f32.xlu0 %v1493
  %v1495 = vpop.xlane.xlu0 %1494
  %v1496 = vsub.f32 %v1409, %v1492
  %v1497 = vsub.f32 %v1487, %v1495
  %v1498 = vmul.f32 %v1496, 1.442695
  %v1499 = vpow.pop %v1498
  %v1500 = vmul.f32 %v1497, 1.442695
  %v1501 = vpow.pop %v1500
  %v1502 = vsel %vm351, %v1499, 0.0
  %1503 = vadd.xlane.f32.xlu0 %v1502
  %v1504 = vpop.xlane.xlu0 %1503
  %v1505 = vsel %vm351, %v1501, 0.0
  %1506 = vadd.xlane.f32.xlu0 %v1505
  %v1507 = vpop.xlane.xlu0 %1506
  %v1508 = vrcp.pop %v1504
  %v1509 = vrcp.pop %v1507
  %v1510 = vmul.f32 %v1499, %v1508
  %v1511 = vmul.f32 %v1501, %v1509
  %1512 = vrot.lane.b32.xlu0 %v345, 104
  %v1513 = vpop.permute.xlu0 %1512
  %v1516 = vsel %vm351, %v1510, 0
  %1518 = vmatprep.subr.mxu0 0.0
  %1519 = vmatpush1.msra.mxu0 %v1513
  %1520 = vmatprep.subr.mxu0 0.0
  %1521 = vmatpush1.msra.mxu0 0.0
  %1522 = vmatprep.subr.mxu0 0.0
  %1523 = vmatpush1.msra.mxu0 0.0
  %1524 = vmatprep.subr.mxu0 0.0
  %1525 = vmatpush1.msra.mxu0 0.0
  %1526 = vmatprep.subr.mxu0 0.0
  %1527 = vmatpush1.msra.mxu0 0.0
  %1528 = vmatprep.subr.mxu0 0.0
  %1529 = vmatpush1.msra.mxu0 0.0
  %1530 = vmatprep.subr.mxu0 0.0
  %1531 = vmatpush1.msra.mxu0 0.0
  %1532 = vmatprep.subr.mxu0 0.0
  %1533 = vmatpush1.msra.mxu0 0.0
  %1534 = vmatprep.subr.mxu0 0.0
  %1535 = vmatpush1.msra.mxu0 0.0
  %1536 = vmatprep.subr.mxu0 0.0
  %1537 = vmatpush1.msra.mxu0 0.0
  %1538 = vmatprep.subr.mxu0 0.0
  %1539 = vmatpush1.msra.mxu0 0.0
  %1540 = vmatprep.subr.mxu0 0.0
  %1541 = vmatpush1.msra.mxu0 0.0
  %1542 = vmatprep.subr.mxu0 0.0
  %1543 = vmatpush1.msra.mxu0 0.0
  %1544 = vmatprep.subr.mxu0 0.0
  %1545 = vmatpush1.msra.mxu0 0.0
  %1546 = vmatprep.subr.mxu0 0.0
  %1547 = vmatpush1.msra.mxu0 0.0
  %1548 = vmatprep.subr.mxu0 0.0
  %1549 = vmatpush1.msra.mxu0 0.0
  %1550 = vmatprep.subr.mxu0 0.0
  %1551 = vmatpush1.msra.mxu0 0.0
  %1552 = vmatprep.subr.mxu0 0.0
  %1553 = vmatpush1.msra.mxu0 0.0
  %1554 = vmatprep.subr.mxu0 0.0
  %1555 = vmatpush1.msra.mxu0 0.0
  %1556 = vmatprep.subr.mxu0 0.0
  %1557 = vmatpush1.msra.mxu0 0.0
  %1558 = vmatprep.subr.mxu0 0.0
  %1559 = vmatpush1.msra.mxu0 0.0
  %1560 = vmatprep.subr.mxu0 0.0
  %1561 = vmatpush1.msra.mxu0 0.0
  %1562 = vmatprep.subr.mxu0 0.0
  %1563 = vmatpush1.msra.mxu0 0.0
  %1564 = vmatprep.subr.mxu0 0.0
  %1565 = vmatpush1.msra.mxu0 0.0
  %1566 = vmatprep.subr.mxu0 0.0
  %1567 = vmatpush1.msra.mxu0 0.0
  %1568 = vmatprep.subr.mxu0 0.0
  %1569 = vmatpush1.msra.mxu0 0.0
  %1570 = vmatprep.subr.mxu0 0.0
  %1571 = vmatpush1.msra.mxu0 0.0
  %1572 = vmatprep.subr.mxu0 0.0
  %1573 = vmatpush1.msra.mxu0 0.0
  %1574 = vmatprep.subr.mxu0 0.0
  %1575 = vmatpush1.msra.mxu0 0.0
  %1576 = vmatprep.subr.mxu0 0.0
  %1577 = vmatpush1.msra.mxu0 0.0
  %1578 = vmatprep.subr.mxu0 0.0
  %1579 = vmatpush1.msra.mxu0 0.0
  %1580 = vmatprep.subr.mxu0 0.0
  %1581 = vmatpush1.msra.mxu0 0.0
  %1582 = vmatprep.mubr.f32.mxu0 0.0
  %1583 = vmatmul.mubr.f32.gmra.mrb[0].mxu0 %v1516
  %v1584 = vpop.f32.mrb[0].mxu0
  %v1585 = vadd.f32 0.0, %v1584
  %v1586 = vpop.f32.mrb[0].mxu0
  %1587 = vdwg.mxu0
  %1588 = vrot.lane.b32.xlu0 %v348, 104
  %v1589 = vpop.permute.xlu0 %1588
  %v1592 = vsel %vm351, %v1511, 0
  %1594 = vmatprep.subr.mxu0 0.0
  %1595 = vmatpush1.msra.mxu0 %v1589
  %1596 = vmatprep.subr.mxu0 0.0
  %1597 = vmatpush1.msra.mxu0 0.0
  %1598 = vmatprep.subr.mxu0 0.0
  %1599 = vmatpush1.msra.mxu0 0.0
  %1600 = vmatprep.subr.mxu0 0.0
  %1601 = vmatpush1.msra.mxu0 0.0
  %1602 = vmatprep.subr.mxu0 0.0
  %1603 = vmatpush1.msra.mxu0 0.0
  %1604 = vmatprep.subr.mxu0 0.0
  %1605 = vmatpush1.msra.mxu0 0.0
  %1606 = vmatprep.subr.mxu0 0.0
  %1607 = vmatpush1.msra.mxu0 0.0
  %1608 = vmatprep.subr.mxu0 0.0
  %1609 = vmatpush1.msra.mxu0 0.0
  %1610 = vmatprep.subr.mxu0 0.0
  %1611 = vmatpush1.msra.mxu0 0.0
  %1612 = vmatprep.subr.mxu0 0.0
  %1613 = vmatpush1.msra.mxu0 0.0
  %1614 = vmatprep.subr.mxu0 0.0
  %1615 = vmatpush1.msra.mxu0 0.0
  %1616 = vmatprep.subr.mxu0 0.0
  %1617 = vmatpush1.msra.mxu0 0.0
  %1618 = vmatprep.subr.mxu0 0.0
  %1619 = vmatpush1.msra.mxu0 0.0
  %1620 = vmatprep.subr.mxu0 0.0
  %1621 = vmatpush1.msra.mxu0 0.0
  %1622 = vmatprep.subr.mxu0 0.0
  %1623 = vmatpush1.msra.mxu0 0.0
  %1624 = vmatprep.subr.mxu0 0.0
  %1625 = vmatpush1.msra.mxu0 0.0
  %1626 = vmatprep.subr.mxu0 0.0
  %1627 = vmatpush1.msra.mxu0 0.0
  %1628 = vmatprep.subr.mxu0 0.0
  %1629 = vmatpush1.msra.mxu0 0.0
  %1630 = vmatprep.subr.mxu0 0.0
  %1631 = vmatpush1.msra.mxu0 0.0
  %1632 = vmatprep.subr.mxu0 0.0
  %1633 = vmatpush1.msra.mxu0 0.0
  %1634 = vmatprep.subr.mxu0 0.0
  %1635 = vmatpush1.msra.mxu0 0.0
  %1636 = vmatprep.subr.mxu0 0.0
  %1637 = vmatpush1.msra.mxu0 0.0
  %1638 = vmatprep.subr.mxu0 0.0
  %1639 = vmatpush1.msra.mxu0 0.0
  %1640 = vmatprep.subr.mxu0 0.0
  %1641 = vmatpush1.msra.mxu0 0.0
  %1642 = vmatprep.subr.mxu0 0.0
  %1643 = vmatpush1.msra.mxu0 0.0
  %1644 = vmatprep.subr.mxu0 0.0
  %1645 = vmatpush1.msra.mxu0 0.0
  %1646 = vmatprep.subr.mxu0 0.0
  %1647 = vmatpush1.msra.mxu0 0.0
  %1648 = vmatprep.subr.mxu0 0.0
  %1649 = vmatpush1.msra.mxu0 0.0
  %1650 = vmatprep.subr.mxu0 0.0
  %1651 = vmatpush1.msra.mxu0 0.0
  %1652 = vmatprep.subr.mxu0 0.0
  %1653 = vmatpush1.msra.mxu0 0.0
  %1654 = vmatprep.subr.mxu0 0.0
  %1655 = vmatpush1.msra.mxu0 0.0
  %1656 = vmatprep.subr.mxu0 0.0
  %1657 = vmatpush1.msra.mxu0 0.0
  %1658 = vmatprep.mubr.f32.mxu0 0.0
  %1659 = vmatmul.mubr.f32.gmra.mrb[0].mxu0 %v1592
  %v1660 = vpop.f32.mrb[0].mxu0
  %v1661 = vadd.f32 0.0, %v1660
  %v1662 = vpop.f32.mrb[0].mxu0
  %1663 = vdwg.mxu0
  %1666 = vrot.lane.b32.xlu0 %v924, 8
  %v1667 = vpop.permute.xlu0 %1666
  %1668 = vrot.lane.b32.xlu0 %v1001, 8
  %v1669 = vpop.permute.xlu0 %1668
  %1674 = vrot.lane.b32.xlu0 %v1255, 16
  %v1675 = vpop.permute.xlu0 %1674
  %1676 = vrot.lane.b32.xlu0 %v1331, 16
  %v1677 = vpop.permute.xlu0 %1676
  %1682 = vrot.lane.b32.xlu0 %v1585, 24
  %v1683 = vpop.permute.xlu0 %1682
  %1684 = vrot.lane.b32.xlu0 %v1661, 24
  %v1685 = vpop.permute.xlu0 %1684
  %v1688 = vsel %vm351, %v596, %v1667
  %v1689 = vsel %vm351, %v669, %v1669
  %vm1690 = vcmask 130048
  %v1691 = vsel %vm1690, %v1688, %v1675
  %v1692 = vsel %vm1690, %v1689, %v1677
  %vm1693 = vcmask 195584
  %v1694 = vsel %vm1693, %v1691, %v1683
  %v1695 = vsel %vm1693, %v1692, %v1685
  %v1696 = vpack.c.bf16 %v1695, %v1694
  %v1697 = vld [vmem:[%s2 + $0x30] sm:$0xf]
  %v1698 = vld [vmem:[%s2 + $0x34] sm:$0xf]
  %v1699 = vld [vmem:[%s2 + $0x38] sm:$0xf]
  %v1700 = vld [vmem:[%s2 + $0x3c] sm:$0xf]
  %v1701 = vld [vmem:[%s3 + $0x3] sm:$0x1]
  %v1702 = vlaneseq
  %v1703 = vshrl.u32 %v1702, 7
  %v1704 = vsub.s32 0, %v1703
  %v1705 = vrot.slane %v1701, %v1704
  %v1710 = vunpack.c.l.b16 %v1697
  %v1711 = vunpack.c.l.b16 %v1698
  %v1712 = vunpack.c.l.b16 %v1699
  %v1713 = vunpack.c.l.b16 %v1700
  %v1714 = vpack.c.b16 %v1711, %v1710
  %v1715 = vpack.c.b16 %v1713, %v1712
  %v1719 = vsel %vm180, %v1696, 0
  %1721 = vmatprep.subr.bf16.mxu0 0
  %1722 = vmatpush1.bf16.msra.mxu0 %v1714
  %1723 = vmatprep.subr.bf16.mxu0 0
  %1724 = vmatpush1.bf16.msra.mxu0 %v1715
  %1725 = vmatprep.subr.bf16.mxu0 0
  %1726 = vmatpush1.bf16.msra.mxu0 0
  %1727 = vmatprep.subr.bf16.mxu0 0
  %1728 = vmatpush1.bf16.msra.mxu0 0
  %1729 = vmatprep.subr.bf16.mxu0 0
  %1730 = vmatpush1.bf16.msra.mxu0 0
  %1731 = vmatprep.subr.bf16.mxu0 0
  %1732 = vmatpush1.bf16.msra.mxu0 0
  %1733 = vmatprep.subr.bf16.mxu0 0
  %1734 = vmatpush1.bf16.msra.mxu0 0
  %1735 = vmatprep.subr.bf16.mxu0 0
  %1736 = vmatpush1.bf16.msra.mxu0 0
  %1737 = vmatprep.subr.bf16.mxu0 0
  %1738 = vmatpush1.bf16.msra.mxu0 0
  %1739 = vmatprep.subr.bf16.mxu0 0
  %1740 = vmatpush1.bf16.msra.mxu0 0
  %1741 = vmatprep.subr.bf16.mxu0 0
  %1742 = vmatpush1.bf16.msra.mxu0 0
  %1743 = vmatprep.subr.bf16.mxu0 0
  %1744 = vmatpush1.bf16.msra.mxu0 0
  %1745 = vmatprep.subr.bf16.mxu0 0
  %1746 = vmatpush1.bf16.msra.mxu0 0
  %1747 = vmatprep.subr.bf16.mxu0 0
  %1748 = vmatpush1.bf16.msra.mxu0 0
  %1749 = vmatprep.subr.bf16.mxu0 0
  %1750 = vmatpush1.bf16.msra.mxu0 0
  %1751 = vmatprep.subr.bf16.mxu0 0
  %1752 = vmatpush1.bf16.msra.mxu0 0
  %1753 = vmatprep.mubr.bf16.mxu0 0
  %1754 = vmatmul.mubr.bf16.gmra.mrb[0].mxu0 %v1719
  %v1755 = vpop.f32.mrb[0].mxu0
  %v1756 = vadd.f32 %v1705, %v1755
  %v1757 = vpop.f32.mrb[0].mxu0
  %v1758 = vpop.f32.mrb[0].mxu0
  %v1759 = vadd.f32 %v1705, %v1758
  %v1760 = vpop.f32.mrb[0].mxu0
  %1761 = vdwg.mxu0
  %v1762 = vadd.f32 %v150, %v1756
  %v1763 = vadd.f32 %v155, %v1759
  %v1764 = vld [vmem:[%s3 + $0x4] sm:$0x1]
  %v1765 = vld [vmem:[%s3 + $0x5] sm:$0x1]
  %v1766 = vsel %vm180, %v1762, 0.0
  %1767 = vadd.xlane.f32.xlu0 %v1766
  %v1768 = vpop.xlane.xlu0 %1767
  %v1769 = vsel %vm180, %v1763, 0.0
  %1770 = vadd.xlane.f32.xlu0 %v1769
  %v1771 = vpop.xlane.xlu0 %1770
  %v1772 = vrcp.pop 32.0
  %v1773 = vmul.f32 %v1768, %v1772
  %v1774 = vmul.f32 %v1771, %v1772
  %v1775 = vsub.f32 %v1762, %v1773
  %v1776 = vsub.f32 %v1763, %v1774
  %v1777 = vmul.f32 %v1775, %v1775
  %v1778 = vmul.f32 %v1776, %v1776
  %v1779 = vsel %vm180, %v1777, 0.0
  %1780 = vadd.xlane.f32.xlu0 %v1779
  %v1781 = vpop.xlane.xlu0 %1780
  %v1782 = vsel %vm180, %v1778, 0.0
  %1783 = vadd.xlane.f32.xlu0 %v1782
  %v1784 = vpop.xlane.xlu0 %1783
  %v1785 = vmul.f32 %v1781, %v1772
  %v1786 = vmul.f32 %v1784, %v1772
  %v1787 = vadd.f32 %v1785, 1e-05
  %v1788 = vadd.f32 %v1786, 1e-05
  %v1789 = vrsqrt.pop %v1787
  %v1790 = vrsqrt.pop %v1788
  %v1791 = vmul.f32 %v1775, %v1789
  %v1792 = vmul.f32 %v1776, %v1790
  %v1793 = vlaneseq
  %v1794 = vshrl.u32 %v1793, 7
  %v1795 = vsub.s32 0, %v1794
  %v1796 = vrot.slane %v1764, %v1795
  %v1797 = vmul.f32 %v1791, %v1796
  %v1798 = vmul.f32 %v1792, %v1796
  %v1799 = vlaneseq
  %v1800 = vshrl.u32 %v1799, 7
  %v1801 = vsub.s32 0, %v1800
  %v1802 = vrot.slane %v1765, %v1801
  %v1803 = vadd.f32 %v1797, %v1802
  %v1804 = vadd.f32 %v1798, %v1802
  %v1805 = vpack.c.bf16 %v1804, %v1803
  %v1806 = vld [vmem:[%s2 + $0x40] sm:$0xf]
  %v1807 = vld [vmem:[%s2 + $0x44] sm:$0xf]
  %v1808 = vld [vmem:[%s2 + $0x48] sm:$0xf]
  %v1809 = vld [vmem:[%s2 + $0x4c] sm:$0xf]
  %v1810 = vld [vmem:[%s3 + $0x9] sm:$0x1]
  %v1811 = vlaneseq
  %v1812 = vshrl.u32 %v1811, 7
  %v1813 = vsub.s32 0, %v1812
  %v1814 = vrot.slane %v1810, %v1813
  %v1819 = vunpack.c.l.b16 %v1806
  %v1820 = vunpack.c.l.b16 %v1807
  %v1821 = vunpack.c.l.b16 %v1808
  %v1822 = vunpack.c.l.b16 %v1809
  %v1823 = vpack.c.b16 %v1820, %v1819
  %v1824 = vpack.c.b16 %v1822, %v1821
  %v1828 = vsel %vm180, %v1805, 0
  %1830 = vmatprep.subr.bf16.mxu0 0
  %1831 = vmatpush1.bf16.msra.mxu0 %v1823
  %1832 = vmatprep.subr.bf16.mxu0 0
  %1833 = vmatpush1.bf16.msra.mxu0 %v1824
  %1834 = vmatprep.subr.bf16.mxu0 0
  %1835 = vmatpush1.bf16.msra.mxu0 0
  %1836 = vmatprep.subr.bf16.mxu0 0
  %1837 = vmatpush1.bf16.msra.mxu0 0
  %1838 = vmatprep.subr.bf16.mxu0 0
  %1839 = vmatpush1.bf16.msra.mxu0 0
  %1840 = vmatprep.subr.bf16.mxu0 0
  %1841 = vmatpush1.bf16.msra.mxu0 0
  %1842 = vmatprep.subr.bf16.mxu0 0
  %1843 = vmatpush1.bf16.msra.mxu0 0
  %1844 = vmatprep.subr.bf16.mxu0 0
  %1845 = vmatpush1.bf16.msra.mxu0 0
  %1846 = vmatprep.subr.bf16.mxu0 0
  %1847 = vmatpush1.bf16.msra.mxu0 0
  %1848 = vmatprep.subr.bf16.mxu0 0
  %1849 = vmatpush1.bf16.msra.mxu0 0
  %1850 = vmatprep.subr.bf16.mxu0 0
  %1851 = vmatpush1.bf16.msra.mxu0 0
  %1852 = vmatprep.subr.bf16.mxu0 0
  %1853 = vmatpush1.bf16.msra.mxu0 0
  %1854 = vmatprep.subr.bf16.mxu0 0
  %1855 = vmatpush1.bf16.msra.mxu0 0
  %1856 = vmatprep.subr.bf16.mxu0 0
  %1857 = vmatpush1.bf16.msra.mxu0 0
  %1858 = vmatprep.subr.bf16.mxu0 0
  %1859 = vmatpush1.bf16.msra.mxu0 0
  %1860 = vmatprep.subr.bf16.mxu0 0
  %1861 = vmatpush1.bf16.msra.mxu0 0
  %1862 = vmatprep.mubr.bf16.mxu0 0
  %1863 = vmatmul.mubr.bf16.gmra.mrb[0].mxu0 %v1828
  %v1864 = vpop.f32.mrb[0].mxu0
  %v1865 = vadd.f32 %v1814, %v1864
  %v1866 = vpop.f32.mrb[0].mxu0
  %v1867 = vpop.f32.mrb[0].mxu0
  %v1868 = vadd.f32 %v1814, %v1867
  %v1869 = vpop.f32.mrb[0].mxu0
  %1870 = vdwg.mxu0
  %v1871 = vmax.f32 %v1865, 0.0
  %v1872 = vmax.f32 %v1868, 0.0
  %v1873 = vpack.c.bf16 %v1872, %v1871
  %v1874 = vld [vmem:[%s2 + $0x50] sm:$0xf]
  %v1875 = vld [vmem:[%s2 + $0x54] sm:$0xf]
  %v1876 = vld [vmem:[%s2 + $0x58] sm:$0xf]
  %v1877 = vld [vmem:[%s2 + $0x5c] sm:$0xf]
  %v1878 = vld [vmem:[%s2 + $0x60] sm:$0xf]
  %v1879 = vld [vmem:[%s2 + $0x64] sm:$0xf]
  %v1880 = vld [vmem:[%s2 + $0x68] sm:$0xf]
  %v1881 = vld [vmem:[%s2 + $0x6c] sm:$0xf]
  %v1882 = vld [vmem:[%s3 + $0x8] sm:$0x1]
  %v1883 = vlaneseq
  %v1884 = vshrl.u32 %v1883, 7
  %v1885 = vsub.s32 0, %v1884
  %v1886 = vrot.slane %v1882, %v1885
  %v1895 = vunpack.c.l.b16 %v1874
  %v1896 = vunpack.c.l.b16 %v1875
  %v1897 = vunpack.c.l.b16 %v1876
  %v1898 = vunpack.c.l.b16 %v1877
  %v1899 = vunpack.c.l.b16 %v1878
  %v1900 = vunpack.c.l.b16 %v1879
  %v1901 = vunpack.c.l.b16 %v1880
  %v1902 = vunpack.c.l.b16 %v1881
  %v1903 = vpack.c.b16 %v1896, %v1895
  %v1904 = vpack.c.b16 %v1898, %v1897
  %v1905 = vpack.c.b16 %v1900, %v1899
  %v1906 = vpack.c.b16 %v1902, %v1901
  %vm1911 = vcmask 523264
  %v1913 = vsel %vm1911, %v1873, 0
  %1915 = vmatprep.subr.bf16.mxu0 0
  %1916 = vmatpush1.bf16.msra.mxu0 %v1903
  %1917 = vmatprep.subr.bf16.mxu0 0
  %1918 = vmatpush1.bf16.msra.mxu0 %v1904
  %1919 = vmatprep.subr.bf16.mxu0 0
  %1920 = vmatpush1.bf16.msra.mxu0 %v1905
  %1921 = vmatprep.subr.bf16.mxu0 0
  %1922 = vmatpush1.bf16.msra.mxu0 %v1906
  %1923 = vmatprep.subr.bf16.mxu0 0
  %1924 = vmatpush1.bf16.msra.mxu0 0
  %1925 = vmatprep.subr.bf16.mxu0 0
  %1926 = vmatpush1.bf16.msra.mxu0 0
  %1927 = vmatprep.subr.bf16.mxu0 0
  %1928 = vmatpush1.bf16.msra.mxu0 0
  %1929 = vmatprep.subr.bf16.mxu0 0
  %1930 = vmatpush1.bf16.msra.mxu0 0
  %1931 = vmatprep.subr.bf16.mxu0 0
  %1932 = vmatpush1.bf16.msra.mxu0 0
  %1933 = vmatprep.subr.bf16.mxu0 0
  %1934 = vmatpush1.bf16.msra.mxu0 0
  %1935 = vmatprep.subr.bf16.mxu0 0
  %1936 = vmatpush1.bf16.msra.mxu0 0
  %1937 = vmatprep.subr.bf16.mxu0 0
  %1938 = vmatpush1.bf16.msra.mxu0 0
  %1939 = vmatprep.subr.bf16.mxu0 0
  %1940 = vmatpush1.bf16.msra.mxu0 0
  %1941 = vmatprep.subr.bf16.mxu0 0
  %1942 = vmatpush1.bf16.msra.mxu0 0
  %1943 = vmatprep.subr.bf16.mxu0 0
  %1944 = vmatpush1.bf16.msra.mxu0 0
  %1945 = vmatprep.subr.bf16.mxu0 0
  %1946 = vmatpush1.bf16.msra.mxu0 0
  %1947 = vmatprep.mubr.bf16.mxu0 0
  %1948 = vmatmul.mubr.bf16.gmra.mrb[0].mxu0 %v1913
  %v1949 = vpop.f32.mrb[0].mxu0
  %v1950 = vadd.f32 %v1886, %v1949
  %v1951 = vpop.f32.mrb[0].mxu0
  %v1952 = vpop.f32.mrb[0].mxu0
  %v1953 = vadd.f32 %v1886, %v1952
  %v1954 = vpop.f32.mrb[0].mxu0
  %1955 = vdwg.mxu0
  %v1956 = vadd.f32 %v1803, %v1950
  %v1957 = vadd.f32 %v1804, %v1953
  %v1958 = vld [vmem:[%s3 + $0x6] sm:$0x1]
  %v1959 = vld [vmem:[%s3 + $0x7] sm:$0x1]
  %v1960 = vsel %vm180, %v1956, 0.0
  %1961 = vadd.xlane.f32.xlu0 %v1960
  %v1962 = vpop.xlane.xlu0 %1961
  %v1963 = vsel %vm180, %v1957, 0.0
  %1964 = vadd.xlane.f32.xlu0 %v1963
  %v1965 = vpop.xlane.xlu0 %1964
  %v1966 = vmul.f32 %v1962, %v1772
  %v1967 = vmul.f32 %v1965, %v1772
  %v1968 = vsub.f32 %v1956, %v1966
  %v1969 = vsub.f32 %v1957, %v1967
  %v1970 = vmul.f32 %v1968, %v1968
  %v1971 = vmul.f32 %v1969, %v1969
  %v1972 = vsel %vm180, %v1970, 0.0
  %1973 = vadd.xlane.f32.xlu0 %v1972
  %v1974 = vpop.xlane.xlu0 %1973
  %v1975 = vsel %vm180, %v1971, 0.0
  %1976 = vadd.xlane.f32.xlu0 %v1975
  %v1977 = vpop.xlane.xlu0 %1976
  %v1978 = vmul.f32 %v1974, %v1772
  %v1979 = vmul.f32 %v1977, %v1772
  %v1980 = vadd.f32 %v1978, 1e-05
  %v1981 = vadd.f32 %v1979, 1e-05
  %v1982 = vrsqrt.pop %v1980
  %v1983 = vrsqrt.pop %v1981
  %v1984 = vmul.f32 %v1968, %v1982
  %v1985 = vmul.f32 %v1969, %v1983
  %v1986 = vlaneseq
  %v1987 = vshrl.u32 %v1986, 7
  %v1988 = vsub.s32 0, %v1987
  %v1989 = vrot.slane %v1958, %v1988
  %v1990 = vmul.f32 %v1984, %v1989
  %v1991 = vmul.f32 %v1985, %v1989
  %v1992 = vlaneseq
  %v1993 = vshrl.u32 %v1992, 7
  %v1994 = vsub.s32 0, %v1993
  %v1995 = vrot.slane %v1959, %v1994
  %v1996 = vadd.f32 %v1990, %v1995
  %v1997 = vadd.f32 %v1991, %v1995
  %v1998 = vpack.c.bf16 %v1997, %v1996
  %v1999 = vld [vmem:[%s2 + $0x70] sm:$0xf]
  %v2000 = vld [vmem:[%s2 + $0x74] sm:$0xf]
  %v2001 = vld [vmem:[%s2 + $0x78] sm:$0xf]
  %v2002 = vld [vmem:[%s2 + $0x7c] sm:$0xf]
  %v2003 = vld [vmem:[%s3 + $0xa] sm:$0x1]
  %v2004 = vlaneseq
  %v2005 = vshrl.u32 %v2004, 7
  %v2006 = vsub.s32 0, %v2005
  %v2007 = vrot.slane %v2003, %v2006
  %v2012 = vunpack.c.l.b16 %v1999
  %v2013 = vunpack.c.l.b16 %v2000
  %v2014 = vunpack.c.l.b16 %v2001
  %v2015 = vunpack.c.l.b16 %v2002
  %v2016 = vpack.c.b16 %v2013, %v2012
  %v2017 = vpack.c.b16 %v2015, %v2014
  %v2021 = vsel %vm180, %v1998, 0
  %2023 = vmatprep.subr.bf16.mxu0 0
  %2024 = vmatpush1.bf16.msra.mxu0 %v2016
  %2025 = vmatprep.subr.bf16.mxu0 0
  %2026 = vmatpush1.bf16.msra.mxu0 %v2017
  %2027 = vmatprep.subr.bf16.mxu0 0
  %2028 = vmatpush1.bf16.msra.mxu0 0
  %2029 = vmatprep.subr.bf16.mxu0 0
  %2030 = vmatpush1.bf16.msra.mxu0 0
  %2031 = vmatprep.subr.bf16.mxu0 0
  %2032 = vmatpush1.bf16.msra.mxu0 0
  %2033 = vmatprep.subr.bf16.mxu0 0
  %2034 = vmatpush1.bf16.msra.mxu0 0
  %2035 = vmatprep.subr.bf16.mxu0 0
  %2036 = vmatpush1.bf16.msra.mxu0 0
  %2037 = vmatprep.subr.bf16.mxu0 0
  %2038 = vmatpush1.bf16.msra.mxu0 0
  %2039 = vmatprep.subr.bf16.mxu0 0
  %2040 = vmatpush1.bf16.msra.mxu0 0
  %2041 = vmatprep.subr.bf16.mxu0 0
  %2042 = vmatpush1.bf16.msra.mxu0 0
  %2043 = vmatprep.subr.bf16.mxu0 0
  %2044 = vmatpush1.bf16.msra.mxu0 0
  %2045 = vmatprep.subr.bf16.mxu0 0
  %2046 = vmatpush1.bf16.msra.mxu0 0
  %2047 = vmatprep.subr.bf16.mxu0 0
  %2048 = vmatpush1.bf16.msra.mxu0 0
  %2049 = vmatprep.subr.bf16.mxu0 0
  %2050 = vmatpush1.bf16.msra.mxu0 0
  %2051 = vmatprep.subr.bf16.mxu0 0
  %2052 = vmatpush1.bf16.msra.mxu0 0
  %2053 = vmatprep.subr.bf16.mxu0 0
  %2054 = vmatpush1.bf16.msra.mxu0 0
  %2055 = vmatprep.mubr.bf16.mxu0 0
  %2056 = vmatmul.mubr.bf16.gmra.mrb[0].mxu0 %v2021
  %v2057 = vpop.f32.mrb[0].mxu0
  %v2058 = vadd.f32 %v2007, %v2057
  %v2059 = vpop.f32.mrb[0].mxu0
  %v2060 = vpop.f32.mrb[0].mxu0
  %v2061 = vadd.f32 %v2007, %v2060
  %v2062 = vpop.f32.mrb[0].mxu0
  %2063 = vdwg.mxu0
  %v2064 = vmul.f32 %v2058, 0.35355338
  %v2065 = vmul.f32 %v2061, 0.35355338
  %v2066 = vld [vmem:[%s2 + $0x80] sm:$0xf]
  %v2067 = vld [vmem:[%s2 + $0x84] sm:$0xf]
  %v2068 = vld [vmem:[%s2 + $0x88] sm:$0xf]
  %v2069 = vld [vmem:[%s2 + $0x8c] sm:$0xf]
  %v2070 = vld [vmem:[%s3 + $0xb] sm:$0x1]
  %v2071 = vlaneseq
  %v2072 = vshrl.u32 %v2071, 7
  %v2073 = vsub.s32 0, %v2072
  %v2074 = vrot.slane %v2070, %v2073
  %v2079 = vunpack.c.l.b16 %v2066
  %v2080 = vunpack.c.l.b16 %v2067
  %v2081 = vunpack.c.l.b16 %v2068
  %v2082 = vunpack.c.l.b16 %v2069
  %v2083 = vpack.c.b16 %v2080, %v2079
  %v2084 = vpack.c.b16 %v2082, %v2081
  %2087 = vmatprep.subr.bf16.mxu0 0
  %2088 = vmatpush1.bf16.msra.mxu0 %v2083
  %2089 = vmatprep.subr.bf16.mxu0 0
  %2090 = vmatpush1.bf16.msra.mxu0 %v2084
  %2091 = vmatprep.subr.bf16.mxu0 0
  %2092 = vmatpush1.bf16.msra.mxu0 0
  %2093 = vmatprep.subr.bf16.mxu0 0
  %2094 = vmatpush1.bf16.msra.mxu0 0
  %2095 = vmatprep.subr.bf16.mxu0 0
  %2096 = vmatpush1.bf16.msra.mxu0 0
  %2097 = vmatprep.subr.bf16.mxu0 0
  %2098 = vmatpush1.bf16.msra.mxu0 0
  %2099 = vmatprep.subr.bf16.mxu0 0
  %2100 = vmatpush1.bf16.msra.mxu0 0
  %2101 = vmatprep.subr.bf16.mxu0 0
  %2102 = vmatpush1.bf16.msra.mxu0 0
  %2103 = vmatprep.subr.bf16.mxu0 0
  %2104 = vmatpush1.bf16.msra.mxu0 0
  %2105 = vmatprep.subr.bf16.mxu0 0
  %2106 = vmatpush1.bf16.msra.mxu0 0
  %2107 = vmatprep.subr.bf16.mxu0 0
  %2108 = vmatpush1.bf16.msra.mxu0 0
  %2109 = vmatprep.subr.bf16.mxu0 0
  %2110 = vmatpush1.bf16.msra.mxu0 0
  %2111 = vmatprep.subr.bf16.mxu0 0
  %2112 = vmatpush1.bf16.msra.mxu0 0
  %2113 = vmatprep.subr.bf16.mxu0 0
  %2114 = vmatpush1.bf16.msra.mxu0 0
  %2115 = vmatprep.subr.bf16.mxu0 0
  %2116 = vmatpush1.bf16.msra.mxu0 0
  %2117 = vmatprep.subr.bf16.mxu0 0
  %2118 = vmatpush1.bf16.msra.mxu0 0
  %2119 = vmatprep.mubr.bf16.mxu0 0
  %2120 = vmatmul.mubr.bf16.gmra.mrb[0].mxu0 %v2021
  %v2121 = vpop.f32.mrb[0].mxu0
  %v2122 = vadd.f32 %v2074, %v2121
  %v2123 = vpop.f32.mrb[0].mxu0
  %v2124 = vpop.f32.mrb[0].mxu0
  %v2125 = vadd.f32 %v2074, %v2124
  %v2126 = vpop.f32.mrb[0].mxu0
  %2127 = vdwg.mxu0
  %v2128 = vld [vmem:[%s2 + $0x90] sm:$0xf]
  %v2129 = vld [vmem:[%s2 + $0x94] sm:$0xf]
  %v2130 = vld [vmem:[%s2 + $0x98] sm:$0xf]
  %v2131 = vld [vmem:[%s2 + $0x9c] sm:$0xf]
  %v2132 = vld [vmem:[%s3 + $0xc] sm:$0x1]
  %v2133 = vlaneseq
  %v2134 = vshrl.u32 %v2133, 7
  %v2135 = vsub.s32 0, %v2134
  %v2136 = vrot.slane %v2132, %v2135
  %v2141 = vunpack.c.l.b16 %v2128
  %v2142 = vunpack.c.l.b16 %v2129
  %v2143 = vunpack.c.l.b16 %v2130
  %v2144 = vunpack.c.l.b16 %v2131
  %v2145 = vpack.c.b16 %v2142, %v2141
  %v2146 = vpack.c.b16 %v2144, %v2143
  %2149 = vmatprep.subr.bf16.mxu0 0
  %2150 = vmatpush1.bf16.msra.mxu0 %v2145
  %2151 = vmatprep.subr.bf16.mxu0 0
  %2152 = vmatpush1.bf16.msra.mxu0 %v2146
  %2153 = vmatprep.subr.bf16.mxu0 0
  %2154 = vmatpush1.bf16.msra.mxu0 0
  %2155 = vmatprep.subr.bf16.mxu0 0
  %2156 = vmatpush1.bf16.msra.mxu0 0
  %2157 = vmatprep.subr.bf16.mxu0 0
  %2158 = vmatpush1.bf16.msra.mxu0 0
  %2159 = vmatprep.subr.bf16.mxu0 0
  %2160 = vmatpush1.bf16.msra.mxu0 0
  %2161 = vmatprep.subr.bf16.mxu0 0
  %2162 = vmatpush1.bf16.msra.mxu0 0
  %2163 = vmatprep.subr.bf16.mxu0 0
  %2164 = vmatpush1.bf16.msra.mxu0 0
  %2165 = vmatprep.subr.bf16.mxu0 0
  %2166 = vmatpush1.bf16.msra.mxu0 0
  %2167 = vmatprep.subr.bf16.mxu0 0
  %2168 = vmatpush1.bf16.msra.mxu0 0
  %2169 = vmatprep.subr.bf16.mxu0 0
  %2170 = vmatpush1.bf16.msra.mxu0 0
  %2171 = vmatprep.subr.bf16.mxu0 0
  %2172 = vmatpush1.bf16.msra.mxu0 0
  %2173 = vmatprep.subr.bf16.mxu0 0
  %2174 = vmatpush1.bf16.msra.mxu0 0
  %2175 = vmatprep.subr.bf16.mxu0 0
  %2176 = vmatpush1.bf16.msra.mxu0 0
  %2177 = vmatprep.subr.bf16.mxu0 0
  %2178 = vmatpush1.bf16.msra.mxu0 0
  %2179 = vmatprep.subr.bf16.mxu0 0
  %2180 = vmatpush1.bf16.msra.mxu0 0
  %2181 = vmatprep.mubr.bf16.mxu0 0
  %2182 = vmatmul.mubr.bf16.gmra.mrb[0].mxu0 %v2021
  %v2183 = vpop.f32.mrb[0].mxu0
  %v2184 = vadd.f32 %v2136, %v2183
  %v2185 = vpop.f32.mrb[0].mxu0
  %v2186 = vpop.f32.mrb[0].mxu0
  %v2187 = vadd.f32 %v2136, %v2186
  %v2188 = vpop.f32.mrb[0].mxu0
  %2189 = vdwg.mxu0
  %v2191 = vsel %vm351, %v2064, 0
  %v2194 = vsel %vm351, %v2122, 0
  %2196 = vmatprep.subr.mxu0 0.0
  %2197 = vmatpush1.xpose.msra.mxu0 %v2194
  %2198 = vmatprep.subr.mxu0 0.0
  %2199 = vmatpush1.xpose.msra.mxu0 0.0
  %2200 = vmatprep.subr.mxu0 0.0
  %2201 = vmatpush1.xpose.msra.mxu0 0.0
  %2202 = vmatprep.subr.mxu0 0.0
  %2203 = vmatpush1.xpose.msra.mxu0 0.0
  %2204 = vmatprep.subr.mxu0 0.0
  %2205 = vmatpush1.xpose.msra.mxu0 0.0
  %2206 = vmatprep.subr.mxu0 0.0
  %2207 = vmatpush1.xpose.msra.mxu0 0.0
  %2208 = vmatprep.subr.mxu0 0.0
  %2209 = vmatpush1.xpose.msra.mxu0 0.0
  %2210 = vmatprep.subr.mxu0 0.0
  %2211 = vmatpush1.xpose.msra.mxu0 0.0
  %2212 = vmatprep.subr.mxu0 0.0
  %2213 = vmatpush1.xpose.msra.mxu0 0.0
  %2214 = vmatprep.subr.mxu0 0.0
  %2215 = vmatpush1.xpose.msra.mxu0 0.0
  %2216 = vmatprep.subr.mxu0 0.0
  %2217 = vmatpush1.xpose.msra.mxu0 0.0
  %2218 = vmatprep.subr.mxu0 0.0
  %2219 = vmatpush1.xpose.msra.mxu0 0.0
  %2220 = vmatprep.subr.mxu0 0.0
  %2221 = vmatpush1.xpose.msra.mxu0 0.0
  %2222 = vmatprep.subr.mxu0 0.0
  %2223 = vmatpush1.xpose.msra.mxu0 0.0
  %2224 = vmatprep.subr.mxu0 0.0
  %2225 = vmatpush1.xpose.msra.mxu0 0.0
  %2226 = vmatprep.subr.mxu0 0.0
  %2227 = vmatpush1.xpose.msra.mxu0 0.0
  %2228 = vmatprep.subr.mxu0 0.0
  %2229 = vmatpush1.xpose.msra.mxu0 0.0
  %2230 = vmatprep.subr.mxu0 0.0
  %2231 = vmatpush1.xpose.msra.mxu0 0.0
  %2232 = vmatprep.subr.mxu0 0.0
  %2233 = vmatpush1.xpose.msra.mxu0 0.0
  %2234 = vmatprep.subr.mxu0 0.0
  %2235 = vmatpush1.xpose.msra.mxu0 0.0
  %2236 = vmatprep.subr.mxu0 0.0
  %2237 = vmatpush1.xpose.msra.mxu0 0.0
  %2238 = vmatprep.subr.mxu0 0.0
  %2239 = vmatpush1.xpose.msra.mxu0 0.0
  %2240 = vmatprep.subr.mxu0 0.0
  %2241 = vmatpush1.xpose.msra.mxu0 0.0
  %2242 = vmatprep.subr.mxu0 0.0
  %2243 = vmatpush1.xpose.msra.mxu0 0.0
  %2244 = vmatprep.subr.mxu0 0.0
  %2245 = vmatpush1.xpose.msra.mxu0 0.0
  %2246 = vmatprep.subr.mxu0 0.0
  %2247 = vmatpush1.xpose.msra.mxu0 0.0
  %2248 = vmatprep.subr.mxu0 0.0
  %2249 = vmatpush1.xpose.msra.mxu0 0.0
  %2250 = vmatprep.subr.mxu0 0.0
  %2251 = vmatpush1.xpose.msra.mxu0 0.0
  %2252 = vmatprep.subr.mxu0 0.0
  %2253 = vmatpush1.xpose.msra.mxu0 0.0
  %2254 = vmatprep.subr.mxu0 0.0
  %2255 = vmatpush1.xpose.msra.mxu0 0.0
  %2256 = vmatprep.subr.mxu0 0.0
  %2257 = vmatpush1.xpose.msra.mxu0 0.0
  %2258 = vmatprep.subr.mxu0 0.0
  %2259 = vmatpush1.xpose.msra.mxu0 0.0
  %2260 = vmatprep.mubr.f32.mxu0 0.0
  %2261 = vmatmul.mubr.f32.gmra.mrb[0].mxu0 %v2191
  %v2262 = vpop.f32.mrb[0].mxu0
  %v2263 = vadd.f32 0.0, %v2262
  %v2264 = vpop.f32.mrb[0].mxu0
  %2265 = vdwg.mxu0
  %v2267 = vsel %vm351, %v2065, 0
  %v2270 = vsel %vm351, %v2125, 0
  %2272 = vmatprep.subr.mxu0 0.0
  %2273 = vmatpush1.xpose.msra.mxu0 %v2270
  %2274 = vmatprep.subr.mxu0 0.0
  %2275 = vmatpush1.xpose.msra.mxu0 0.0
  %2276 = vmatprep.subr.mxu0 0.0
  %2277 = vmatpush1.xpose.msra.mxu0 0.0
  %2278 = vmatprep.subr.mxu0 0.0
  %2279 = vmatpush1.xpose.msra.mxu0 0.0
  %2280 = vmatprep.subr.mxu0 0.0
  %2281 = vmatpush1.xpose.msra.mxu0 0.0
  %2282 = vmatprep.subr.mxu0 0.0
  %2283 = vmatpush1.xpose.msra.mxu0 0.0
  %2284 = vmatprep.subr.mxu0 0.0
  %2285 = vmatpush1.xpose.msra.mxu0 0.0
  %2286 = vmatprep.subr.mxu0 0.0
  %2287 = vmatpush1.xpose.msra.mxu0 0.0
  %2288 = vmatprep.subr.mxu0 0.0
  %2289 = vmatpush1.xpose.msra.mxu0 0.0
  %2290 = vmatprep.subr.mxu0 0.0
  %2291 = vmatpush1.xpose.msra.mxu0 0.0
  %2292 = vmatprep.subr.mxu0 0.0
  %2293 = vmatpush1.xpose.msra.mxu0 0.0
  %2294 = vmatprep.subr.mxu0 0.0
  %2295 = vmatpush1.xpose.msra.mxu0 0.0
  %2296 = vmatprep.subr.mxu0 0.0
  %2297 = vmatpush1.xpose.msra.mxu0 0.0
  %2298 = vmatprep.subr.mxu0 0.0
  %2299 = vmatpush1.xpose.msra.mxu0 0.0
  %2300 = vmatprep.subr.mxu0 0.0
  %2301 = vmatpush1.xpose.msra.mxu0 0.0
  %2302 = vmatprep.subr.mxu0 0.0
  %2303 = vmatpush1.xpose.msra.mxu0 0.0
  %2304 = vmatprep.subr.mxu0 0.0
  %2305 = vmatpush1.xpose.msra.mxu0 0.0
  %2306 = vmatprep.subr.mxu0 0.0
  %2307 = vmatpush1.xpose.msra.mxu0 0.0
  %2308 = vmatprep.subr.mxu0 0.0
  %2309 = vmatpush1.xpose.msra.mxu0 0.0
  %2310 = vmatprep.subr.mxu0 0.0
  %2311 = vmatpush1.xpose.msra.mxu0 0.0
  %2312 = vmatprep.subr.mxu0 0.0
  %2313 = vmatpush1.xpose.msra.mxu0 0.0
  %2314 = vmatprep.subr.mxu0 0.0
  %2315 = vmatpush1.xpose.msra.mxu0 0.0
  %2316 = vmatprep.subr.mxu0 0.0
  %2317 = vmatpush1.xpose.msra.mxu0 0.0
  %2318 = vmatprep.subr.mxu0 0.0
  %2319 = vmatpush1.xpose.msra.mxu0 0.0
  %2320 = vmatprep.subr.mxu0 0.0
  %2321 = vmatpush1.xpose.msra.mxu0 0.0
  %2322 = vmatprep.subr.mxu0 0.0
  %2323 = vmatpush1.xpose.msra.mxu0 0.0
  %2324 = vmatprep.subr.mxu0 0.0
  %2325 = vmatpush1.xpose.msra.mxu0 0.0
  %2326 = vmatprep.subr.mxu0 0.0
  %2327 = vmatpush1.xpose.msra.mxu0 0.0
  %2328 = vmatprep.subr.mxu0 0.0
  %2329 = vmatpush1.xpose.msra.mxu0 0.0
  %2330 = vmatprep.subr.mxu0 0.0
  %2331 = vmatpush1.xpose.msra.mxu0 0.0
  %2332 = vmatprep.subr.mxu0 0.0
  %2333 = vmatpush1.xpose.msra.mxu0 0.0
  %2334 = vmatprep.subr.mxu0 0.0
  %2335 = vmatpush1.xpose.msra.mxu0 0.0
  %2336 = vmatprep.mubr.f32.mxu0 0.0
  %2337 = vmatmul.mubr.f32.gmra.mrb[0].mxu0 %v2267
  %v2338 = vpop.f32.mrb[0].mxu0
  %v2339 = vadd.f32 0.0, %v2338
  %v2340 = vpop.f32.mrb[0].mxu0
  %2341 = vdwg.mxu0
  %v2342 = vsel %vm351, %v2263, -inf
  %2343 = vmax.xlane.f32.xlu0 %v2342
  %v2344 = vpop.xlane.xlu0 %2343
  %v2345 = vsel %vm351, %v2339, -inf
  %2346 = vmax.xlane.f32.xlu0 %v2345
  %v2347 = vpop.xlane.xlu0 %2346
  %v2348 = vsub.f32 %v2263, %v2344
  %v2349 = vsub.f32 %v2339, %v2347
  %v2350 = vmul.f32 %v2348, 1.442695
  %v2351 = vpow.pop %v2350
  %v2352 = vmul.f32 %v2349, 1.442695
  %v2353 = vpow.pop %v2352
  %v2354 = vsel %vm351, %v2351, 0.0
  %2355 = vadd.xlane.f32.xlu0 %v2354
  %v2356 = vpop.xlane.xlu0 %2355
  %v2357 = vsel %vm351, %v2353, 0.0
  %2358 = vadd.xlane.f32.xlu0 %v2357
  %v2359 = vpop.xlane.xlu0 %2358
  %v2360 = vrcp.pop %v2356
  %v2361 = vrcp.pop %v2359
  %v2362 = vmul.f32 %v2351, %v2360
  %v2363 = vmul.f32 %v2353, %v2361
  %v2365 = vsel %vm351, %v2362, 0
  %2367 = vmatprep.subr.mxu0 0.0
  %2368 = vmatpush1.msra.mxu0 %v2184
  %2369 = vmatprep.subr.mxu0 0.0
  %2370 = vmatpush1.msra.mxu0 0.0
  %2371 = vmatprep.subr.mxu0 0.0
  %2372 = vmatpush1.msra.mxu0 0.0
  %2373 = vmatprep.subr.mxu0 0.0
  %2374 = vmatpush1.msra.mxu0 0.0
  %2375 = vmatprep.subr.mxu0 0.0
  %2376 = vmatpush1.msra.mxu0 0.0
  %2377 = vmatprep.subr.mxu0 0.0
  %2378 = vmatpush1.msra.mxu0 0.0
  %2379 = vmatprep.subr.mxu0 0.0
  %2380 = vmatpush1.msra.mxu0 0.0
  %2381 = vmatprep.subr.mxu0 0.0
  %2382 = vmatpush1.msra.mxu0 0.0
  %2383 = vmatprep.subr.mxu0 0.0
  %2384 = vmatpush1.msra.mxu0 0.0
  %2385 = vmatprep.subr.mxu0 0.0
  %2386 = vmatpush1.msra.mxu0 0.0
  %2387 = vmatprep.subr.mxu0 0.0
  %2388 = vmatpush1.msra.mxu0 0.0
  %2389 = vmatprep.subr.mxu0 0.0
  %2390 = vmatpush1.msra.mxu0 0.0
  %2391 = vmatprep.subr.mxu0 0.0
  %2392 = vmatpush1.msra.mxu0 0.0
  %2393 = vmatprep.subr.mxu0 0.0
  %2394 = vmatpush1.msra.mxu0 0.0
  %2395 = vmatprep.subr.mxu0 0.0
  %2396 = vmatpush1.msra.mxu0 0.0
  %2397 = vmatprep.subr.mxu0 0.0
  %2398 = vmatpush1.msra.mxu0 0.0
  %2399 = vmatprep.subr.mxu0 0.0
  %2400 = vmatpush1.msra.mxu0 0.0
  %2401 = vmatprep.subr.mxu0 0.0
  %2402 = vmatpush1.msra.mxu0 0.0
  %2403 = vmatprep.subr.mxu0 0.0
  %2404 = vmatpush1.msra.mxu0 0.0
  %2405 = vmatprep.subr.mxu0 0.0
  %2406 = vmatpush1.msra.mxu0 0.0
  %2407 = vmatprep.subr.mxu0 0.0
  %2408 = vmatpush1.msra.mxu0 0.0
  %2409 = vmatprep.subr.mxu0 0.0
  %2410 = vmatpush1.msra.mxu0 0.0
  %2411 = vmatprep.subr.mxu0 0.0
  %2412 = vmatpush1.msra.mxu0 0.0
  %2413 = vmatprep.subr.mxu0 0.0
  %2414 = vmatpush1.msra.mxu0 0.0
  %2415 = vmatprep.subr.mxu0 0.0
  %2416 = vmatpush1.msra.mxu0 0.0
  %2417 = vmatprep.subr.mxu0 0.0
  %2418 = vmatpush1.msra.mxu0 0.0
  %2419 = vmatprep.subr.mxu0 0.0
  %2420 = vmatpush1.msra.mxu0 0.0
  %2421 = vmatprep.subr.mxu0 0.0
  %2422 = vmatpush1.msra.mxu0 0.0
  %2423 = vmatprep.subr.mxu0 0.0
  %2424 = vmatpush1.msra.mxu0 0.0
  %2425 = vmatprep.subr.mxu0 0.0
  %2426 = vmatpush1.msra.mxu0 0.0
  %2427 = vmatprep.subr.mxu0 0.0
  %2428 = vmatpush1.msra.mxu0 0.0
  %2429 = vmatprep.subr.mxu0 0.0
  %2430 = vmatpush1.msra.mxu0 0.0
  %2431 = vmatprep.mubr.f32.mxu0 0.0
  %2432 = vmatmul.mubr.f32.gmra.mrb[0].mxu0 %v2365
  %v2433 = vpop.f32.mrb[0].mxu0
  %v2434 = vadd.f32 0.0, %v2433
  %v2435 = vpop.f32.mrb[0].mxu0
  %2436 = vdwg.mxu0
  %v2438 = vsel %vm351, %v2363, 0
  %2440 = vmatprep.subr.mxu0 0.0
  %2441 = vmatpush1.msra.mxu0 %v2187
  %2442 = vmatprep.subr.mxu0 0.0
  %2443 = vmatpush1.msra.mxu0 0.0
  %2444 = vmatprep.subr.mxu0 0.0
  %2445 = vmatpush1.msra.mxu0 0.0
  %2446 = vmatprep.subr.mxu0 0.0
  %2447 = vmatpush1.msra.mxu0 0.0
  %2448 = vmatprep.subr.mxu0 0.0
  %2449 = vmatpush1.msra.mxu0 0.0
  %2450 = vmatprep.subr.mxu0 0.0
  %2451 = vmatpush1.msra.mxu0 0.0
  %2452 = vmatprep.subr.mxu0 0.0
  %2453 = vmatpush1.msra.mxu0 0.0
  %2454 = vmatprep.subr.mxu0 0.0
  %2455 = vmatpush1.msra.mxu0 0.0
  %2456 = vmatprep.subr.mxu0 0.0
  %2457 = vmatpush1.msra.mxu0 0.0
  %2458 = vmatprep.subr.mxu0 0.0
  %2459 = vmatpush1.msra.mxu0 0.0
  %2460 = vmatprep.subr.mxu0 0.0
  %2461 = vmatpush1.msra.mxu0 0.0
  %2462 = vmatprep.subr.mxu0 0.0
  %2463 = vmatpush1.msra.mxu0 0.0
  %2464 = vmatprep.subr.mxu0 0.0
  %2465 = vmatpush1.msra.mxu0 0.0
  %2466 = vmatprep.subr.mxu0 0.0
  %2467 = vmatpush1.msra.mxu0 0.0
  %2468 = vmatprep.subr.mxu0 0.0
  %2469 = vmatpush1.msra.mxu0 0.0
  %2470 = vmatprep.subr.mxu0 0.0
  %2471 = vmatpush1.msra.mxu0 0.0
  %2472 = vmatprep.subr.mxu0 0.0
  %2473 = vmatpush1.msra.mxu0 0.0
  %2474 = vmatprep.subr.mxu0 0.0
  %2475 = vmatpush1.msra.mxu0 0.0
  %2476 = vmatprep.subr.mxu0 0.0
  %2477 = vmatpush1.msra.mxu0 0.0
  %2478 = vmatprep.subr.mxu0 0.0
  %2479 = vmatpush1.msra.mxu0 0.0
  %2480 = vmatprep.subr.mxu0 0.0
  %2481 = vmatpush1.msra.mxu0 0.0
  %2482 = vmatprep.subr.mxu0 0.0
  %2483 = vmatpush1.msra.mxu0 0.0
  %2484 = vmatprep.subr.mxu0 0.0
  %2485 = vmatpush1.msra.mxu0 0.0
  %2486 = vmatprep.subr.mxu0 0.0
  %2487 = vmatpush1.msra.mxu0 0.0
  %2488 = vmatprep.subr.mxu0 0.0
  %2489 = vmatpush1.msra.mxu0 0.0
  %2490 = vmatprep.subr.mxu0 0.0
  %2491 = vmatpush1.msra.mxu0 0.0
  %2492 = vmatprep.subr.mxu0 0.0
  %2493 = vmatpush1.msra.mxu0 0.0
  %2494 = vmatprep.subr.mxu0 0.0
  %2495 = vmatpush1.msra.mxu0 0.0
  %2496 = vmatprep.subr.mxu0 0.0
  %2497 = vmatpush1.msra.mxu0 0.0
  %2498 = vmatprep.subr.mxu0 0.0
  %2499 = vmatpush1.msra.mxu0 0.0
  %2500 = vmatprep.subr.mxu0 0.0
  %2501 = vmatpush1.msra.mxu0 0.0
  %2502 = vmatprep.subr.mxu0 0.0
  %2503 = vmatpush1.msra.mxu0 0.0
  %2504 = vmatprep.mubr.f32.mxu0 0.0
  %2505 = vmatmul.mubr.f32.gmra.mrb[0].mxu0 %v2438
  %v2506 = vpop.f32.mrb[0].mxu0
  %v2507 = vadd.f32 0.0, %v2506
  %v2508 = vpop.f32.mrb[0].mxu0
  %2509 = vdwg.mxu0
  %2510 = vrot.lane.b32.xlu0 %v2064, 120
  %v2511 = vpop.permute.xlu0 %2510
  %2512 = vrot.lane.b32.xlu0 %v2122, 120
  %v2513 = vpop.permute.xlu0 %2512
  %v2514 = vsel %vm351, %v2511, 0
  %v2516 = vsel %vm351, %v2513, 0
  %2518 = vmatprep.subr.mxu0 0.0
  %2519 = vmatpush1.xpose.msra.mxu0 %v2516
  %2520 = vmatprep.subr.mxu0 0.0
  %2521 = vmatpush1.xpose.msra.mxu0 0.0
  %2522 = vmatprep.subr.mxu0 0.0
  %2523 = vmatpush1.xpose.msra.mxu0 0.0
  %2524 = vmatprep.subr.mxu0 0.0
  %2525 = vmatpush1.xpose.msra.mxu0 0.0
  %2526 = vmatprep.subr.mxu0 0.0
  %2527 = vmatpush1.xpose.msra.mxu0 0.0
  %2528 = vmatprep.subr.mxu0 0.0
  %2529 = vmatpush1.xpose.msra.mxu0 0.0
  %2530 = vmatprep.subr.mxu0 0.0
  %2531 = vmatpush1.xpose.msra.mxu0 0.0
  %2532 = vmatprep.subr.mxu0 0.0
  %2533 = vmatpush1.xpose.msra.mxu0 0.0
  %2534 = vmatprep.subr.mxu0 0.0
  %2535 = vmatpush1.xpose.msra.mxu0 0.0
  %2536 = vmatprep.subr.mxu0 0.0
  %2537 = vmatpush1.xpose.msra.mxu0 0.0
  %2538 = vmatprep.subr.mxu0 0.0
  %2539 = vmatpush1.xpose.msra.mxu0 0.0
  %2540 = vmatprep.subr.mxu0 0.0
  %2541 = vmatpush1.xpose.msra.mxu0 0.0
  %2542 = vmatprep.subr.mxu0 0.0
  %2543 = vmatpush1.xpose.msra.mxu0 0.0
  %2544 = vmatprep.subr.mxu0 0.0
  %2545 = vmatpush1.xpose.msra.mxu0 0.0
  %2546 = vmatprep.subr.mxu0 0.0
  %2547 = vmatpush1.xpose.msra.mxu0 0.0
  %2548 = vmatprep.subr.mxu0 0.0
  %2549 = vmatpush1.xpose.msra.mxu0 0.0
  %2550 = vmatprep.subr.mxu0 0.0
  %2551 = vmatpush1.xpose.msra.mxu0 0.0
  %2552 = vmatprep.subr.mxu0 0.0
  %2553 = vmatpush1.xpose.msra.mxu0 0.0
  %2554 = vmatprep.subr.mxu0 0.0
  %2555 = vmatpush1.xpose.msra.mxu0 0.0
  %2556 = vmatprep.subr.mxu0 0.0
  %2557 = vmatpush1.xpose.msra.mxu0 0.0
  %2558 = vmatprep.subr.mxu0 0.0
  %2559 = vmatpush1.xpose.msra.mxu0 0.0
  %2560 = vmatprep.subr.mxu0 0.0
  %2561 = vmatpush1.xpose.msra.mxu0 0.0
  %2562 = vmatprep.subr.mxu0 0.0
  %2563 = vmatpush1.xpose.msra.mxu0 0.0
  %2564 = vmatprep.subr.mxu0 0.0
  %2565 = vmatpush1.xpose.msra.mxu0 0.0
  %2566 = vmatprep.subr.mxu0 0.0
  %2567 = vmatpush1.xpose.msra.mxu0 0.0
  %2568 = vmatprep.subr.mxu0 0.0
  %2569 = vmatpush1.xpose.msra.mxu0 0.0
  %2570 = vmatprep.subr.mxu0 0.0
  %2571 = vmatpush1.xpose.msra.mxu0 0.0
  %2572 = vmatprep.subr.mxu0 0.0
  %2573 = vmatpush1.xpose.msra.mxu0 0.0
  %2574 = vmatprep.subr.mxu0 0.0
  %2575 = vmatpush1.xpose.msra.mxu0 0.0
  %2576 = vmatprep.subr.mxu0 0.0
  %2577 = vmatpush1.xpose.msra.mxu0 0.0
  %2578 = vmatprep.subr.mxu0 0.0
  %2579 = vmatpush1.xpose.msra.mxu0 0.0
  %2580 = vmatprep.subr.mxu0 0.0
  %2581 = vmatpush1.xpose.msra.mxu0 0.0
  %2582 = vmatprep.mubr.f32.mxu0 0.0
  %2583 = vmatmul.mubr.f32.gmra.mrb[0].mxu0 %v2514
  %v2584 = vpop.f32.mrb[0].mxu0
  %v2585 = vadd.f32 0.0, %v2584
  %v2586 = vpop.f32.mrb[0].mxu0
  %2587 = vdwg.mxu0
  %2588 = vrot.lane.b32.xlu0 %v2065, 120
  %v2589 = vpop.permute.xlu0 %2588
  %2590 = vrot.lane.b32.xlu0 %v2125, 120
  %v2591 = vpop.permute.xlu0 %2590
  %v2592 = vsel %vm351, %v2589, 0
  %v2594 = vsel %vm351, %v2591, 0
  %2596 = vmatprep.subr.mxu0 0.0
  %2597 = vmatpush1.xpose.msra.mxu0 %v2594
  %2598 = vmatprep.subr.mxu0 0.0
  %2599 = vmatpush1.xpose.msra.mxu0 0.0
  %2600 = vmatprep.subr.mxu0 0.0
  %2601 = vmatpush1.xpose.msra.mxu0 0.0
  %2602 = vmatprep.subr.mxu0 0.0
  %2603 = vmatpush1.xpose.msra.mxu0 0.0
  %2604 = vmatprep.subr.mxu0 0.0
  %2605 = vmatpush1.xpose.msra.mxu0 0.0
  %2606 = vmatprep.subr.mxu0 0.0
  %2607 = vmatpush1.xpose.msra.mxu0 0.0
  %2608 = vmatprep.subr.mxu0 0.0
  %2609 = vmatpush1.xpose.msra.mxu0 0.0
  %2610 = vmatprep.subr.mxu0 0.0
  %2611 = vmatpush1.xpose.msra.mxu0 0.0
  %2612 = vmatprep.subr.mxu0 0.0
  %2613 = vmatpush1.xpose.msra.mxu0 0.0
  %2614 = vmatprep.subr.mxu0 0.0
  %2615 = vmatpush1.xpose.msra.mxu0 0.0
  %2616 = vmatprep.subr.mxu0 0.0
  %2617 = vmatpush1.xpose.msra.mxu0 0.0
  %2618 = vmatprep.subr.mxu0 0.0
  %2619 = vmatpush1.xpose.msra.mxu0 0.0
  %2620 = vmatprep.subr.mxu0 0.0
  %2621 = vmatpush1.xpose.msra.mxu0 0.0
  %2622 = vmatprep.subr.mxu0 0.0
  %2623 = vmatpush1.xpose.msra.mxu0 0.0
  %2624 = vmatprep.subr.mxu0 0.0
  %2625 = vmatpush1.xpose.msra.mxu0 0.0
  %2626 = vmatprep.subr.mxu0 0.0
  %2627 = vmatpush1.xpose.msra.mxu0 0.0
  %2628 = vmatprep.subr.mxu0 0.0
  %2629 = vmatpush1.xpose.msra.mxu0 0.0
  %2630 = vmatprep.subr.mxu0 0.0
  %2631 = vmatpush1.xpose.msra.mxu0 0.0
  %2632 = vmatprep.subr.mxu0 0.0
  %2633 = vmatpush1.xpose.msra.mxu0 0.0
  %2634 = vmatprep.subr.mxu0 0.0
  %2635 = vmatpush1.xpose.msra.mxu0 0.0
  %2636 = vmatprep.subr.mxu0 0.0
  %2637 = vmatpush1.xpose.msra.mxu0 0.0
  %2638 = vmatprep.subr.mxu0 0.0
  %2639 = vmatpush1.xpose.msra.mxu0 0.0
  %2640 = vmatprep.subr.mxu0 0.0
  %2641 = vmatpush1.xpose.msra.mxu0 0.0
  %2642 = vmatprep.subr.mxu0 0.0
  %2643 = vmatpush1.xpose.msra.mxu0 0.0
  %2644 = vmatprep.subr.mxu0 0.0
  %2645 = vmatpush1.xpose.msra.mxu0 0.0
  %2646 = vmatprep.subr.mxu0 0.0
  %2647 = vmatpush1.xpose.msra.mxu0 0.0
  %2648 = vmatprep.subr.mxu0 0.0
  %2649 = vmatpush1.xpose.msra.mxu0 0.0
  %2650 = vmatprep.subr.mxu0 0.0
  %2651 = vmatpush1.xpose.msra.mxu0 0.0
  %2652 = vmatprep.subr.mxu0 0.0
  %2653 = vmatpush1.xpose.msra.mxu0 0.0
  %2654 = vmatprep.subr.mxu0 0.0
  %2655 = vmatpush1.xpose.msra.mxu0 0.0
  %2656 = vmatprep.subr.mxu0 0.0
  %2657 = vmatpush1.xpose.msra.mxu0 0.0
  %2658 = vmatprep.subr.mxu0 0.0
  %2659 = vmatpush1.xpose.msra.mxu0 0.0
  %2660 = vmatprep.mubr.f32.mxu0 0.0
  %2661 = vmatmul.mubr.f32.gmra.mrb[0].mxu0 %v2592
  %v2662 = vpop.f32.mrb[0].mxu0
  %v2663 = vadd.f32 0.0, %v2662
  %v2664 = vpop.f32.mrb[0].mxu0
  %2665 = vdwg.mxu0
  %v2666 = vsel %vm351, %v2585, -inf
  %2667 = vmax.xlane.f32.xlu0 %v2666
  %v2668 = vpop.xlane.xlu0 %2667
  %v2669 = vsel %vm351, %v2663, -inf
  %2670 = vmax.xlane.f32.xlu0 %v2669
  %v2671 = vpop.xlane.xlu0 %2670
  %v2672 = vsub.f32 %v2585, %v2668
  %v2673 = vsub.f32 %v2663, %v2671
  %v2674 = vmul.f32 %v2672, 1.442695
  %v2675 = vpow.pop %v2674
  %v2676 = vmul.f32 %v2673, 1.442695
  %v2677 = vpow.pop %v2676
  %v2678 = vsel %vm351, %v2675, 0.0
  %2679 = vadd.xlane.f32.xlu0 %v2678
  %v2680 = vpop.xlane.xlu0 %2679
  %v2681 = vsel %vm351, %v2677, 0.0
  %2682 = vadd.xlane.f32.xlu0 %v2681
  %v2683 = vpop.xlane.xlu0 %2682
  %v2684 = vrcp.pop %v2680
  %v2685 = vrcp.pop %v2683
  %v2686 = vmul.f32 %v2675, %v2684
  %v2687 = vmul.f32 %v2677, %v2685
  %2689 = vrot.lane.b32.xlu0 %v2184, 120
  %v2690 = vpop.permute.xlu0 %2689
  %v2693 = vsel %vm351, %v2686, 0
  %2695 = vmatprep.subr.mxu0 0.0
  %2696 = vmatpush1.msra.mxu0 %v2690
  %2697 = vmatprep.subr.mxu0 0.0
  %2698 = vmatpush1.msra.mxu0 0.0
  %2699 = vmatprep.subr.mxu0 0.0
  %2700 = vmatpush1.msra.mxu0 0.0
  %2701 = vmatprep.subr.mxu0 0.0
  %2702 = vmatpush1.msra.mxu0 0.0
  %2703 = vmatprep.subr.mxu0 0.0
  %2704 = vmatpush1.msra.mxu0 0.0
  %2705 = vmatprep.subr.mxu0 0.0
  %2706 = vmatpush1.msra.mxu0 0.0
  %2707 = vmatprep.subr.mxu0 0.0
  %2708 = vmatpush1.msra.mxu0 0.0
  %2709 = vmatprep.subr.mxu0 0.0
  %2710 = vmatpush1.msra.mxu0 0.0
  %2711 = vmatprep.subr.mxu0 0.0
  %2712 = vmatpush1.msra.mxu0 0.0
  %2713 = vmatprep.subr.mxu0 0.0
  %2714 = vmatpush1.msra.mxu0 0.0
  %2715 = vmatprep.subr.mxu0 0.0
  %2716 = vmatpush1.msra.mxu0 0.0
  %2717 = vmatprep.subr.mxu0 0.0
  %2718 = vmatpush1.msra.mxu0 0.0
  %2719 = vmatprep.subr.mxu0 0.0
  %2720 = vmatpush1.msra.mxu0 0.0
  %2721 = vmatprep.subr.mxu0 0.0
  %2722 = vmatpush1.msra.mxu0 0.0
  %2723 = vmatprep.subr.mxu0 0.0
  %2724 = vmatpush1.msra.mxu0 0.0
  %2725 = vmatprep.subr.mxu0 0.0
  %2726 = vmatpush1.msra.mxu0 0.0
  %2727 = vmatprep.subr.mxu0 0.0
  %2728 = vmatpush1.msra.mxu0 0.0
  %2729 = vmatprep.subr.mxu0 0.0
  %2730 = vmatpush1.msra.mxu0 0.0
  %2731 = vmatprep.subr.mxu0 0.0
  %2732 = vmatpush1.msra.mxu0 0.0
  %2733 = vmatprep.subr.mxu0 0.0
  %2734 = vmatpush1.msra.mxu0 0.0
  %2735 = vmatprep.subr.mxu0 0.0
  %2736 = vmatpush1.msra.mxu0 0.0
  %2737 = vmatprep.subr.mxu0 0.0
  %2738 = vmatpush1.msra.mxu0 0.0
  %2739 = vmatprep.subr.mxu0 0.0
  %2740 = vmatpush1.msra.mxu0 0.0
  %2741 = vmatprep.subr.mxu0 0.0
  %2742 = vmatpush1.msra.mxu0 0.0
  %2743 = vmatprep.subr.mxu0 0.0
  %2744 = vmatpush1.msra.mxu0 0.0
  %2745 = vmatprep.subr.mxu0 0.0
  %2746 = vmatpush1.msra.mxu0 0.0
  %2747 = vmatprep.subr.mxu0 0.0
  %2748 = vmatpush1.msra.mxu0 0.0
  %2749 = vmatprep.subr.mxu0 0.0
  %2750 = vmatpush1.msra.mxu0 0.0
  %2751 = vmatprep.subr.mxu0 0.0
  %2752 = vmatpush1.msra.mxu0 0.0
  %2753 = vmatprep.subr.mxu0 0.0
  %2754 = vmatpush1.msra.mxu0 0.0
  %2755 = vmatprep.subr.mxu0 0.0
  %2756 = vmatpush1.msra.mxu0 0.0
  %2757 = vmatprep.subr.mxu0 0.0
  %2758 = vmatpush1.msra.mxu0 0.0
  %2759 = vmatprep.mubr.f32.mxu0 0.0
  %2760 = vmatmul.mubr.f32.gmra.mrb[0].mxu0 %v2693
  %v2761 = vpop.f32.mrb[0].mxu0
  %v2762 = vadd.f32 0.0, %v2761
  %v2763 = vpop.f32.mrb[0].mxu0
  %2764 = vdwg.mxu0
  %2766 = vrot.lane.b32.xlu0 %v2187, 120
  %v2767 = vpop.permute.xlu0 %2766
  %v2770 = vsel %vm351, %v2687, 0
  %2772 = vmatprep.subr.mxu0 0.0
  %2773 = vmatpush1.msra.mxu0 %v2767
  %2774 = vmatprep.subr.mxu0 0.0
  %2775 = vmatpush1.msra.mxu0 0.0
  %2776 = vmatprep.subr.mxu0 0.0
  %2777 = vmatpush1.msra.mxu0 0.0
  %2778 = vmatprep.subr.mxu0 0.0
  %2779 = vmatpush1.msra.mxu0 0.0
  %2780 = vmatprep.subr.mxu0 0.0
  %2781 = vmatpush1.msra.mxu0 0.0
  %2782 = vmatprep.subr.mxu0 0.0
  %2783 = vmatpush1.msra.mxu0 0.0
  %2784 = vmatprep.subr.mxu0 0.0
  %2785 = vmatpush1.msra.mxu0 0.0
  %2786 = vmatprep.subr.mxu0 0.0
  %2787 = vmatpush1.msra.mxu0 0.0
  %2788 = vmatprep.subr.mxu0 0.0
  %2789 = vmatpush1.msra.mxu0 0.0
  %2790 = vmatprep.subr.mxu0 0.0
  %2791 = vmatpush1.msra.mxu0 0.0
  %2792 = vmatprep.subr.mxu0 0.0
  %2793 = vmatpush1.msra.mxu0 0.0
  %2794 = vmatprep.subr.mxu0 0.0
  %2795 = vmatpush1.msra.mxu0 0.0
  %2796 = vmatprep.subr.mxu0 0.0
  %2797 = vmatpush1.msra.mxu0 0.0
  %2798 = vmatprep.subr.mxu0 0.0
  %2799 = vmatpush1.msra.mxu0 0.0
  %2800 = vmatprep.subr.mxu0 0.0
  %2801 = vmatpush1.msra.mxu0 0.0
  %2802 = vmatprep.subr.mxu0 0.0
  %2803 = vmatpush1.msra.mxu0 0.0
  %2804 = vmatprep.subr.mxu0 0.0
  %2805 = vmatpush1.msra.mxu0 0.0
  %2806 = vmatprep.subr.mxu0 0.0
  %2807 = vmatpush1.msra.mxu0 0.0
  %2808 = vmatprep.subr.mxu0 0.0
  %2809 = vmatpush1.msra.mxu0 0.0
  %2810 = vmatprep.subr.mxu0 0.0
  %2811 = vmatpush1.msra.mxu0 0.0
  %2812 = vmatprep.subr.mxu0 0.0
  %2813 = vmatpush1.msra.mxu0 0.0
  %2814 = vmatprep.subr.mxu0 0.0
  %2815 = vmatpush1.msra.mxu0 0.0
  %2816 = vmatprep.subr.mxu0 0.0
  %2817 = vmatpush1.msra.mxu0 0.0
  %2818 = vmatprep.subr.mxu0 0.0
  %2819 = vmatpush1.msra.mxu0 0.0
  %2820 = vmatprep.subr.mxu0 0.0
  %2821 = vmatpush1.msra.mxu0 0.0
  %2822 = vmatprep.subr.mxu0 0.0
  %2823 = vmatpush1.msra.mxu0 0.0
  %2824 = vmatprep.subr.mxu0 0.0
  %2825 = vmatpush1.msra.mxu0 0.0
  %2826 = vmatprep.subr.mxu0 0.0
  %2827 = vmatpush1.msra.mxu0 0.0
  %2828 = vmatprep.subr.mxu0 0.0
  %2829 = vmatpush1.msra.mxu0 0.0
  %2830 = vmatprep.subr.mxu0 0.0
  %2831 = vmatpush1.msra.mxu0 0.0
  %2832 = vmatprep.subr.mxu0 0.0
  %2833 = vmatpush1.msra.mxu0 0.0
  %2834 = vmatprep.subr.mxu0 0.0
  %2835 = vmatpush1.msra.mxu0 0.0
  %2836 = vmatprep.mubr.f32.mxu0 0.0
  %2837 = vmatmul.mubr.f32.gmra.mrb[0].mxu0 %v2770
  %v2838 = vpop.f32.mrb[0].mxu0
  %v2839 = vadd.f32 0.0, %v2838
  %v2840 = vpop.f32.mrb[0].mxu0
  %2841 = vdwg.mxu0
  %2842 = vrot.lane.b32.xlu0 %v2064, 112
  %v2843 = vpop.permute.xlu0 %2842
  %2844 = vrot.lane.b32.xlu0 %v2122, 112
  %v2845 = vpop.permute.xlu0 %2844
  %v2846 = vsel %vm351, %v2843, 0
  %v2848 = vsel %vm351, %v2845, 0
  %2850 = vmatprep.subr.mxu0 0.0
  %2851 = vmatpush1.xpose.msra.mxu0 %v2848
  %2852 = vmatprep.subr.mxu0 0.0
  %2853 = vmatpush1.xpose.msra.mxu0 0.0
  %2854 = vmatprep.subr.mxu0 0.0
  %2855 = vmatpush1.xpose.msra.mxu0 0.0
  %2856 = vmatprep.subr.mxu0 0.0
  %2857 = vmatpush1.xpose.msra.mxu0 0.0
  %2858 = vmatprep.subr.mxu0 0.0
  %2859 = vmatpush1.xpose.msra.mxu0 0.0
  %2860 = vmatprep.subr.mxu0 0.0
  %2861 = vmatpush1.xpose.msra.mxu0 0.0
  %2862 = vmatprep.subr.mxu0 0.0
  %2863 = vmatpush1.xpose.msra.mxu0 0.0
  %2864 = vmatprep.subr.mxu0 0.0
  %2865 = vmatpush1.xpose.msra.mxu0 0.0
  %2866 = vmatprep.subr.mxu0 0.0
  %2867 = vmatpush1.xpose.msra.mxu0 0.0
  %2868 = vmatprep.subr.mxu0 0.0
  %2869 = vmatpush1.xpose.msra.mxu0 0.0
  %2870 = vmatprep.subr.mxu0 0.0
  %2871 = vmatpush1.xpose.msra.mxu0 0.0
  %2872 = vmatprep.subr.mxu0 0.0
  %2873 = vmatpush1.xpose.msra.mxu0 0.0
  %2874 = vmatprep.subr.mxu0 0.0
  %2875 = vmatpush1.xpose.msra.mxu0 0.0
  %2876 = vmatprep.subr.mxu0 0.0
  %2877 = vmatpush1.xpose.msra.mxu0 0.0
  %2878 = vmatprep.subr.mxu0 0.0
  %2879 = vmatpush1.xpose.msra.mxu0 0.0
  %2880 = vmatprep.subr.mxu0 0.0
  %2881 = vmatpush1.xpose.msra.mxu0 0.0
  %2882 = vmatprep.subr.mxu0 0.0
  %2883 = vmatpush1.xpose.msra.mxu0 0.0
  %2884 = vmatprep.subr.mxu0 0.0
  %2885 = vmatpush1.xpose.msra.mxu0 0.0
  %2886 = vmatprep.subr.mxu0 0.0
  %2887 = vmatpush1.xpose.msra.mxu0 0.0
  %2888 = vmatprep.subr.mxu0 0.0
  %2889 = vmatpush1.xpose.msra.mxu0 0.0
  %2890 = vmatprep.subr.mxu0 0.0
  %2891 = vmatpush1.xpose.msra.mxu0 0.0
  %2892 = vmatprep.subr.mxu0 0.0
  %2893 = vmatpush1.xpose.msra.mxu0 0.0
  %2894 = vmatprep.subr.mxu0 0.0
  %2895 = vmatpush1.xpose.msra.mxu0 0.0
  %2896 = vmatprep.subr.mxu0 0.0
  %2897 = vmatpush1.xpose.msra.mxu0 0.0
  %2898 = vmatprep.subr.mxu0 0.0
  %2899 = vmatpush1.xpose.msra.mxu0 0.0
  %2900 = vmatprep.subr.mxu0 0.0
  %2901 = vmatpush1.xpose.msra.mxu0 0.0
  %2902 = vmatprep.subr.mxu0 0.0
  %2903 = vmatpush1.xpose.msra.mxu0 0.0
  %2904 = vmatprep.subr.mxu0 0.0
  %2905 = vmatpush1.xpose.msra.mxu0 0.0
  %2906 = vmatprep.subr.mxu0 0.0
  %2907 = vmatpush1.xpose.msra.mxu0 0.0
  %2908 = vmatprep.subr.mxu0 0.0
  %2909 = vmatpush1.xpose.msra.mxu0 0.0
  %2910 = vmatprep.subr.mxu0 0.0
  %2911 = vmatpush1.xpose.msra.mxu0 0.0
  %2912 = vmatprep.subr.mxu0 0.0
  %2913 = vmatpush1.xpose.msra.mxu0 0.0
  %2914 = vmatprep.mubr.f32.mxu0 0.0
  %2915 = vmatmul.mubr.f32.gmra.mrb[0].mxu0 %v2846
  %v2916 = vpop.f32.mrb[0].mxu0
  %v2917 = vadd.f32 0.0, %v2916
  %v2918 = vpop.f32.mrb[0].mxu0
  %2919 = vdwg.mxu0
  %2920 = vrot.lane.b32.xlu0 %v2065, 112
  %v2921 = vpop.permute.xlu0 %2920
  %2922 = vrot.lane.b32.xlu0 %v2125, 112
  %v2923 = vpop.permute.xlu0 %2922
  %v2924 = vsel %vm351, %v2921, 0
  %v2926 = vsel %vm351, %v2923, 0
  %2928 = vmatprep.subr.mxu0 0.0
  %2929 = vmatpush1.xpose.msra.mxu0 %v2926
  %2930 = vmatprep.subr.mxu0 0.0
  %2931 = vmatpush1.xpose.msra.mxu0 0.0
  %2932 = vmatprep.subr.mxu0 0.0
  %2933 = vmatpush1.xpose.msra.mxu0 0.0
  %2934 = vmatprep.subr.mxu0 0.0
  %2935 = vmatpush1.xpose.msra.mxu0 0.0
  %2936 = vmatprep.subr.mxu0 0.0
  %2937 = vmatpush1.xpose.msra.mxu0 0.0
  %2938 = vmatprep.subr.mxu0 0.0
  %2939 = vmatpush1.xpose.msra.mxu0 0.0
  %2940 = vmatprep.subr.mxu0 0.0
  %2941 = vmatpush1.xpose.msra.mxu0 0.0
  %2942 = vmatprep.subr.mxu0 0.0
  %2943 = vmatpush1.xpose.msra.mxu0 0.0
  %2944 = vmatprep.subr.mxu0 0.0
  %2945 = vmatpush1.xpose.msra.mxu0 0.0
  %2946 = vmatprep.subr.mxu0 0.0
  %2947 = vmatpush1.xpose.msra.mxu0 0.0
  %2948 = vmatprep.subr.mxu0 0.0
  %2949 = vmatpush1.xpose.msra.mxu0 0.0
  %2950 = vmatprep.subr.mxu0 0.0
  %2951 = vmatpush1.xpose.msra.mxu0 0.0
  %2952 = vmatprep.subr.mxu0 0.0
  %2953 = vmatpush1.xpose.msra.mxu0 0.0
  %2954 = vmatprep.subr.mxu0 0.0
  %2955 = vmatpush1.xpose.msra.mxu0 0.0
  %2956 = vmatprep.subr.mxu0 0.0
  %2957 = vmatpush1.xpose.msra.mxu0 0.0
  %2958 = vmatprep.subr.mxu0 0.0
  %2959 = vmatpush1.xpose.msra.mxu0 0.0
  %2960 = vmatprep.subr.mxu0 0.0
  %2961 = vmatpush1.xpose.msra.mxu0 0.0
  %2962 = vmatprep.subr.mxu0 0.0
  %2963 = vmatpush1.xpose.msra.mxu0 0.0
  %2964 = vmatprep.subr.mxu0 0.0
  %2965 = vmatpush1.xpose.msra.mxu0 0.0
  %2966 = vmatprep.subr.mxu0 0.0
  %2967 = vmatpush1.xpose.msra.mxu0 0.0
  %2968 = vmatprep.subr.mxu0 0.0
  %2969 = vmatpush1.xpose.msra.mxu0 0.0
  %2970 = vmatprep.subr.mxu0 0.0
  %2971 = vmatpush1.xpose.msra.mxu0 0.0
  %2972 = vmatprep.subr.mxu0 0.0
  %2973 = vmatpush1.xpose.msra.mxu0 0.0
  %2974 = vmatprep.subr.mxu0 0.0
  %2975 = vmatpush1.xpose.msra.mxu0 0.0
  %2976 = vmatprep.subr.mxu0 0.0
  %2977 = vmatpush1.xpose.msra.mxu0 0.0
  %2978 = vmatprep.subr.mxu0 0.0
  %2979 = vmatpush1.xpose.msra.mxu0 0.0
  %2980 = vmatprep.subr.mxu0 0.0
  %2981 = vmatpush1.xpose.msra.mxu0 0.0
  %2982 = vmatprep.subr.mxu0 0.0
  %2983 = vmatpush1.xpose.msra.mxu0 0.0
  %2984 = vmatprep.subr.mxu0 0.0
  %2985 = vmatpush1.xpose.msra.mxu0 0.0
  %2986 = vmatprep.subr.mxu0 0.0
  %2987 = vmatpush1.xpose.msra.mxu0 0.0
  %2988 = vmatprep.subr.mxu0 0.0
  %2989 = vmatpush1.xpose.msra.mxu0 0.0
  %2990 = vmatprep.subr.mxu0 0.0
  %2991 = vmatpush1.xpose.msra.mxu0 0.0
  %2992 = vmatprep.mubr.f32.mxu0 0.0
  %2993 = vmatmul.mubr.f32.gmra.mrb[0].mxu0 %v2924
  %v2994 = vpop.f32.mrb[0].mxu0
  %v2995 = vadd.f32 0.0, %v2994
  %v2996 = vpop.f32.mrb[0].mxu0
  %2997 = vdwg.mxu0
  %v2998 = vsel %vm351, %v2917, -inf
  %2999 = vmax.xlane.f32.xlu0 %v2998
  %v3000 = vpop.xlane.xlu0 %2999
  %v3001 = vsel %vm351, %v2995, -inf
  %3002 = vmax.xlane.f32.xlu0 %v3001
  %v3003 = vpop.xlane.xlu0 %3002
  %v3004 = vsub.f32 %v2917, %v3000
  %v3005 = vsub.f32 %v2995, %v3003
  %v3006 = vmul.f32 %v3004, 1.442695
  %v3007 = vpow.pop %v3006
  %v3008 = vmul.f32 %v3005, 1.442695
  %v3009 = vpow.pop %v3008
  %v3010 = vsel %vm351, %v3007, 0.0
  %3011 = vadd.xlane.f32.xlu0 %v3010
  %v3012 = vpop.xlane.xlu0 %3011
  %v3013 = vsel %vm351, %v3009, 0.0
  %3014 = vadd.xlane.f32.xlu0 %v3013
  %v3015 = vpop.xlane.xlu0 %3014
  %v3016 = vrcp.pop %v3012
  %v3017 = vrcp.pop %v3015
  %v3018 = vmul.f32 %v3007, %v3016
  %v3019 = vmul.f32 %v3009, %v3017
  %3020 = vrot.lane.b32.xlu0 %v2184, 112
  %v3021 = vpop.permute.xlu0 %3020
  %v3024 = vsel %vm351, %v3018, 0
  %3026 = vmatprep.subr.mxu0 0.0
  %3027 = vmatpush1.msra.mxu0 %v3021
  %3028 = vmatprep.subr.mxu0 0.0
  %3029 = vmatpush1.msra.mxu0 0.0
  %3030 = vmatprep.subr.mxu0 0.0
  %3031 = vmatpush1.msra.mxu0 0.0
  %3032 = vmatprep.subr.mxu0 0.0
  %3033 = vmatpush1.msra.mxu0 0.0
  %3034 = vmatprep.subr.mxu0 0.0
  %3035 = vmatpush1.msra.mxu0 0.0
  %3036 = vmatprep.subr.mxu0 0.0
  %3037 = vmatpush1.msra.mxu0 0.0
  %3038 = vmatprep.subr.mxu0 0.0
  %3039 = vmatpush1.msra.mxu0 0.0
  %3040 = vmatprep.subr.mxu0 0.0
  %3041 = vmatpush1.msra.mxu0 0.0
  %3042 = vmatprep.subr.mxu0 0.0
  %3043 = vmatpush1.msra.mxu0 0.0
  %3044 = vmatprep.subr.mxu0 0.0
  %3045 = vmatpush1.msra.mxu0 0.0
  %3046 = vmatprep.subr.mxu0 0.0
  %3047 = vmatpush1.msra.mxu0 0.0
  %3048 = vmatprep.subr.mxu0 0.0
  %3049 = vmatpush1.msra.mxu0 0.0
  %3050 = vmatprep.subr.mxu0 0.0
  %3051 = vmatpush1.msra.mxu0 0.0
  %3052 = vmatprep.subr.mxu0 0.0
  %3053 = vmatpush1.msra.mxu0 0.0
  %3054 = vmatprep.subr.mxu0 0.0
  %3055 = vmatpush1.msra.mxu0 0.0
  %3056 = vmatprep.subr.mxu0 0.0
  %3057 = vmatpush1.msra.mxu0 0.0
  %3058 = vmatprep.subr.mxu0 0.0
  %3059 = vmatpush1.msra.mxu0 0.0
  %3060 = vmatprep.subr.mxu0 0.0
  %3061 = vmatpush1.msra.mxu0 0.0
  %3062 = vmatprep.subr.mxu0 0.0
  %3063 = vmatpush1.msra.mxu0 0.0
  %3064 = vmatprep.subr.mxu0 0.0
  %3065 = vmatpush1.msra.mxu0 0.0
  %3066 = vmatprep.subr.mxu0 0.0
  %3067 = vmatpush1.msra.mxu0 0.0
  %3068 = vmatprep.subr.mxu0 0.0
  %3069 = vmatpush1.msra.mxu0 0.0
  %3070 = vmatprep.subr.mxu0 0.0
  %3071 = vmatpush1.msra.mxu0 0.0
  %3072 = vmatprep.subr.mxu0 0.0
  %3073 = vmatpush1.msra.mxu0 0.0
  %3074 = vmatprep.subr.mxu0 0.0
  %3075 = vmatpush1.msra.mxu0 0.0
  %3076 = vmatprep.subr.mxu0 0.0
  %3077 = vmatpush1.msra.mxu0 0.0
  %3078 = vmatprep.subr.mxu0 0.0
  %3079 = vmatpush1.msra.mxu0 0.0
  %3080 = vmatprep.subr.mxu0 0.0
  %3081 = vmatpush1.msra.mxu0 0.0
  %3082 = vmatprep.subr.mxu0 0.0
  %3083 = vmatpush1.msra.mxu0 0.0
  %3084 = vmatprep.subr.mxu0 0.0
  %3085 = vmatpush1.msra.mxu0 0.0
  %3086 = vmatprep.subr.mxu0 0.0
  %3087 = vmatpush1.msra.mxu0 0.0
  %3088 = vmatprep.subr.mxu0 0.0
  %3089 = vmatpush1.msra.mxu0 0.0
  %3090 = vmatprep.mubr.f32.mxu0 0.0
  %3091 = vmatmul.mubr.f32.gmra.mrb[0].mxu0 %v3024
  %v3092 = vpop.f32.mrb[0].mxu0
  %v3093 = vadd.f32 0.0, %v3092
  %v3094 = vpop.f32.mrb[0].mxu0
  %3095 = vdwg.mxu0
  %3096 = vrot.lane.b32.xlu0 %v2187, 112
  %v3097 = vpop.permute.xlu0 %3096
  %v3100 = vsel %vm351, %v3019, 0
  %3102 = vmatprep.subr.mxu0 0.0
  %3103 = vmatpush1.msra.mxu0 %v3097
  %3104 = vmatprep.subr.mxu0 0.0
  %3105 = vmatpush1.msra.mxu0 0.0
  %3106 = vmatprep.subr.mxu0 0.0
  %3107 = vmatpush1.msra.mxu0 0.0
  %3108 = vmatprep.subr.mxu0 0.0
  %3109 = vmatpush1.msra.mxu0 0.0
  %3110 = vmatprep.subr.mxu0 0.0
  %3111 = vmatpush1.msra.mxu0 0.0
  %3112 = vmatprep.subr.mxu0 0.0
  %3113 = vmatpush1.msra.mxu0 0.0
  %3114 = vmatprep.subr.mxu0 0.0
  %3115 = vmatpush1.msra.mxu0 0.0
  %3116 = vmatprep.subr.mxu0 0.0
  %3117 = vmatpush1.msra.mxu0 0.0
  %3118 = vmatprep.subr.mxu0 0.0
  %3119 = vmatpush1.msra.mxu0 0.0
  %3120 = vmatprep.subr.mxu0 0.0
  %3121 = vmatpush1.msra.mxu0 0.0
  %3122 = vmatprep.subr.mxu0 0.0
  %3123 = vmatpush1.msra.mxu0 0.0
  %3124 = vmatprep.subr.mxu0 0.0
  %3125 = vmatpush1.msra.mxu0 0.0
  %3126 = vmatprep.subr.mxu0 0.0
  %3127 = vmatpush1.msra.mxu0 0.0
  %3128 = vmatprep.subr.mxu0 0.0
  %3129 = vmatpush1.msra.mxu0 0.0
  %3130 = vmatprep.subr.mxu0 0.0
  %3131 = vmatpush1.msra.mxu0 0.0
  %3132 = vmatprep.subr.mxu0 0.0
  %3133 = vmatpush1.msra.mxu0 0.0
  %3134 = vmatprep.subr.mxu0 0.0
  %3135 = vmatpush1.msra.mxu0 0.0
  %3136 = vmatprep.subr.mxu0 0.0
  %3137 = vmatpush1.msra.mxu0 0.0
  %3138 = vmatprep.subr.mxu0 0.0
  %3139 = vmatpush1.msra.mxu0 0.0
  %3140 = vmatprep.subr.mxu0 0.0
  %3141 = vmatpush1.msra.mxu0 0.0
  %3142 = vmatprep.subr.mxu0 0.0
  %3143 = vmatpush1.msra.mxu0 0.0
  %3144 = vmatprep.subr.mxu0 0.0
  %3145 = vmatpush1.msra.mxu0 0.0
  %3146 = vmatprep.subr.mxu0 0.0
  %3147 = vmatpush1.msra.mxu0 0.0
  %3148 = vmatprep.subr.mxu0 0.0
  %3149 = vmatpush1.msra.mxu0 0.0
  %3150 = vmatprep.subr.mxu0 0.0
  %3151 = vmatpush1.msra.mxu0 0.0
  %3152 = vmatprep.subr.mxu0 0.0
  %3153 = vmatpush1.msra.mxu0 0.0
  %3154 = vmatprep.subr.mxu0 0.0
  %3155 = vmatpush1.msra.mxu0 0.0
  %3156 = vmatprep.subr.mxu0 0.0
  %3157 = vmatpush1.msra.mxu0 0.0
  %3158 = vmatprep.subr.mxu0 0.0
  %3159 = vmatpush1.msra.mxu0 0.0
  %3160 = vmatprep.subr.mxu0 0.0
  %3161 = vmatpush1.msra.mxu0 0.0
  %3162 = vmatprep.subr.mxu0 0.0
  %3163 = vmatpush1.msra.mxu0 0.0
  %3164 = vmatprep.subr.mxu0 0.0
  %3165 = vmatpush1.msra.mxu0 0.0
  %3166 = vmatprep.mubr.f32.mxu0 0.0
  %3167 = vmatmul.mubr.f32.gmra.mrb[0].mxu0 %v3100
  %v3168 = vpop.f32.mrb[0].mxu0
  %v3169 = vadd.f32 0.0, %v3168
  %v3170 = vpop.f32.mrb[0].mxu0
  %3171 = vdwg.mxu0
  %3172 = vrot.lane.b32.xlu0 %v2064, 104
  %v3173 = vpop.permute.xlu0 %3172
  %3174 = vrot.lane.b32.xlu0 %v2122, 104
  %v3175 = vpop.permute.xlu0 %3174
  %v3176 = vsel %vm351, %v3173, 0
  %v3178 = vsel %vm351, %v3175, 0
  %3180 = vmatprep.subr.mxu0 0.0
  %3181 = vmatpush1.xpose.msra.mxu0 %v3178
  %3182 = vmatprep.subr.mxu0 0.0
  %3183 = vmatpush1.xpose.msra.mxu0 0.0
  %3184 = vmatprep.subr.mxu0 0.0
  %3185 = vmatpush1.xpose.msra.mxu0 0.0
  %3186 = vmatprep.subr.mxu0 0.0
  %3187 = vmatpush1.xpose.msra.mxu0 0.0
  %3188 = vmatprep.subr.mxu0 0.0
  %3189 = vmatpush1.xpose.msra.mxu0 0.0
  %3190 = vmatprep.subr.mxu0 0.0
  %3191 = vmatpush1.xpose.msra.mxu0 0.0
  %3192 = vmatprep.subr.mxu0 0.0
  %3193 = vmatpush1.xpose.msra.mxu0 0.0
  %3194 = vmatprep.subr.mxu0 0.0
  %3195 = vmatpush1.xpose.msra.mxu0 0.0
  %3196 = vmatprep.subr.mxu0 0.0
  %3197 = vmatpush1.xpose.msra.mxu0 0.0
  %3198 = vmatprep.subr.mxu0 0.0
  %3199 = vmatpush1.xpose.msra.mxu0 0.0
  %3200 = vmatprep.subr.mxu0 0.0
  %3201 = vmatpush1.xpose.msra.mxu0 0.0
  %3202 = vmatprep.subr.mxu0 0.0
  %3203 = vmatpush1.xpose.msra.mxu0 0.0
  %3204 = vmatprep.subr.mxu0 0.0
  %3205 = vmatpush1.xpose.msra.mxu0 0.0
  %3206 = vmatprep.subr.mxu0 0.0
  %3207 = vmatpush1.xpose.msra.mxu0 0.0
  %3208 = vmatprep.subr.mxu0 0.0
  %3209 = vmatpush1.xpose.msra.mxu0 0.0
  %3210 = vmatprep.subr.mxu0 0.0
  %3211 = vmatpush1.xpose.msra.mxu0 0.0
  %3212 = vmatprep.subr.mxu0 0.0
  %3213 = vmatpush1.xpose.msra.mxu0 0.0
  %3214 = vmatprep.subr.mxu0 0.0
  %3215 = vmatpush1.xpose.msra.mxu0 0.0
  %3216 = vmatprep.subr.mxu0 0.0
  %3217 = vmatpush1.xpose.msra.mxu0 0.0
  %3218 = vmatprep.subr.mxu0 0.0
  %3219 = vmatpush1.xpose.msra.mxu0 0.0
  %3220 = vmatprep.subr.mxu0 0.0
  %3221 = vmatpush1.xpose.msra.mxu0 0.0
  %3222 = vmatprep.subr.mxu0 0.0
  %3223 = vmatpush1.xpose.msra.mxu0 0.0
  %3224 = vmatprep.subr.mxu0 0.0
  %3225 = vmatpush1.xpose.msra.mxu0 0.0
  %3226 = vmatprep.subr.mxu0 0.0
  %3227 = vmatpush1.xpose.msra.mxu0 0.0
  %3228 = vmatprep.subr.mxu0 0.0
  %3229 = vmatpush1.xpose.msra.mxu0 0.0
  %3230 = vmatprep.subr.mxu0 0.0
  %3231 = vmatpush1.xpose.msra.mxu0 0.0
  %3232 = vmatprep.subr.mxu0 0.0
  %3233 = vmatpush1.xpose.msra.mxu0 0.0
  %3234 = vmatprep.subr.mxu0 0.0
  %3235 = vmatpush1.xpose.msra.mxu0 0.0
  %3236 = vmatprep.subr.mxu0 0.0
  %3237 = vmatpush1.xpose.msra.mxu0 0.0
  %3238 = vmatprep.subr.mxu0 0.0
  %3239 = vmatpush1.xpose.msra.mxu0 0.0
  %3240 = vmatprep.subr.mxu0 0.0
  %3241 = vmatpush1.xpose.msra.mxu0 0.0
  %3242 = vmatprep.subr.mxu0 0.0
  %3243 = vmatpush1.xpose.msra.mxu0 0.0
  %3244 = vmatprep.mubr.f32.mxu0 0.0
  %3245 = vmatmul.mubr.f32.gmra.mrb[0].mxu0 %v3176
  %v3246 = vpop.f32.mrb[0].mxu0
  %v3247 = vadd.f32 0.0, %v3246
  %v3248 = vpop.f32.mrb[0].mxu0
  %3249 = vdwg.mxu0
  %3250 = vrot.lane.b32.xlu0 %v2065, 104
  %v3251 = vpop.permute.xlu0 %3250
  %3252 = vrot.lane.b32.xlu0 %v2125, 104
  %v3253 = vpop.permute.xlu0 %3252
  %v3254 = vsel %vm351, %v3251, 0
  %v3256 = vsel %vm351, %v3253, 0
  %3258 = vmatprep.subr.mxu0 0.0
  %3259 = vmatpush1.xpose.msra.mxu0 %v3256
  %3260 = vmatprep.subr.mxu0 0.0
  %3261 = vmatpush1.xpose.msra.mxu0 0.0
  %3262 = vmatprep.subr.mxu0 0.0
  %3263 = vmatpush1.xpose.msra.mxu0 0.0
  %3264 = vmatprep.subr.mxu0 0.0
  %3265 = vmatpush1.xpose.msra.mxu0 0.0
  %3266 = vmatprep.subr.mxu0 0.0
  %3267 = vmatpush1.xpose.msra.mxu0 0.0
  %3268 = vmatprep.subr.mxu0 0.0
  %3269 = vmatpush1.xpose.msra.mxu0 0.0
  %3270 = vmatprep.subr.mxu0 0.0
  %3271 = vmatpush1.xpose.msra.mxu0 0.0
  %3272 = vmatprep.subr.mxu0 0.0
  %3273 = vmatpush1.xpose.msra.mxu0 0.0
  %3274 = vmatprep.subr.mxu0 0.0
  %3275 = vmatpush1.xpose.msra.mxu0 0.0
  %3276 = vmatprep.subr.mxu0 0.0
  %3277 = vmatpush1.xpose.msra.mxu0 0.0
  %3278 = vmatprep.subr.mxu0 0.0
  %3279 = vmatpush1.xpose.msra.mxu0 0.0
  %3280 = vmatprep.subr.mxu0 0.0
  %3281 = vmatpush1.xpose.msra.mxu0 0.0
  %3282 = vmatprep.subr.mxu0 0.0
  %3283 = vmatpush1.xpose.msra.mxu0 0.0
  %3284 = vmatprep.subr.mxu0 0.0
  %3285 = vmatpush1.xpose.msra.mxu0 0.0
  %3286 = vmatprep.subr.mxu0 0.0
  %3287 = vmatpush1.xpose.msra.mxu0 0.0
  %3288 = vmatprep.subr.mxu0 0.0
  %3289 = vmatpush1.xpose.msra.mxu0 0.0
  %3290 = vmatprep.subr.mxu0 0.0
  %3291 = vmatpush1.xpose.msra.mxu0 0.0
  %3292 = vmatprep.subr.mxu0 0.0
  %3293 = vmatpush1.xpose.msra.mxu0 0.0
  %3294 = vmatprep.subr.mxu0 0.0
  %3295 = vmatpush1.xpose.msra.mxu0 0.0
  %3296 = vmatprep.subr.mxu0 0.0
  %3297 = vmatpush1.xpose.msra.mxu0 0.0
  %3298 = vmatprep.subr.mxu0 0.0
  %3299 = vmatpush1.xpose.msra.mxu0 0.0
  %3300 = vmatprep.subr.mxu0 0.0
  %3301 = vmatpush1.xpose.msra.mxu0 0.0
  %3302 = vmatprep.subr.mxu0 0.0
  %3303 = vmatpush1.xpose.msra.mxu0 0.0
  %3304 = vmatprep.subr.mxu0 0.0
  %3305 = vmatpush1.xpose.msra.mxu0 0.0
  %3306 = vmatprep.subr.mxu0 0.0
  %3307 = vmatpush1.xpose.msra.mxu0 0.0
  %3308 = vmatprep.subr.mxu0 0.0
  %3309 = vmatpush1.xpose.msra.mxu0 0.0
  %3310 = vmatprep.subr.mxu0 0.0
  %3311 = vmatpush1.xpose.msra.mxu0 0.0
  %3312 = vmatprep.subr.mxu0 0.0
  %3313 = vmatpush1.xpose.msra.mxu0 0.0
  %3314 = vmatprep.subr.mxu0 0.0
  %3315 = vmatpush1.xpose.msra.mxu0 0.0
  %3316 = vmatprep.subr.mxu0 0.0
  %3317 = vmatpush1.xpose.msra.mxu0 0.0
  %3318 = vmatprep.subr.mxu0 0.0
  %3319 = vmatpush1.xpose.msra.mxu0 0.0
  %3320 = vmatprep.subr.mxu0 0.0
  %3321 = vmatpush1.xpose.msra.mxu0 0.0
  %3322 = vmatprep.mubr.f32.mxu0 0.0
  %3323 = vmatmul.mubr.f32.gmra.mrb[0].mxu0 %v3254
  %v3324 = vpop.f32.mrb[0].mxu0
  %v3325 = vadd.f32 0.0, %v3324
  %v3326 = vpop.f32.mrb[0].mxu0
  %3327 = vdwg.mxu0
  %v3328 = vsel %vm351, %v3247, -inf
  %3329 = vmax.xlane.f32.xlu0 %v3328
  %v3330 = vpop.xlane.xlu0 %3329
  %v3331 = vsel %vm351, %v3325, -inf
  %3332 = vmax.xlane.f32.xlu0 %v3331
  %v3333 = vpop.xlane.xlu0 %3332
  %v3334 = vsub.f32 %v3247, %v3330
  %v3335 = vsub.f32 %v3325, %v3333
  %v3336 = vmul.f32 %v3334, 1.442695
  %v3337 = vpow.pop %v3336
  %v3338 = vmul.f32 %v3335, 1.442695
  %v3339 = vpow.pop %v3338
  %v3340 = vsel %vm351, %v3337, 0.0
  %3341 = vadd.xlane.f32.xlu0 %v3340
  %v3342 = vpop.xlane.xlu0 %3341
  %v3343 = vsel %vm351, %v3339, 0.0
  %3344 = vadd.xlane.f32.xlu0 %v3343
  %v3345 = vpop.xlane.xlu0 %3344
  %v3346 = vrcp.pop %v3342
  %v3347 = vrcp.pop %v3345
  %v3348 = vmul.f32 %v3337, %v3346
  %v3349 = vmul.f32 %v3339, %v3347
  %3350 = vrot.lane.b32.xlu0 %v2184, 104
  %v3351 = vpop.permute.xlu0 %3350
  %v3354 = vsel %vm351, %v3348, 0
  %3356 = vmatprep.subr.mxu0 0.0
  %3357 = vmatpush1.msra.mxu0 %v3351
  %3358 = vmatprep.subr.mxu0 0.0
  %3359 = vmatpush1.msra.mxu0 0.0
  %3360 = vmatprep.subr.mxu0 0.0
  %3361 = vmatpush1.msra.mxu0 0.0
  %3362 = vmatprep.subr.mxu0 0.0
  %3363 = vmatpush1.msra.mxu0 0.0
  %3364 = vmatprep.subr.mxu0 0.0
  %3365 = vmatpush1.msra.mxu0 0.0
  %3366 = vmatprep.subr.mxu0 0.0
  %3367 = vmatpush1.msra.mxu0 0.0
  %3368 = vmatprep.subr.mxu0 0.0
  %3369 = vmatpush1.msra.mxu0 0.0
  %3370 = vmatprep.subr.mxu0 0.0
  %3371 = vmatpush1.msra.mxu0 0.0
  %3372 = vmatprep.subr.mxu0 0.0
  %3373 = vmatpush1.msra.mxu0 0.0
  %3374 = vmatprep.subr.mxu0 0.0
  %3375 = vmatpush1.msra.mxu0 0.0
  %3376 = vmatprep.subr.mxu0 0.0
  %3377 = vmatpush1.msra.mxu0 0.0
  %3378 = vmatprep.subr.mxu0 0.0
  %3379 = vmatpush1.msra.mxu0 0.0
  %3380 = vmatprep.subr.mxu0 0.0
  %3381 = vmatpush1.msra.mxu0 0.0
  %3382 = vmatprep.subr.mxu0 0.0
  %3383 = vmatpush1.msra.mxu0 0.0
  %3384 = vmatprep.subr.mxu0 0.0
  %3385 = vmatpush1.msra.mxu0 0.0
  %3386 = vmatprep.subr.mxu0 0.0
  %3387 = vmatpush1.msra.mxu0 0.0
  %3388 = vmatprep.subr.mxu0 0.0
  %3389 = vmatpush1.msra.mxu0 0.0
  %3390 = vmatprep.subr.mxu0 0.0
  %3391 = vmatpush1.msra.mxu0 0.0
  %3392 = vmatprep.subr.mxu0 0.0
  %3393 = vmatpush1.msra.mxu0 0.0
  %3394 = vmatprep.subr.mxu0 0.0
  %3395 = vmatpush1.msra.mxu0 0.0
  %3396 = vmatprep.subr.mxu0 0.0
  %3397 = vmatpush1.msra.mxu0 0.0
  %3398 = vmatprep.subr.mxu0 0.0
  %3399 = vmatpush1.msra.mxu0 0.0
  %3400 = vmatprep.subr.mxu0 0.0
  %3401 = vmatpush1.msra.mxu0 0.0
  %3402 = vmatprep.subr.mxu0 0.0
  %3403 = vmatpush1.msra.mxu0 0.0
  %3404 = vmatprep.subr.mxu0 0.0
  %3405 = vmatpush1.msra.mxu0 0.0
  %3406 = vmatprep.subr.mxu0 0.0
  %3407 = vmatpush1.msra.mxu0 0.0
  %3408 = vmatprep.subr.mxu0 0.0
  %3409 = vmatpush1.msra.mxu0 0.0
  %3410 = vmatprep.subr.mxu0 0.0
  %3411 = vmatpush1.msra.mxu0 0.0
  %3412 = vmatprep.subr.mxu0 0.0
  %3413 = vmatpush1.msra.mxu0 0.0
  %3414 = vmatprep.subr.mxu0 0.0
  %3415 = vmatpush1.msra.mxu0 0.0
  %3416 = vmatprep.subr.mxu0 0.0
  %3417 = vmatpush1.msra.mxu0 0.0
  %3418 = vmatprep.subr.mxu0 0.0
  %3419 = vmatpush1.msra.mxu0 0.0
  %3420 = vmatprep.mubr.f32.mxu0 0.0
  %3421 = vmatmul.mubr.f32.gmra.mrb[0].mxu0 %v3354
  %v3422 = vpop.f32.mrb[0].mxu0
  %v3423 = vadd.f32 0.0, %v3422
  %v3424 = vpop.f32.mrb[0].mxu0
  %3425 = vdwg.mxu0
  %3426 = vrot.lane.b32.xlu0 %v2187, 104
  %v3427 = vpop.permute.xlu0 %3426
  %v3430 = vsel %vm351, %v3349, 0
  %3432 = vmatprep.subr.mxu0 0.0
  %3433 = vmatpush1.msra.mxu0 %v3427
  %3434 = vmatprep.subr.mxu0 0.0
  %3435 = vmatpush1.msra.mxu0 0.0
  %3436 = vmatprep.subr.mxu0 0.0
  %3437 = vmatpush1.msra.mxu0 0.0
  %3438 = vmatprep.subr.mxu0 0.0
  %3439 = vmatpush1.msra.mxu0 0.0
  %3440 = vmatprep.subr.mxu0 0.0
  %3441 = vmatpush1.msra.mxu0 0.0
  %3442 = vmatprep.subr.mxu0 0.0
  %3443 = vmatpush1.msra.mxu0 0.0
  %3444 = vmatprep.subr.mxu0 0.0
  %3445 = vmatpush1.msra.mxu0 0.0
  %3446 = vmatprep.subr.mxu0 0.0
  %3447 = vmatpush1.msra.mxu0 0.0
  %3448 = vmatprep.subr.mxu0 0.0
  %3449 = vmatpush1.msra.mxu0 0.0
  %3450 = vmatprep.subr.mxu0 0.0
  %3451 = vmatpush1.msra.mxu0 0.0
  %3452 = vmatprep.subr.mxu0 0.0
  %3453 = vmatpush1.msra.mxu0 0.0
  %3454 = vmatprep.subr.mxu0 0.0
  %3455 = vmatpush1.msra.mxu0 0.0
  %3456 = vmatprep.subr.mxu0 0.0
  %3457 = vmatpush1.msra.mxu0 0.0
  %3458 = vmatprep.subr.mxu0 0.0
  %3459 = vmatpush1.msra.mxu0 0.0
  %3460 = vmatprep.subr.mxu0 0.0
  %3461 = vmatpush1.msra.mxu0 0.0
  %3462 = vmatprep.subr.mxu0 0.0
  %3463 = vmatpush1.msra.mxu0 0.0
  %3464 = vmatprep.subr.mxu0 0.0
  %3465 = vmatpush1.msra.mxu0 0.0
  %3466 = vmatprep.subr.mxu0 0.0
  %3467 = vmatpush1.msra.mxu0 0.0
  %3468 = vmatprep.subr.mxu0 0.0
  %3469 = vmatpush1.msra.mxu0 0.0
  %3470 = vmatprep.subr.mxu0 0.0
  %3471 = vmatpush1.msra.mxu0 0.0
  %3472 = vmatprep.subr.mxu0 0.0
  %3473 = vmatpush1.msra.mxu0 0.0
  %3474 = vmatprep.subr.mxu0 0.0
  %3475 = vmatpush1.msra.mxu0 0.0
  %3476 = vmatprep.subr.mxu0 0.0
  %3477 = vmatpush1.msra.mxu0 0.0
  %3478 = vmatprep.subr.mxu0 0.0
  %3479 = vmatpush1.msra.mxu0 0.0
  %3480 = vmatprep.subr.mxu0 0.0
  %3481 = vmatpush1.msra.mxu0 0.0
  %3482 = vmatprep.subr.mxu0 0.0
  %3483 = vmatpush1.msra.mxu0 0.0
  %3484 = vmatprep.subr.mxu0 0.0
  %3485 = vmatpush1.msra.mxu0 0.0
  %3486 = vmatprep.subr.mxu0 0.0
  %3487 = vmatpush1.msra.mxu0 0.0
  %3488 = vmatprep.subr.mxu0 0.0
  %3489 = vmatpush1.msra.mxu0 0.0
  %3490 = vmatprep.subr.mxu0 0.0
  %3491 = vmatpush1.msra.mxu0 0.0
  %3492 = vmatprep.subr.mxu0 0.0
  %3493 = vmatpush1.msra.mxu0 0.0
  %3494 = vmatprep.subr.mxu0 0.0
  %3495 = vmatpush1.msra.mxu0 0.0
  %3496 = vmatprep.mubr.f32.mxu0 0.0
  %3497 = vmatmul.mubr.f32.gmra.mrb[0].mxu0 %v3430
  %v3498 = vpop.f32.mrb[0].mxu0
  %v3499 = vadd.f32 0.0, %v3498
  %v3500 = vpop.f32.mrb[0].mxu0
  %3501 = vdwg.mxu0
  %3504 = vrot.lane.b32.xlu0 %v2762, 8
  %v3505 = vpop.permute.xlu0 %3504
  %3506 = vrot.lane.b32.xlu0 %v2839, 8
  %v3507 = vpop.permute.xlu0 %3506
  %3512 = vrot.lane.b32.xlu0 %v3093, 16
  %v3513 = vpop.permute.xlu0 %3512
  %3514 = vrot.lane.b32.xlu0 %v3169, 16
  %v3515 = vpop.permute.xlu0 %3514
  %3520 = vrot.lane.b32.xlu0 %v3423, 24
  %v3521 = vpop.permute.xlu0 %3520
  %3522 = vrot.lane.b32.xlu0 %v3499, 24
  %v3523 = vpop.permute.xlu0 %3522
  %v3526 = vsel %vm351, %v2434, %v3505
  %v3527 = vsel %vm351, %v2507, %v3507
  %v3528 = vsel %vm1690, %v3526, %v3513
  %v3529 = vsel %vm1690, %v3527, %v3515
  %v3530 = vsel %vm1693, %v3528, %v3521
  %v3531 = vsel %vm1693, %v3529, %v3523
  %v3532 = vpack.c.bf16 %v3531, %v3530
  %v3533 = vld [vmem:[%s2 + $0xa0] sm:$0xf]
  %v3534 = vld [vmem:[%s2 + $0xa4] sm:$0xf]
  %v3535 = vld [vmem:[%s2 + $0xa8] sm:$0xf]
  %v3536 = vld [vmem:[%s2 + $0xac] sm:$0xf]
  %v3537 = vld [vmem:[%s3 + $0xd] sm:$0x1]
  %v3538 = vlaneseq
  %v3539 = vshrl.u32 %v3538, 7
  %v3540 = vsub.s32 0, %v3539
  %v3541 = vrot.slane %v3537, %v3540
  %v3546 = vunpack.c.l.b16 %v3533
  %v3547 = vunpack.c.l.b16 %v3534
  %v3548 = vunpack.c.l.b16 %v3535
  %v3549 = vunpack.c.l.b16 %v3536
  %v3550 = vpack.c.b16 %v3547, %v3546
  %v3551 = vpack.c.b16 %v3549, %v3548
  %v3555 = vsel %vm180, %v3532, 0
  %3557 = vmatprep.subr.bf16.mxu0 0
  %3558 = vmatpush1.bf16.msra.mxu0 %v3550
  %3559 = vmatprep.subr.bf16.mxu0 0
  %3560 = vmatpush1.bf16.msra.mxu0 %v3551
  %3561 = vmatprep.subr.bf16.mxu0 0
  %3562 = vmatpush1.bf16.msra.mxu0 0
  %3563 = vmatprep.subr.bf16.mxu0 0
  %3564 = vmatpush1.bf16.msra.mxu0 0
  %3565 = vmatprep.subr.bf16.mxu0 0
  %3566 = vmatpush1.bf16.msra.mxu0 0
  %3567 = vmatprep.subr.bf16.mxu0 0
  %3568 = vmatpush1.bf16.msra.mxu0 0
  %3569 = vmatprep.subr.bf16.mxu0 0
  %3570 = vmatpush1.bf16.msra.mxu0 0
  %3571 = vmatprep.subr.bf16.mxu0 0
  %3572 = vmatpush1.bf16.msra.mxu0 0
  %3573 = vmatprep.subr.bf16.mxu0 0
  %3574 = vmatpush1.bf16.msra.mxu0 0
  %3575 = vmatprep.subr.bf16.mxu0 0
  %3576 = vmatpush1.bf16.msra.mxu0 0
  %3577 = vmatprep.subr.bf16.mxu0 0
  %3578 = vmatpush1.bf16.msra.mxu0 0
  %3579 = vmatprep.subr.bf16.mxu0 0
  %3580 = vmatpush1.bf16.msra.mxu0 0
  %3581 = vmatprep.subr.bf16.mxu0 0
  %3582 = vmatpush1.bf16.msra.mxu0 0
  %3583 = vmatprep.subr.bf16.mxu0 0
  %3584 = vmatpush1.bf16.msra.mxu0 0
  %3585 = vmatprep.subr.bf16.mxu0 0
  %3586 = vmatpush1.bf16.msra.mxu0 0
  %3587 = vmatprep.subr.bf16.mxu0 0
  %3588 = vmatpush1.bf16.msra.mxu0 0
  %3589 = vmatprep.mubr.bf16.mxu0 0
  %3590 = vmatmul.mubr.bf16.gmra.mrb[0].mxu0 %v3555
  %v3591 = vpop.f32.mrb[0].mxu0
  %v3592 = vadd.f32 %v3541, %v3591
  %v3593 = vpop.f32.mrb[0].mxu0
  %v3594 = vpop.f32.mrb[0].mxu0
  %v3595 = vadd.f32 %v3541, %v3594
  %v3596 = vpop.f32.mrb[0].mxu0
  %3597 = vdwg.mxu0
  %v3598 = vadd.f32 %v1996, %v3592
  %v3599 = vadd.f32 %v1997, %v3595
  %v3600 = vld [vmem:[%s3 + $0xe] sm:$0x1]
  %v3601 = vld [vmem:[%s3 + $0xf] sm:$0x1]
  %v3602 = vsel %vm180, %v3598, 0.0
  %3603 = vadd.xlane.f32.xlu0 %v3602
  %v3604 = vpop.xlane.xlu0 %3603
  %v3605 = vsel %vm180, %v3599, 0.0
  %3606 = vadd.xlane.f32.xlu0 %v3605
  %v3607 = vpop.xlane.xlu0 %3606
  %v3608 = vmul.f32 %v3604, %v1772
  %v3609 = vmul.f32 %v3607, %v1772
  %v3610 = vsub.f32 %v3598, %v3608
  %v3611 = vsub.f32 %v3599, %v3609
  %v3612 = vmul.f32 %v3610, %v3610
  %v3613 = vmul.f32 %v3611, %v3611
  %v3614 = vsel %vm180, %v3612, 0.0
  %3615 = vadd.xlane.f32.xlu0 %v3614
  %v3616 = vpop.xlane.xlu0 %3615
  %v3617 = vsel %vm180, %v3613, 0.0
  %3618 = vadd.xlane.f32.xlu0 %v3617
  %v3619 = vpop.xlane.xlu0 %3618
  %v3620 = vmul.f32 %v3616, %v1772
  %v3621 = vmul.f32 %v3619, %v1772
  %v3622 = vadd.f32 %v3620, 1e-05
  %v3623 = vadd.f32 %v3621, 1e-05
  %v3624 = vrsqrt.pop %v3622
  %v3625 = vrsqrt.pop %v3623
  %v3626 = vmul.f32 %v3610, %v3624
  %v3627 = vmul.f32 %v3611, %v3625
  %v3628 = vlaneseq
  %v3629 = vshrl.u32 %v3628, 7
  %v3630 = vsub.s32 0, %v3629
  %v3631 = vrot.slane %v3600, %v3630
  %v3632 = vmul.f32 %v3626, %v3631
  %v3633 = vmul.f32 %v3627, %v3631
  %v3634 = vlaneseq
  %v3635 = vshrl.u32 %v3634, 7
  %v3636 = vsub.s32 0, %v3635
  %v3637 = vrot.slane %v3601, %v3636
  %v3638 = vadd.f32 %v3632, %v3637
  %v3639 = vadd.f32 %v3633, %v3637
  %v3640 = vpack.c.bf16 %v3639, %v3638
  %v3641 = vld [vmem:[%s2 + $0xb0] sm:$0xf]
  %v3642 = vld [vmem:[%s2 + $0xb4] sm:$0xf]
  %v3643 = vld [vmem:[%s2 + $0xb8] sm:$0xf]
  %v3644 = vld [vmem:[%s2 + $0xbc] sm:$0xf]
  %v3645 = vld [vmem:[%s3 + $0x13] sm:$0x1]
  %v3646 = vlaneseq
  %v3647 = vshrl.u32 %v3646, 7
  %v3648 = vsub.s32 0, %v3647
  %v3649 = vrot.slane %v3645, %v3648
  %v3654 = vunpack.c.l.b16 %v3641
  %v3655 = vunpack.c.l.b16 %v3642
  %v3656 = vunpack.c.l.b16 %v3643
  %v3657 = vunpack.c.l.b16 %v3644
  %v3658 = vpack.c.b16 %v3655, %v3654
  %v3659 = vpack.c.b16 %v3657, %v3656
  %v3663 = vsel %vm180, %v3640, 0
  %3665 = vmatprep.subr.bf16.mxu0 0
  %3666 = vmatpush1.bf16.msra.mxu0 %v3658
  %3667 = vmatprep.subr.bf16.mxu0 0
  %3668 = vmatpush1.bf16.msra.mxu0 %v3659
  %3669 = vmatprep.subr.bf16.mxu0 0
  %3670 = vmatpush1.bf16.msra.mxu0 0
  %3671 = vmatprep.subr.bf16.mxu0 0
  %3672 = vmatpush1.bf16.msra.mxu0 0
  %3673 = vmatprep.subr.bf16.mxu0 0
  %3674 = vmatpush1.bf16.msra.mxu0 0
  %3675 = vmatprep.subr.bf16.mxu0 0
  %3676 = vmatpush1.bf16.msra.mxu0 0
  %3677 = vmatprep.subr.bf16.mxu0 0
  %3678 = vmatpush1.bf16.msra.mxu0 0
  %3679 = vmatprep.subr.bf16.mxu0 0
  %3680 = vmatpush1.bf16.msra.mxu0 0
  %3681 = vmatprep.subr.bf16.mxu0 0
  %3682 = vmatpush1.bf16.msra.mxu0 0
  %3683 = vmatprep.subr.bf16.mxu0 0
  %3684 = vmatpush1.bf16.msra.mxu0 0
  %3685 = vmatprep.subr.bf16.mxu0 0
  %3686 = vmatpush1.bf16.msra.mxu0 0
  %3687 = vmatprep.subr.bf16.mxu0 0
  %3688 = vmatpush1.bf16.msra.mxu0 0
  %3689 = vmatprep.subr.bf16.mxu0 0
  %3690 = vmatpush1.bf16.msra.mxu0 0
  %3691 = vmatprep.subr.bf16.mxu0 0
  %3692 = vmatpush1.bf16.msra.mxu0 0
  %3693 = vmatprep.subr.bf16.mxu0 0
  %3694 = vmatpush1.bf16.msra.mxu0 0
  %3695 = vmatprep.subr.bf16.mxu0 0
  %3696 = vmatpush1.bf16.msra.mxu0 0
  %3697 = vmatprep.mubr.bf16.mxu0 0
  %3698 = vmatmul.mubr.bf16.gmra.mrb[0].mxu0 %v3663
  %v3699 = vpop.f32.mrb[0].mxu0
  %v3700 = vadd.f32 %v3649, %v3699
  %v3701 = vpop.f32.mrb[0].mxu0
  %v3702 = vpop.f32.mrb[0].mxu0
  %v3703 = vadd.f32 %v3649, %v3702
  %v3704 = vpop.f32.mrb[0].mxu0
  %3705 = vdwg.mxu0
  %v3706 = vmax.f32 %v3700, 0.0
  %v3707 = vmax.f32 %v3703, 0.0
  %v3708 = vpack.c.bf16 %v3707, %v3706
  %v3709 = vld [vmem:[%s2 + $0xc0] sm:$0xf]
  %v3710 = vld [vmem:[%s2 + $0xc4] sm:$0xf]
  %v3711 = vld [vmem:[%s2 + $0xc8] sm:$0xf]
  %v3712 = vld [vmem:[%s2 + $0xcc] sm:$0xf]
  %v3713 = vld [vmem:[%s2 + $0xd0] sm:$0xf]
  %v3714 = vld [vmem:[%s2 + $0xd4] sm:$0xf]
  %v3715 = vld [vmem:[%s2 + $0xd8] sm:$0xf]
  %v3716 = vld [vmem:[%s2 + $0xdc] sm:$0xf]
  %v3717 = vld [vmem:[%s3 + $0x12] sm:$0x1]
  %v3718 = vlaneseq
  %v3719 = vshrl.u32 %v3718, 7
  %v3720 = vsub.s32 0, %v3719
  %v3721 = vrot.slane %v3717, %v3720
  %v3730 = vunpack.c.l.b16 %v3709
  %v3731 = vunpack.c.l.b16 %v3710
  %v3732 = vunpack.c.l.b16 %v3711
  %v3733 = vunpack.c.l.b16 %v3712
  %v3734 = vunpack.c.l.b16 %v3713
  %v3735 = vunpack.c.l.b16 %v3714
  %v3736 = vunpack.c.l.b16 %v3715
  %v3737 = vunpack.c.l.b16 %v3716
  %v3738 = vpack.c.b16 %v3731, %v3730
  %v3739 = vpack.c.b16 %v3733, %v3732
  %v3740 = vpack.c.b16 %v3735, %v3734
  %v3741 = vpack.c.b16 %v3737, %v3736
  %v3747 = vsel %vm1911, %v3708, 0
  %3749 = vmatprep.subr.bf16.mxu0 0
  %3750 = vmatpush1.bf16.msra.mxu0 %v3738
  %3751 = vmatprep.subr.bf16.mxu0 0
  %3752 = vmatpush1.bf16.msra.mxu0 %v3739
  %3753 = vmatprep.subr.bf16.mxu0 0
  %3754 = vmatpush1.bf16.msra.mxu0 %v3740
  %3755 = vmatprep.subr.bf16.mxu0 0
  %3756 = vmatpush1.bf16.msra.mxu0 %v3741
  %3757 = vmatprep.subr.bf16.mxu0 0
  %3758 = vmatpush1.bf16.msra.mxu0 0
  %3759 = vmatprep.subr.bf16.mxu0 0
  %3760 = vmatpush1.bf16.msra.mxu0 0
  %3761 = vmatprep.subr.bf16.mxu0 0
  %3762 = vmatpush1.bf16.msra.mxu0 0
  %3763 = vmatprep.subr.bf16.mxu0 0
  %3764 = vmatpush1.bf16.msra.mxu0 0
  %3765 = vmatprep.subr.bf16.mxu0 0
  %3766 = vmatpush1.bf16.msra.mxu0 0
  %3767 = vmatprep.subr.bf16.mxu0 0
  %3768 = vmatpush1.bf16.msra.mxu0 0
  %3769 = vmatprep.subr.bf16.mxu0 0
  %3770 = vmatpush1.bf16.msra.mxu0 0
  %3771 = vmatprep.subr.bf16.mxu0 0
  %3772 = vmatpush1.bf16.msra.mxu0 0
  %3773 = vmatprep.subr.bf16.mxu0 0
  %3774 = vmatpush1.bf16.msra.mxu0 0
  %3775 = vmatprep.subr.bf16.mxu0 0
  %3776 = vmatpush1.bf16.msra.mxu0 0
  %3777 = vmatprep.subr.bf16.mxu0 0
  %3778 = vmatpush1.bf16.msra.mxu0 0
  %3779 = vmatprep.subr.bf16.mxu0 0
  %3780 = vmatpush1.bf16.msra.mxu0 0
  %3781 = vmatprep.mubr.bf16.mxu0 0
  %3782 = vmatmul.mubr.bf16.gmra.mrb[0].mxu0 %v3747
  %v3783 = vpop.f32.mrb[0].mxu0
  %v3784 = vadd.f32 %v3721, %v3783
  %v3785 = vpop.f32.mrb[0].mxu0
  %v3786 = vpop.f32.mrb[0].mxu0
  %v3787 = vadd.f32 %v3721, %v3786
  %v3788 = vpop.f32.mrb[0].mxu0
  %3789 = vdwg.mxu0
  %v3790 = vadd.f32 %v3638, %v3784
  %v3791 = vadd.f32 %v3639, %v3787
  %v3792 = vld [vmem:[%s3 + $0x10] sm:$0x1]
  %v3793 = vld [vmem:[%s3 + $0x11] sm:$0x1]
  %v3794 = vsel %vm180, %v3790, 0.0
  %3795 = vadd.xlane.f32.xlu0 %v3794
  %v3796 = vpop.xlane.xlu0 %3795
  %v3797 = vsel %vm180, %v3791, 0.0
  %3798 = vadd.xlane.f32.xlu0 %v3797
  %v3799 = vpop.xlane.xlu0 %3798
  %v3800 = vmul.f32 %v3796, %v1772
  %v3801 = vmul.f32 %v3799, %v1772
  %v3802 = vsub.f32 %v3790, %v3800
  %v3803 = vsub.f32 %v3791, %v3801
  %v3804 = vmul.f32 %v3802, %v3802
  %v3805 = vmul.f32 %v3803, %v3803
  %v3806 = vsel %vm180, %v3804, 0.0
  %3807 = vadd.xlane.f32.xlu0 %v3806
  %v3808 = vpop.xlane.xlu0 %3807
  %v3809 = vsel %vm180, %v3805, 0.0
  %3810 = vadd.xlane.f32.xlu0 %v3809
  %v3811 = vpop.xlane.xlu0 %3810
  %v3812 = vmul.f32 %v3808, %v1772
  %v3813 = vmul.f32 %v3811, %v1772
  %v3814 = vadd.f32 %v3812, 1e-05
  %v3815 = vadd.f32 %v3813, 1e-05
  %v3816 = vrsqrt.pop %v3814
  %v3817 = vrsqrt.pop %v3815
  %v3818 = vmul.f32 %v3802, %v3816
  %v3819 = vmul.f32 %v3803, %v3817
  %v3820 = vlaneseq
  %v3821 = vshrl.u32 %v3820, 7
  %v3822 = vsub.s32 0, %v3821
  %v3823 = vrot.slane %v3792, %v3822
  %v3824 = vmul.f32 %v3818, %v3823
  %v3825 = vmul.f32 %v3819, %v3823
  %v3826 = vlaneseq
  %v3827 = vshrl.u32 %v3826, 7
  %v3828 = vsub.s32 0, %v3827
  %v3829 = vrot.slane %v3793, %v3828
  %v3830 = vadd.f32 %v3824, %v3829
  %v3831 = vadd.f32 %v3825, %v3829
  %v3832 = vld [vmem:[%s3 + $0x14] sm:$0x1]
  %v3833 = vld [vmem:[%s3 + $0x15] sm:$0x1]
  %v3834 = vsel %vm180, %v3830, 0.0
  %3835 = vadd.xlane.f32.xlu0 %v3834
  %v3836 = vpop.xlane.xlu0 %3835
  %v3837 = vsel %vm180, %v3831, 0.0
  %3838 = vadd.xlane.f32.xlu0 %v3837
  %v3839 = vpop.xlane.xlu0 %3838
  %v3840 = vmul.f32 %v3836, %v1772
  %v3841 = vmul.f32 %v3839, %v1772
  %v3842 = vsub.f32 %v3830, %v3840
  %v3843 = vsub.f32 %v3831, %v3841
  %v3844 = vmul.f32 %v3842, %v3842
  %v3845 = vmul.f32 %v3843, %v3843
  %v3846 = vsel %vm180, %v3844, 0.0
  %3847 = vadd.xlane.f32.xlu0 %v3846
  %v3848 = vpop.xlane.xlu0 %3847
  %v3849 = vsel %vm180, %v3845, 0.0
  %3850 = vadd.xlane.f32.xlu0 %v3849
  %v3851 = vpop.xlane.xlu0 %3850
  %v3852 = vmul.f32 %v3848, %v1772
  %v3853 = vmul.f32 %v3851, %v1772
  %v3854 = vadd.f32 %v3852, 1e-05
  %v3855 = vadd.f32 %v3853, 1e-05
  %v3856 = vrsqrt.pop %v3854
  %v3857 = vrsqrt.pop %v3855
  %v3858 = vmul.f32 %v3842, %v3856
  %v3859 = vmul.f32 %v3843, %v3857
  %v3860 = vlaneseq
  %v3861 = vshrl.u32 %v3860, 7
  %v3862 = vsub.s32 0, %v3861
  %v3863 = vrot.slane %v3832, %v3862
  %v3864 = vmul.f32 %v3858, %v3863
  %v3865 = vmul.f32 %v3859, %v3863
  %v3866 = vlaneseq
  %v3867 = vshrl.u32 %v3866, 7
  %v3868 = vsub.s32 0, %v3867
  %v3869 = vrot.slane %v3833, %v3868
  %v3870 = vadd.f32 %v3864, %v3869
  %v3871 = vadd.f32 %v3865, %v3869
  %v3872 = vsel %vm180, %v3870, -inf
  %v3873 = vrot.slane %v3872, 4
  %v3874 = vmax.f32 %v3872, %v3873
  %v3875 = vrot.slane %v3874, 2
  %v3876 = vmax.f32 %v3874, %v3875
  %v3877 = vrot.slane %v3876, 1
  %v3878 = vmax.f32 %v3876, %v3877
  %v3879 = vsel %vm180, %v3871, -inf
  %v3880 = vrot.slane %v3879, 4
  %v3881 = vmax.f32 %v3879, %v3880
  %v3882 = vrot.slane %v3881, 2
  %v3883 = vmax.f32 %v3881, %v3882
  %v3884 = vrot.slane %v3883, 1
  %v3885 = vmax.f32 %v3883, %v3884
  %v3886 = vpack.c.bf16 %v3878, %v3878
  %v3887 = vpack.c.bf16 %v3885, %v3885
  %v3888 = vld [vmem:[%s2 + $0xe0] sm:$0xf]
  %v3889 = vld [vmem:[%s2 + $0xe4] sm:$0xf]
  %v3890 = vld [vmem:[%s2 + $0xe8] sm:$0xf]
  %v3891 = vld [vmem:[%s2 + $0xec] sm:$0xf]
  %v3892 = vld [vmem:[%s3 + $0x16] sm:$0x1]
  %v3893 = vlaneseq
  %v3894 = vshrl.u32 %v3893, 7
  %v3895 = vsub.s32 0, %v3894
  %v3896 = vrot.slane %v3892, %v3895
  %v3899 = vunpack.c.l.b16 %v3886
  %v3900 = vunpack.c.l.b16 %v3887
  %vm3901 = vcmask 1041409
  %v3902 = vsel %vm3901, %v3900, %v3899
  %v3903 = vpack.c.b16 %v3902, %v3902
  %v3908 = vunpack.c.l.b16 %v3888
  %v3909 = vunpack.c.l.b16 %v3889
  %v3910 = vunpack.c.l.b16 %v3890
  %v3911 = vunpack.c.l.b16 %v3891
  %v3912 = vpack.c.b16 %v3909, %v3908
  %v3913 = vpack.c.b16 %v3911, %v3910
  %v3917 = vsel %vm180, %v3903, 0
  %3919 = vmatprep.subr.bf16.mxu0 0
  %3920 = vmatpush1.bf16.msra.mxu0 %v3912
  %3921 = vmatprep.subr.bf16.mxu0 0
  %3922 = vmatpush1.bf16.msra.mxu0 %v3913
  %3923 = vmatprep.subr.bf16.mxu0 0
  %3924 = vmatpush1.bf16.msra.mxu0 0
  %3925 = vmatprep.subr.bf16.mxu0 0
  %3926 = vmatpush1.bf16.msra.mxu0 0
  %3927 = vmatprep.subr.bf16.mxu0 0
  %3928 = vmatpush1.bf16.msra.mxu0 0
  %3929 = vmatprep.subr.bf16.mxu0 0
  %3930 = vmatpush1.bf16.msra.mxu0 0
  %3931 = vmatprep.subr.bf16.mxu0 0
  %3932 = vmatpush1.bf16.msra.mxu0 0
  %3933 = vmatprep.subr.bf16.mxu0 0
  %3934 = vmatpush1.bf16.msra.mxu0 0
  %3935 = vmatprep.subr.bf16.mxu0 0
  %3936 = vmatpush1.bf16.msra.mxu0 0
  %3937 = vmatprep.subr.bf16.mxu0 0
  %3938 = vmatpush1.bf16.msra.mxu0 0
  %3939 = vmatprep.subr.bf16.mxu0 0
  %3940 = vmatpush1.bf16.msra.mxu0 0
  %3941 = vmatprep.subr.bf16.mxu0 0
  %3942 = vmatpush1.bf16.msra.mxu0 0
  %3943 = vmatprep.subr.bf16.mxu0 0
  %3944 = vmatpush1.bf16.msra.mxu0 0
  %3945 = vmatprep.subr.bf16.mxu0 0
  %3946 = vmatpush1.bf16.msra.mxu0 0
  %3947 = vmatprep.subr.bf16.mxu0 0
  %3948 = vmatpush1.bf16.msra.mxu0 0
  %3949 = vmatprep.subr.bf16.mxu0 0
  %3950 = vmatpush1.bf16.msra.mxu0 0
  %3951 = vmatprep.mubr.bf16.mxu0 0
  %3952 = vmatmul.mubr.bf16.gmra.mrb[0].mxu0 %v3917
  %v3953 = vpop.f32.mrb[0].mxu0
  %v3954 = vadd.f32 %v3896, %v3953
  %v3955 = vpop.f32.mrb[0].mxu0
  %v3956 = vpop.f32.mrb[0].mxu0
  %v3957 = vpop.f32.mrb[0].mxu0
  %3958 = vdwg.mxu0
  %v3959 = vmax.f32 %v3954, 0.0
  %v3960 = vld [vmem:[%s3 + $0x17] sm:$0x1]
  %v3961 = vlaneseq
  %v3962 = vshrl.u32 %v3961, 7
  %v3963 = vsub.s32 0, %v3962
  %v3964 = vrot.slane %v3960, %v3963
  %v3965 = vmul.f32 %v3959, %v3964
  %vm3966 = vcmask 517120
  %v3967 = vsel %vm3966, %v3965, 0.0
  %3968 = vadd.xlane.f32.xlu0 %v3967
  %v3969 = vpop.xlane.xlu0 %3968
  %v3970 = vld [vmem:[%s3 + $0x18] sm:$0x1]
  %v3971 = vlaneseq
  %v3972 = vshrl.u32 %v3971, 7
  %v3973 = vsub.s32 0, %v3972
  %v3974 = vrot.slane %v3970, %v3973
  %v3975 = vadd.f32 %v3969, %v3974
  %vm3976 = vcmask 1024
  %3977 = vst.msk [vmem:[%s4] sm:$0x3] %vm3976, %v3975
  // Predicated region
  $region18: #{logp_forward.1} parent=0 // pred_check
    _
  $region19: #{logp_forward.1} parent=0 // pred_check_branch
    %3979 = sbr.rel (0) target = $region21
  $region20: #{logp_forward.1} parent=0 // pred_region
    _
  $region21: #{logp_forward.1} parent=0 // pred_fallthru
    _
  // Predicated region
  $region22: #{logp_forward.1} parent=0 // pred_check
    _
  $region23: #{logp_forward.1} parent=0 // pred_check_branch
    %3981 = sbr.rel (0) target = $region25
  $region24: #{logp_forward.1} parent=0 // pred_region
    _
  $region25: #{logp_forward.1} parent=0 // pred_fallthru
    _

</llo_original>
